<compile_context>
chip_gen: v6e
topology: v6e:2x2x1
jax: 0.10.0
libtpu: 0.0.40
codegen_flags: <defaults>
</compile_context>

<pallas_src>
import functools

import jax
import jax.numpy as jnp
from jax import lax
from jax.experimental import pallas as pl
from jax.experimental.pallas import tpu as pltpu

NUM_CLASSES = 10
BN_EPS = 1e-5
SCORE_PAD = 128          # lane-dense padded width of the scores output


# ----------------------------- Pallas kernel --------------------------------
def _baseline_exit5_kernel(
    xpad_ref,                     # (N, H+2, W+2, Cin) bf16 padded NHWC input
    w6_ref, b6_ref,               # (9*Cin, Cout) bf16, (1, Cout) f32
    bn6s_ref, bn6t_ref,           # (1, Cout) f32 folded eval BatchNorm2d
    w1_hbm_ref,                   # (2048, 128) bf16, left in HBM (manual DMA)
    b1_ref,                       # (1, 128) f32
    w2_ref, b2_ref,               # (128, 128) bf16, (1, 128) f32
    w3_ref, b3_ref,
    w4_ref, b4_ref,
    bn7s_ref, bn7t_ref,           # (1, 128) f32 folded eval BatchNorm1d
    w5_ref, b5_ref,               # (128, SCORE_PAD) f32 bn7-folded fc5, (1, SCORE_PAD) f32
    feat_ref,                     # out: (N, 128) f32 == tensor_after_layer (post-bn7)
    scores_ref,                   # out: (N, SCORE_PAD) f32, cols >= NUM_CLASSES are 0
    w1_vmem, w1_sem,              # scratch: VMEM copy of fc1 weight + DMA semaphore
    *, N, H, W, Cin, Cout,
):
    # Kick off the fc1-weight fetch immediately: the 512 KB HBM transfer now
    # overlaps the in-VMEM im2col build, the conv matmul and the pooling below.
    w1_copy = pltpu.make_async_copy(w1_hbm_ref, w1_vmem, w1_sem)
    w1_copy.start()

    # --- conv6 (3x3 'same') as ONE im2col matmul; patches built in VMEM ------
    # 9 static shifted slices of the padded input, lane-concatenated.  Row
    # order (kh, kw, ci) matches the w6 packing done in prepare_params.
    taps = [
        xpad_ref[:, dy:dy + H, dx:dx + W, :].reshape(N * H * W, Cin)
        for dy in range(3) for dx in range(3)
    ]
    patches = jnp.concatenate(taps, axis=-1)                  # (N*H*W, 9*Cin) bf16
    acc = jnp.dot(patches, w6_ref[...],
                  preferred_element_type=jnp.float32)         # (N*H*W, Cout) f32
    acc = jnp.maximum(acc + b6_ref[...], 0.0)                 # bias + relu
    acc = acc * bn6s_ref[...] + bn6t_ref[...]                 # bn6 (eval, folded)

    # --- maxpool 2x2 stride 2 (dropout3 is identity in eval) -----------------
    x = acc.reshape(N, H, W // 2, 2, Cout)
    x = jnp.max(x, axis=3)
    x = x.reshape(N, H // 2, 2, W // 2, Cout)
    x = jnp.max(x, axis=2)                                    # (N, H/2, W/2, Cout)
    flat = x.reshape(N, (H // 2) * (W // 2) * Cout).astype(jnp.bfloat16)

    # --- MLP head (bf16 operands, f32 accumulation) ---------------------------
    w1_copy.wait()                                            # fc1 weight resident now
    h = jnp.dot(flat, w1_vmem[...], preferred_element_type=jnp.float32) + b1_ref[...]
    h = jnp.maximum(h, 0.0)
    h = jnp.dot(h.astype(jnp.bfloat16), w2_ref[...],
                preferred_element_type=jnp.float32) + b2_ref[...]
    h = jnp.maximum(h, 0.0)
    h = jnp.dot(h.astype(jnp.bfloat16), w3_ref[...],
                preferred_element_type=jnp.float32) + b3_ref[...]
    h = jnp.maximum(h, 0.0)
    h = jnp.dot(h.astype(jnp.bfloat16), w4_ref[...],
                preferred_element_type=jnp.float32) + b4_ref[...]
    h = jnp.maximum(h, 0.0)

    # bn7 (eval, folded); dropout4 is identity -> this IS tensor_after_layer.
    feat_ref[...] = h * bn7s_ref[...] + bn7t_ref[...]
    # fc5 with bn7 pre-folded into (w5, b5): off the serial bn7 VPU path.
    # Kept in f32 operands (tiny matmul) so scores stay full precision.
    scores_ref[...] = (jnp.dot(h, w5_ref[...],
                               preferred_element_type=jnp.float32) + b5_ref[...])


# ----------------------------- weight packing (one-time) ---------------------
def _fold_bn(gamma, beta, mean, var):
    scale = gamma / jnp.sqrt(var + BN_EPS)
    shift = beta - mean * scale
    return scale, shift


def prepare_params(p):
    """One-time weight re-layout + bf16 casts, hoisted out of the per-call path."""
    Cout, Cin = p["conv6_w"].shape[0], p["conv6_w"].shape[1]
    side = int(round((p["fc1_w"].shape[1] // Cout) ** 0.5))      # pooled H/2 == W/2
    Hh = Wh = side

    w6 = jnp.transpose(p["conv6_w"], (2, 3, 1, 0)).reshape(9 * Cin, Cout)  # (kh,kw,ci)->co
    bn6s, bn6t = _fold_bn(p["bn6_gamma"], p["bn6_beta"], p["bn6_mean"], p["bn6_var"])
    bn7s, bn7t = _fold_bn(p["bn7_gamma"], p["bn7_beta"], p["bn7_mean"], p["bn7_var"])

    # fc1: torch in-axis is NCHW flatten (c,h,w); kernel flattens NHWC (h,w,c).
    w1 = p["fc1_w"].reshape(128, Cout, Hh, Wh)
    w1 = jnp.transpose(w1, (0, 2, 3, 1)).reshape(128, Hh * Wh * Cout).T      # (2048, 128)

    # fc5 padded to a lane-dense 128-wide output (extra columns exactly zero),
    # with bn7 folded in:  scores = h @ (s7[:,None]*W5) + (t7 @ W5 + b5).
    w5 = jnp.pad(p["fc5_w"].T, ((0, 0), (0, SCORE_PAD - NUM_CLASSES)))
    b5 = jnp.pad(p["fc5_b"], (0, SCORE_PAD - NUM_CLASSES))
    w5_folded = (bn7s[:, None] * w5).astype(jnp.float32)
    b5_folded = (bn7t @ w5 + b5).astype(jnp.float32)

    bf = lambda a: a.astype(jnp.bfloat16)
    row = lambda a: a.reshape(1, -1).astype(jnp.float32)
    return {
        "w6": bf(w6), "b6": row(p["conv6_b"]), "bn6s": row(bn6s), "bn6t": row(bn6t),
        "w1": bf(w1), "b1": row(p["fc1_b"]),
        "w2": bf(p["fc2_w"].T), "b2": row(p["fc2_b"]),
        "w3": bf(p["fc3_w"].T), "b3": row(p["fc3_b"]),
        "w4": bf(p["fc4_w"].T), "b4": row(p["fc4_b"]),
        "bn7s": row(bn7s), "bn7t": row(bn7t),
        "w5": w5_folded, "b5": row(b5_folded),
    }


# ----------------------------- wrapper ---------------------------------------
@jax.jit
def baseline_forward_exit5(x_nchw, w):
    """x_nchw: (N, 128, 8, 8) f32 NCHW, w: prepare_params() output.
    Returns (tensor_after_layer (N,128), predicted_scores (N,10)) like the module."""
    N, Cin, H, W = x_nchw.shape
    Cout = w["w6"].shape[1]

    # Light per-call glue: NCHW->NHWC, 'same' pad, bf16 cast.  No HBM patch
    # materialization any more — im2col happens inside the kernel in VMEM.
    x_nhwc = jnp.transpose(x_nchw, (0, 2, 3, 1))
    xpad = jnp.pad(x_nhwc, ((0, 0), (1, 1), (1, 1), (0, 0))).astype(jnp.bfloat16)

    vmem = pl.BlockSpec(memory_space=pltpu.MemorySpace.VMEM)
    anyspace = pl.BlockSpec(memory_space=pl.ANY)     # fc1 weight stays in HBM
    kernel = functools.partial(_baseline_exit5_kernel,
                               N=N, H=H, W=W, Cin=Cin, Cout=Cout)

    feat, scores_pad = pl.pallas_call(
        kernel,
        out_shape=(
            jax.ShapeDtypeStruct((N, 128), jnp.float32),
            jax.ShapeDtypeStruct((N, SCORE_PAD), jnp.float32),
        ),
        in_specs=[vmem] * 5 + [anyspace] + [vmem] * 11,
        out_specs=(vmem, vmem),
        scratch_shapes=[
            pltpu.VMEM(w["w1"].shape, jnp.bfloat16),   # fc1 weight landing buffer
            pltpu.SemaphoreType.DMA(()),               # its DMA semaphore
        ],
    )(xpad, w["w6"], w["b6"], w["bn6s"], w["bn6t"], w["w1"], w["b1"],
      w["w2"], w["b2"], w["w3"], w["b3"], w["w4"], w["b4"],
      w["bn7s"], w["bn7t"], w["w5"], w["b5"])

    return feat, scores_pad[:, :NUM_CLASSES]


# ----------------------------- parameter init --------------------------------
def init_params(key):
    ks = jax.random.split(key, 24)
    n = lambda k, s, sc=0.05: sc * jax.random.normal(k, s, jnp.float32)
    return {
        "conv6_w": n(ks[0], (128, 128, 3, 3)),          # OIHW like torch
        "conv6_b": n(ks[1], (128,)),
        "bn6_gamma": 1.0 + n(ks[2], (128,), 0.1),
        "bn6_beta": n(ks[3], (128,), 0.1),
        "bn6_mean": n(ks[4], (128,), 0.1),
        "bn6_var": jax.random.uniform(ks[5], (128,), jnp.float32, 0.5, 1.5),
        "fc1_w": n(ks[6], (128, 2048), 0.02),           # (out, in) like torch
        "fc1_b": n(ks[7], (128,)),
        "fc2_w": n(ks[8], (128, 128)),
        "fc2_b": n(ks[9], (128,)),
        "fc3_w": n(ks[10], (128, 128)),
        "fc3_b": n(ks[11], (128,)),
        "fc4_w": n(ks[12], (128, 128)),
        "fc4_b": n(ks[13], (128,)),
        "bn7_gamma": 1.0 + n(ks[14], (128,), 0.1),
        "bn7_beta": n(ks[15], (128,), 0.1),
        "bn7_mean": n(ks[16], (128,), 0.1),
        "bn7_var": jax.random.uniform(ks[17], (128,), jnp.float32, 0.5, 1.5),
        "fc5_w": n(ks[18], (NUM_CLASSES, 128)),
        "fc5_b": n(ks[19], (NUM_CLASSES,)),
    }


# ----------------------------- pure-JAX reference ----------------------------
def reference_forward_exit5(x_nchw, p):
    y = lax.conv_general_dilated(
        x_nchw, p["conv6_w"], (1, 1), "SAME",
        dimension_numbers=("NCHW", "OIHW", "NCHW"))
    y = jnp.maximum(y + p["conv6_b"][None, :, None, None], 0.0)
    s, t = _fold_bn(p["bn6_gamma"], p["bn6_beta"], p["bn6_mean"], p["bn6_var"])
    y = y * s[None, :, None, None] + t[None, :, None, None]
    N, C, H, W = y.shape
    y = jnp.max(y.reshape(N, C, H // 2, 2, W // 2, 2), axis=(3, 5))
    h = y.reshape(N, -1)                                  # NCHW flatten
    h = jnp.maximum(h @ p["fc1_w"].T + p["fc1_b"], 0.0)
    h = jnp.maximum(h @ p["fc2_w"].T + p["fc2_b"], 0.0)
    h = jnp.maximum(h @ p["fc3_w"].T + p["fc3_b"], 0.0)
    h = jnp.maximum(h @ p["fc4_w"].T + p["fc4_b"], 0.0)
    s7, t7 = _fold_bn(p["bn7_gamma"], p["bn7_beta"], p["bn7_mean"], p["bn7_var"])
    tensor_after_layer = h * s7 + t7                      # bn7; dropout4 = identity
    scores = tensor_after_layer @ p["fc5_w"].T + p["fc5_b"]
    return tensor_after_layer, scores


# ----------------------------------- main -------------------------------------
if __name__ == "__main__":
    key = jax.random.PRNGKey(0)
    kx, kp = jax.random.split(key)

    # Default path (exit_layer_idx=5): conv6 needs 128 input channels and fc1
    # needs 2048 = 128*4*4 flattened features => input spatial 8x8.
    x = jax.random.normal(kx, (2, 128, 8, 8), jnp.float32)   # NCHW like PyTorch
    params = init_params(kp)

    packed = prepare_params(params)                           # one-time weight packing
    feat, scores = jax.block_until_ready(baseline_forward_exit5(x, packed))
    feat_ref, scores_ref = reference_forward_exit5(x, params)

    assert feat.shape == (2, 128) and scores.shape == (2, NUM_CLASSES)
    # bf16 matmul operands (f32 accumulation) vs. an f32 reference.
    assert jnp.allclose(feat, feat_ref, atol=2e-2, rtol=2e-2)
    assert jnp.allclose(scores, scores_ref, atol=2e-2, rtol=2e-2)
    print("KERNEL_OK")
</pallas_src>

<mosaic_0001>
module attributes {stable_mosaic.version = 11 : i64} {
  func.func @_baseline_exit5_kernel(%arg0: memref<2x10x10x128xbf16, #tpu.memory_space<vmem>>, %arg1: memref<1152x128xbf16, #tpu.memory_space<vmem>>, %arg2: memref<1x128xf32, #tpu.memory_space<vmem>>, %arg3: memref<1x128xf32, #tpu.memory_space<vmem>>, %arg4: memref<1x128xf32, #tpu.memory_space<vmem>>, %arg5: memref<2048x128xbf16, #tpu.memory_space<any>>, %arg6: memref<1x128xf32, #tpu.memory_space<vmem>>, %arg7: memref<128x128xbf16, #tpu.memory_space<vmem>>, %arg8: memref<1x128xf32, #tpu.memory_space<vmem>>, %arg9: memref<128x128xbf16, #tpu.memory_space<vmem>>, %arg10: memref<1x128xf32, #tpu.memory_space<vmem>>, %arg11: memref<128x128xbf16, #tpu.memory_space<vmem>>, %arg12: memref<1x128xf32, #tpu.memory_space<vmem>>, %arg13: memref<1x128xf32, #tpu.memory_space<vmem>>, %arg14: memref<1x128xf32, #tpu.memory_space<vmem>>, %arg15: memref<128x128xf32, #tpu.memory_space<vmem>>, %arg16: memref<1x128xf32, #tpu.memory_space<vmem>>, %arg17: memref<2x128xf32, #tpu.memory_space<vmem>>, %arg18: memref<2x128xf32, #tpu.memory_space<vmem>>, %arg19: memref<2048x128xbf16, #tpu.memory_space<vmem>>, %arg20: memref<!tpu.dma_semaphore, #tpu.memory_space<semaphore_mem>>) attributes {dimension_semantics = [], scalar_prefetch = 0 : i64, scratch_operands = 2 : i64, tpu.core_type = #tpu.core_type<tc>} {
    tpu.enqueue_dma source(%arg5 : memref<2048x128xbf16, #tpu.memory_space<any>>) target(%arg19 : memref<2048x128xbf16, #tpu.memory_space<vmem>>) target_semaphore(%arg20 : memref<!tpu.dma_semaphore, #tpu.memory_space<semaphore_mem>>)
    %c0 = arith.constant 0 : index
    %c0_0 = arith.constant 0 : index
    %c0_1 = arith.constant 0 : index
    %c0_2 = arith.constant 0 : index
    %0 = vector.load %arg0[%c0, %c0_0, %c0_1, %c0_2] : memref<2x10x10x128xbf16, #tpu.memory_space<vmem>>, vector<2x8x8x128xbf16>
    %1 = vector.shape_cast %0 : vector<2x8x8x128xbf16> to vector<128x128xbf16>
    %c0_3 = arith.constant 0 : index
    %c0_4 = arith.constant 0 : index
    %c1 = arith.constant 1 : index
    %c0_5 = arith.constant 0 : index
    %2 = vector.load %arg0[%c0_3, %c0_4, %c1, %c0_5] : memref<2x10x10x128xbf16, #tpu.memory_space<vmem>>, vector<2x8x8x128xbf16>
    %3 = vector.shape_cast %2 : vector<2x8x8x128xbf16> to vector<128x128xbf16>
    %c0_6 = arith.constant 0 : index
    %c0_7 = arith.constant 0 : index
    %c2 = arith.constant 2 : index
    %c0_8 = arith.constant 0 : index
    %4 = vector.load %arg0[%c0_6, %c0_7, %c2, %c0_8] : memref<2x10x10x128xbf16, #tpu.memory_space<vmem>>, vector<2x8x8x128xbf16>
    %5 = vector.shape_cast %4 : vector<2x8x8x128xbf16> to vector<128x128xbf16>
    %c0_9 = arith.constant 0 : index
    %c1_10 = arith.constant 1 : index
    %c0_11 = arith.constant 0 : index
    %c0_12 = arith.constant 0 : index
    %6 = vector.load %arg0[%c0_9, %c1_10, %c0_11, %c0_12] : memref<2x10x10x128xbf16, #tpu.memory_space<vmem>>, vector<2x8x8x128xbf16>
    %7 = vector.shape_cast %6 : vector<2x8x8x128xbf16> to vector<128x128xbf16>
    %c0_13 = arith.constant 0 : index
    %c1_14 = arith.constant 1 : index
    %c1_15 = arith.constant 1 : index
    %c0_16 = arith.constant 0 : index
    %8 = vector.load %arg0[%c0_13, %c1_14, %c1_15, %c0_16] : memref<2x10x10x128xbf16, #tpu.memory_space<vmem>>, vector<2x8x8x128xbf16>
    %9 = vector.shape_cast %8 : vector<2x8x8x128xbf16> to vector<128x128xbf16>
    %c0_17 = arith.constant 0 : index
    %c1_18 = arith.constant 1 : index
    %c2_19 = arith.constant 2 : index
    %c0_20 = arith.constant 0 : index
    %10 = vector.load %arg0[%c0_17, %c1_18, %c2_19, %c0_20] : memref<2x10x10x128xbf16, #tpu.memory_space<vmem>>, vector<2x8x8x128xbf16>
    %11 = vector.shape_cast %10 : vector<2x8x8x128xbf16> to vector<128x128xbf16>
    %c0_21 = arith.constant 0 : index
    %c2_22 = arith.constant 2 : index
    %c0_23 = arith.constant 0 : index
    %c0_24 = arith.constant 0 : index
    %12 = vector.load %arg0[%c0_21, %c2_22, %c0_23, %c0_24] : memref<2x10x10x128xbf16, #tpu.memory_space<vmem>>, vector<2x8x8x128xbf16>
    %13 = vector.shape_cast %12 : vector<2x8x8x128xbf16> to vector<128x128xbf16>
    %c0_25 = arith.constant 0 : index
    %c2_26 = arith.constant 2 : index
    %c1_27 = arith.constant 1 : index
    %c0_28 = arith.constant 0 : index
    %14 = vector.load %arg0[%c0_25, %c2_26, %c1_27, %c0_28] : memref<2x10x10x128xbf16, #tpu.memory_space<vmem>>, vector<2x8x8x128xbf16>
    %15 = vector.shape_cast %14 : vector<2x8x8x128xbf16> to vector<128x128xbf16>
    %c0_29 = arith.constant 0 : index
    %c2_30 = arith.constant 2 : index
    %c2_31 = arith.constant 2 : index
    %c0_32 = arith.constant 0 : index
    %16 = vector.load %arg0[%c0_29, %c2_30, %c2_31, %c0_32] : memref<2x10x10x128xbf16, #tpu.memory_space<vmem>>, vector<2x8x8x128xbf16>
    %17 = vector.shape_cast %16 : vector<2x8x8x128xbf16> to vector<128x128xbf16>
    %18 = tpu.concatenate %1, %3, %5, %7, %9, %11, %13, %15, %17 in 1 : vector<128x128xbf16>, vector<128x128xbf16>, vector<128x128xbf16>, vector<128x128xbf16>, vector<128x128xbf16>, vector<128x128xbf16>, vector<128x128xbf16>, vector<128x128xbf16>, vector<128x128xbf16> -> vector<128x1152xbf16>
    %c0_33 = arith.constant 0 : index
    %c0_34 = arith.constant 0 : index
    %19 = vector.load %arg1[%c0_33, %c0_34] : memref<1152x128xbf16, #tpu.memory_space<vmem>>, vector<1152x128xbf16>
    %cst = arith.constant dense<0.000000e+00> : vector<128x128xf32>
    %20 = tpu.matmul %18, %19, %cst {dimension_numbers = #tpu.dot_dimension_numbers<[1], [0], [0], [1], [0, 0, 1, 1], [], []>} : vector<128x1152xbf16>, vector<1152x128xbf16>, vector<128x128xf32> -> vector<128x128xf32>
    %c0_35 = arith.constant 0 : index
    %c0_36 = arith.constant 0 : index
    %21 = vector.load %arg2[%c0_35, %c0_36] : memref<1x128xf32, #tpu.memory_space<vmem>>, vector<1x128xf32>
    %22 = vector.broadcast %21 : vector<1x128xf32> to vector<128x128xf32>
    %23 = arith.addf %20, %22 : vector<128x128xf32>
    %cst_37 = arith.constant 0.000000e+00 : f32
    %24 = vector.broadcast %cst_37 : f32 to vector<128x128xf32>
    %25 = arith.maximumf %23, %24 : vector<128x128xf32>
    %c0_38 = arith.constant 0 : index
    %c0_39 = arith.constant 0 : index
    %26 = vector.load %arg3[%c0_38, %c0_39] : memref<1x128xf32, #tpu.memory_space<vmem>>, vector<1x128xf32>
    %27 = vector.broadcast %26 : vector<1x128xf32> to vector<128x128xf32>
    %28 = arith.mulf %25, %27 : vector<128x128xf32>
    %c0_40 = arith.constant 0 : index
    %c0_41 = arith.constant 0 : index
    %29 = vector.load %arg4[%c0_40, %c0_41] : memref<1x128xf32, #tpu.memory_space<vmem>>, vector<1x128xf32>
    %30 = vector.broadcast %29 : vector<1x128xf32> to vector<128x128xf32>
    %31 = arith.addf %28, %30 : vector<128x128xf32>
    %32 = vector.shape_cast %31 : vector<128x128xf32> to vector<2x8x4x2x128xf32>
    %cst_42 = arith.constant dense<0xFF800000> : vector<2x8x4x128xf32>
    %33 = vector.multi_reduction <maximumf>, %32, %cst_42 [3] : vector<2x8x4x2x128xf32> to vector<2x8x4x128xf32>
    %34 = vector.shape_cast %33 : vector<2x8x4x128xf32> to vector<2x4x2x4x128xf32>
    %cst_43 = arith.constant dense<0xFF800000> : vector<2x4x4x128xf32>
    %35 = vector.multi_reduction <maximumf>, %34, %cst_43 [2] : vector<2x4x2x4x128xf32> to vector<2x4x4x128xf32>
    %36 = vector.shape_cast %35 : vector<2x4x4x128xf32> to vector<2x2048xf32>
    %37 = arith.truncf %36 : vector<2x2048xf32> to vector<2x2048xbf16>
    tpu.wait_dma2 semaphore(%arg20 : memref<!tpu.dma_semaphore, #tpu.memory_space<semaphore_mem>>) src(%arg5 : memref<2048x128xbf16, #tpu.memory_space<any>>) dst(%arg19 : memref<2048x128xbf16, #tpu.memory_space<vmem>>)
    %c0_44 = arith.constant 0 : index
    %c0_45 = arith.constant 0 : index
    %38 = vector.load %arg19[%c0_44, %c0_45] : memref<2048x128xbf16, #tpu.memory_space<vmem>>, vector<2048x128xbf16>
    %cst_46 = arith.constant dense<0.000000e+00> : vector<2x128xf32>
    %39 = tpu.matmul %37, %38, %cst_46 {dimension_numbers = #tpu.dot_dimension_numbers<[1], [0], [0], [1], [0, 0, 1, 1], [], []>} : vector<2x2048xbf16>, vector<2048x128xbf16>, vector<2x128xf32> -> vector<2x128xf32>
    %c0_47 = arith.constant 0 : index
    %c0_48 = arith.constant 0 : index
    %40 = vector.load %arg6[%c0_47, %c0_48] : memref<1x128xf32, #tpu.memory_space<vmem>>, vector<1x128xf32>
    %41 = vector.broadcast %40 : vector<1x128xf32> to vector<2x128xf32>
    %42 = arith.addf %39, %41 : vector<2x128xf32>
    %cst_49 = arith.constant 0.000000e+00 : f32
    %43 = vector.broadcast %cst_49 : f32 to vector<2x128xf32>
    %44 = arith.maximumf %42, %43 : vector<2x128xf32>
    %45 = arith.truncf %44 : vector<2x128xf32> to vector<2x128xbf16>
    %c0_50 = arith.constant 0 : index
    %c0_51 = arith.constant 0 : index
    %46 = vector.load %arg7[%c0_50, %c0_51] : memref<128x128xbf16, #tpu.memory_space<vmem>>, vector<128x128xbf16>
    %cst_52 = arith.constant dense<0.000000e+00> : vector<2x128xf32>
    %47 = tpu.matmul %45, %46, %cst_52 {dimension_numbers = #tpu.dot_dimension_numbers<[1], [0], [0], [1], [0, 0, 1, 1], [], []>} : vector<2x128xbf16>, vector<128x128xbf16>, vector<2x128xf32> -> vector<2x128xf32>
    %c0_53 = arith.constant 0 : index
    %c0_54 = arith.constant 0 : index
    %48 = vector.load %arg8[%c0_53, %c0_54] : memref<1x128xf32, #tpu.memory_space<vmem>>, vector<1x128xf32>
    %49 = vector.broadcast %48 : vector<1x128xf32> to vector<2x128xf32>
    %50 = arith.addf %47, %49 : vector<2x128xf32>
    %cst_55 = arith.constant 0.000000e+00 : f32
    %51 = vector.broadcast %cst_55 : f32 to vector<2x128xf32>
    %52 = arith.maximumf %50, %51 : vector<2x128xf32>
    %53 = arith.truncf %52 : vector<2x128xf32> to vector<2x128xbf16>
    %c0_56 = arith.constant 0 : index
    %c0_57 = arith.constant 0 : index
    %54 = vector.load %arg9[%c0_56, %c0_57] : memref<128x128xbf16, #tpu.memory_space<vmem>>, vector<128x128xbf16>
    %cst_58 = arith.constant dense<0.000000e+00> : vector<2x128xf32>
    %55 = tpu.matmul %53, %54, %cst_58 {dimension_numbers = #tpu.dot_dimension_numbers<[1], [0], [0], [1], [0, 0, 1, 1], [], []>} : vector<2x128xbf16>, vector<128x128xbf16>, vector<2x128xf32> -> vector<2x128xf32>
    %c0_59 = arith.constant 0 : index
    %c0_60 = arith.constant 0 : index
    %56 = vector.load %arg10[%c0_59, %c0_60] : memref<1x128xf32, #tpu.memory_space<vmem>>, vector<1x128xf32>
    %57 = vector.broadcast %56 : vector<1x128xf32> to vector<2x128xf32>
    %58 = arith.addf %55, %57 : vector<2x128xf32>
    %cst_61 = arith.constant 0.000000e+00 : f32
    %59 = vector.broadcast %cst_61 : f32 to vector<2x128xf32>
    %60 = arith.maximumf %58, %59 : vector<2x128xf32>
    %61 = arith.truncf %60 : vector<2x128xf32> to vector<2x128xbf16>
    %c0_62 = arith.constant 0 : index
    %c0_63 = arith.constant 0 : index
    %62 = vector.load %arg11[%c0_62, %c0_63] : memref<128x128xbf16, #tpu.memory_space<vmem>>, vector<128x128xbf16>
    %cst_64 = arith.constant dense<0.000000e+00> : vector<2x128xf32>
    %63 = tpu.matmul %61, %62, %cst_64 {dimension_numbers = #tpu.dot_dimension_numbers<[1], [0], [0], [1], [0, 0, 1, 1], [], []>} : vector<2x128xbf16>, vector<128x128xbf16>, vector<2x128xf32> -> vector<2x128xf32>
    %c0_65 = arith.constant 0 : index
    %c0_66 = arith.constant 0 : index
    %64 = vector.load %arg12[%c0_65, %c0_66] : memref<1x128xf32, #tpu.memory_space<vmem>>, vector<1x128xf32>
    %65 = vector.broadcast %64 : vector<1x128xf32> to vector<2x128xf32>
    %66 = arith.addf %63, %65 : vector<2x128xf32>
    %cst_67 = arith.constant 0.000000e+00 : f32
    %67 = vector.broadcast %cst_67 : f32 to vector<2x128xf32>
    %68 = arith.maximumf %66, %67 : vector<2x128xf32>
    %c0_68 = arith.constant 0 : index
    %c0_69 = arith.constant 0 : index
    %69 = vector.load %arg13[%c0_68, %c0_69] : memref<1x128xf32, #tpu.memory_space<vmem>>, vector<1x128xf32>
    %70 = vector.broadcast %69 : vector<1x128xf32> to vector<2x128xf32>
    %71 = arith.mulf %68, %70 : vector<2x128xf32>
    %c0_70 = arith.constant 0 : index
    %c0_71 = arith.constant 0 : index
    %72 = vector.load %arg14[%c0_70, %c0_71] : memref<1x128xf32, #tpu.memory_space<vmem>>, vector<1x128xf32>
    %73 = vector.broadcast %72 : vector<1x128xf32> to vector<2x128xf32>
    %74 = arith.addf %71, %73 : vector<2x128xf32>
    %c0_72 = arith.constant 0 : index
    %c0_73 = arith.constant 0 : index
    %75 = vector.load %arg17[%c0_72, %c0_73] : memref<2x128xf32, #tpu.memory_space<vmem>>, vector<2x128xf32>
    tpu.vector_store %arg17[%c0_72, %c0_73], %74 {strides = array<i32>} : memref<2x128xf32, #tpu.memory_space<vmem>>, vector<2x128xf32>,
    %c0_74 = arith.constant 0 : index
    %c0_75 = arith.constant 0 : index
    %76 = vector.load %arg15[%c0_74, %c0_75] : memref<128x128xf32, #tpu.memory_space<vmem>>, vector<128x128xf32>
    %cst_76 = arith.constant dense<0.000000e+00> : vector<2x128xf32>
    %77 = tpu.matmul %68, %76, %cst_76 {dimension_numbers = #tpu.dot_dimension_numbers<[1], [0], [0], [1], [0, 0, 1, 1], [], []>} : vector<2x128xf32>, vector<128x128xf32>, vector<2x128xf32> -> vector<2x128xf32>
    %c0_77 = arith.constant 0 : index
    %c0_78 = arith.constant 0 : index
    %78 = vector.load %arg16[%c0_77, %c0_78] : memref<1x128xf32, #tpu.memory_space<vmem>>, vector<1x128xf32>
    %79 = vector.broadcast %78 : vector<1x128xf32> to vector<2x128xf32>
    %80 = arith.addf %77, %79 : vector<2x128xf32>
    %c0_79 = arith.constant 0 : index
    %c0_80 = arith.constant 0 : index
    %81 = vector.load %arg18[%c0_79, %c0_80] : memref<2x128xf32, #tpu.memory_space<vmem>>, vector<2x128xf32>
    tpu.vector_store %arg18[%c0_79, %c0_80], %80 {strides = array<i32>} : memref<2x128xf32, #tpu.memory_space<vmem>>, vector<2x128xf32>,
    return
  }
}

</mosaic_0001>

<llo_original>
// kernel: baseline_forward_exit5.1
$region0: #{baseline_forward_exit5.1}
  #allocation0 [shape = 'u32[]', space=smem, size = 0x4, offset = 0x4, fixed_abs, tag = 'smem constant byte address 0x4 - core index']
  #allocation1 [shape = 'u32[144,128]{1,0:T(1,128)}', space=vmem, size = 0x12000, scoped, tag = 'internal scratch']
  #allocation2 [shape = 'bf16[2048,128]{1,0:T(8,128)(2,1)}', space=vmem, size = 0x80000, scoped, tag = 'scratch operand']
  #allocation3 [shape = 's32[1]{0}', space=sflag, size = 0x4, scoped, tag = 'scratch operand']
  #allocation10 [shape = 's32[]', space=sflag, size = 0x4, offset = 0, fixed_abs, tag = 'sflag constant byte address 0x0 - dummy sync flag']
  #allocation11 [shape = 's32[]', space=sflag, size = 0x4, offset = 0, fixed_abs, tag = 'sflag constant byte address 0x0 - dummy sync flag']
  #allocation12 [shape = 'u32[]', space=smem, size = 0x4, offset = 0x44, fixed_abs, tag = 'smem constant byte address 0x44 - assertion arg 0']
  #allocation13 [shape = 'u32[]', space=smem, size = 0x4, offset = 0x48, fixed_abs, tag = 'smem constant byte address 0x48 - assertion arg 1']
  %s0 = inlined_call_operand.vmem [shape: bf16[2,10,10,128], index: 0, kind: input, shape index: {}]
  %s1 = inlined_call_operand.hbm [shape: bf16[1152,128], index: 1, kind: input, shape index: {}]
  %s2 = inlined_call_operand.vmem [shape: f32[1,128], index: 2, kind: input, shape index: {}]
  %s3 = inlined_call_operand.vmem [shape: f32[1,128], index: 3, kind: input, shape index: {}]
  %s4 = inlined_call_operand.vmem [shape: f32[1,128], index: 4, kind: input, shape index: {}]
  %s5 = inlined_call_operand.hbm [shape: bf16[2048,128], index: 5, kind: input, shape index: {}]
  %s6 = inlined_call_operand.vmem [shape: f32[1,128], index: 6, kind: input, shape index: {}]
  %s7 = inlined_call_operand.vmem [shape: bf16[128,128], index: 7, kind: input, shape index: {}]
  %s8 = inlined_call_operand.vmem [shape: f32[1,128], index: 8, kind: input, shape index: {}]
  %s9 = inlined_call_operand.vmem [shape: bf16[128,128], index: 9, kind: input, shape index: {}]
  %s10 = inlined_call_operand.vmem [shape: f32[1,128], index: 10, kind: input, shape index: {}]
  %s11 = inlined_call_operand.vmem [shape: bf16[128,128], index: 11, kind: input, shape index: {}]
  %s12 = inlined_call_operand.vmem [shape: f32[1,128], index: 12, kind: input, shape index: {}]
  %s13 = inlined_call_operand.vmem [shape: f32[1,128], index: 13, kind: input, shape index: {}]
  %s14 = inlined_call_operand.vmem [shape: f32[1,128], index: 14, kind: input, shape index: {}]
  %s15 = inlined_call_operand.vmem [shape: f32[128,128], index: 15, kind: input, shape index: {}]
  %s16 = inlined_call_operand.vmem [shape: f32[1,128], index: 16, kind: input, shape index: {}]
  %s17 = inlined_call_operand.hbm [shape: f32[2,128], index: 17, kind: output, shape index: {0}]
  %s18 = inlined_call_operand.hbm [shape: f32[2,128], index: 18, kind: output, shape index: {1}]
  %19 = xla_tuple %s17, %s18
  %s20 = sld [smem:[#allocation0]]
  $region90: #{baseline_forward_exit5.1} parent=0
    _
  %s22 = ssub.s32 1, %s20
  %s23 = scalar_select 0, %s22, %s20
  $region1: #{baseline_forward_exit5.1} parent=0
    #allocation4 [shape = 'u8[294912]{0}', space=vmem, size = 0x48000, scoped, tag = 'input window, operand 1, single buffered']
    #allocation5 [shape = 's32[1]{0}', space=sflag, size = 0x4, scoped, tag = 'scoped memory for baseline_forward_exit5.1']
    #allocation6 [shape = 's32[1]{0}', space=sflag, size = 0x4, scoped, tag = 'scoped memory for baseline_forward_exit5.1']
    #allocation7 [shape = 'u8[1024]{0}', space=vmem, size = 0x400, scoped, tag = 'output window, operand 0, single buffered']
    #allocation8 [shape = 'u8[1024]{0}', space=vmem, size = 0x400, scoped, tag = 'output window, operand 1, single buffered']
    #allocation9 [shape = 's32[1]{0}', space=sflag, size = 0x4, scoped, tag = 'scoped memory for baseline_forward_exit5.1']
    %24 = vsyncpa [#allocation5], 0
    %25 = vsyncpa [#allocation6], 0
    %26 = vsyncpa [#allocation9], 0
    // Predicated region
    $region2: #{baseline_forward_exit5.1} parent=1 // pred_check
      _
    $region3: #{baseline_forward_exit5.1} parent=1 // pred_check_branch
      %28 = sbr.rel (0) target = $region5
    $region4: #{baseline_forward_exit5.1} parent=1 // pred_region
      _
    $region5: #{baseline_forward_exit5.1} parent=1 // pred_fallthru
      _
    // Predicated region
    $region6: #{baseline_forward_exit5.1} parent=1 // pred_check
      _
    $region7: #{baseline_forward_exit5.1} parent=1 // pred_check_branch
      %30 = sbr.rel (0) target = $region9
    $region8: #{baseline_forward_exit5.1} parent=1 // pred_region
      %s32 = ssub.s32 9216, 9216
      %33 = vsyncadd [#allocation5], %s32
      %s34 = sshll.u32 [#allocation4], 4
      %s35 = int_to_ptr.vmem [resolvable:$true] %s34
      %40 = dma.hbm_to_vmem [thread:$0]  %s1, 9216, %s35, [#allocation5], 64, 64, 4
    $region9: #{baseline_forward_exit5.1} parent=1 // pred_fallthru
      _
    // Predicated region
    $region10: #{baseline_forward_exit5.1} parent=1 // pred_check
      _
    $region11: #{baseline_forward_exit5.1} parent=1 // pred_check_branch
      %42 = sbr.rel (0) target = $region13
    $region12: #{baseline_forward_exit5.1} parent=1 // pred_region
      _
    $region13: #{baseline_forward_exit5.1} parent=1 // pred_fallthru
      _
    // Predicated region
    $region14: #{baseline_forward_exit5.1} parent=1 // pred_check
      _
    $region15: #{baseline_forward_exit5.1} parent=1 // pred_check_branch
      %44 = sbr.rel (0) target = $region17
    $region16: #{baseline_forward_exit5.1} parent=1 // pred_region
      _
    $region17: #{baseline_forward_exit5.1} parent=1 // pred_fallthru
      _
    // Predicated region
    $region18: #{baseline_forward_exit5.1} parent=1 // pred_check
      _
    $region19: #{baseline_forward_exit5.1} parent=1 // pred_check_branch
      %46 = sbr.rel (0) target = $region21
    $region20: #{baseline_forward_exit5.1} parent=1 // pred_region
      _
    $region21: #{baseline_forward_exit5.1} parent=1 // pred_fallthru
      _
    // Predicated region
    $region22: #{baseline_forward_exit5.1} parent=1 // pred_check
      _
    $region23: #{baseline_forward_exit5.1} parent=1 // pred_check_branch
      %48 = sbr.rel (0) target = $region25
    $region24: #{baseline_forward_exit5.1} parent=1 // pred_region
      _
    $region25: #{baseline_forward_exit5.1} parent=1 // pred_fallthru
      _
    // Predicated region
    $region26: #{baseline_forward_exit5.1} parent=1 // pred_check
      _
    $region27: #{baseline_forward_exit5.1} parent=1 // pred_check_branch
      %50 = sbr.rel (0) target = $region29
    $region28: #{baseline_forward_exit5.1} parent=1 // pred_region
      _
    $region29: #{baseline_forward_exit5.1} parent=1 // pred_fallthru
      _
    // Predicated region
    $region30: #{baseline_forward_exit5.1} parent=1 // pred_check
      _
    $region31: #{baseline_forward_exit5.1} parent=1 // pred_check_branch
      %52 = sbr.rel (0) target = $region33
    $region32: #{baseline_forward_exit5.1} parent=1 // pred_region
      _
    $region33: #{baseline_forward_exit5.1} parent=1 // pred_fallthru
      _
    // Predicated region
    $region34: #{baseline_forward_exit5.1} parent=1 // pred_check
      _
    $region35: #{baseline_forward_exit5.1} parent=1 // pred_check_branch
      %54 = sbr.rel (0) target = $region37
    $region36: #{baseline_forward_exit5.1} parent=1 // pred_region
      _
    $region37: #{baseline_forward_exit5.1} parent=1 // pred_fallthru
      _
    // Predicated region
    $region38: #{baseline_forward_exit5.1} parent=1 // pred_check
      _
    $region39: #{baseline_forward_exit5.1} parent=1 // pred_check_branch
      %56 = sbr.rel (0) target = $region41
    $region40: #{baseline_forward_exit5.1} parent=1 // pred_region
      _
    $region41: #{baseline_forward_exit5.1} parent=1 // pred_fallthru
      _
    // Predicated region
    $region42: #{baseline_forward_exit5.1} parent=1 // pred_check
      _
    $region43: #{baseline_forward_exit5.1} parent=1 // pred_check_branch
      %58 = sbr.rel (0) target = $region45
    $region44: #{baseline_forward_exit5.1} parent=1 // pred_region
      _
    $region45: #{baseline_forward_exit5.1} parent=1 // pred_fallthru
      _
    // Predicated region
    $region46: #{baseline_forward_exit5.1} parent=1 // pred_check
      _
    $region47: #{baseline_forward_exit5.1} parent=1 // pred_check_branch
      %60 = sbr.rel (0) target = $region49
    $region48: #{baseline_forward_exit5.1} parent=1 // pred_region
      _
    $region49: #{baseline_forward_exit5.1} parent=1 // pred_fallthru
      _
    // Predicated region
    $region50: #{baseline_forward_exit5.1} parent=1 // pred_check
      _
    $region51: #{baseline_forward_exit5.1} parent=1 // pred_check_branch
      %62 = sbr.rel (0) target = $region53
    $region52: #{baseline_forward_exit5.1} parent=1 // pred_region
      _
    $region53: #{baseline_forward_exit5.1} parent=1 // pred_fallthru
      _
    // Predicated region
    $region54: #{baseline_forward_exit5.1} parent=1 // pred_check
      _
    $region55: #{baseline_forward_exit5.1} parent=1 // pred_check_branch
      %64 = sbr.rel (0) target = $region57
    $region56: #{baseline_forward_exit5.1} parent=1 // pred_region
      _
    $region57: #{baseline_forward_exit5.1} parent=1 // pred_fallthru
      _
    // Predicated region
    $region58: #{baseline_forward_exit5.1} parent=1 // pred_check
      _
    $region59: #{baseline_forward_exit5.1} parent=1 // pred_check_branch
      %66 = sbr.rel (0) target = $region61
    $region60: #{baseline_forward_exit5.1} parent=1 // pred_region
      _
    $region61: #{baseline_forward_exit5.1} parent=1 // pred_fallthru
      _
    // Predicated region
    $region62: #{baseline_forward_exit5.1} parent=1 // pred_check
      _
    $region63: #{baseline_forward_exit5.1} parent=1 // pred_check_branch
      %68 = sbr.rel (0) target = $region65
    $region64: #{baseline_forward_exit5.1} parent=1 // pred_region
      _
    $region65: #{baseline_forward_exit5.1} parent=1 // pred_fallthru
      _
    // Predicated region
    $region66: #{baseline_forward_exit5.1} parent=1 // pred_check
      _
    $region67: #{baseline_forward_exit5.1} parent=1 // pred_check_branch
      %70 = sbr.rel (0) target = $region69
    $region68: #{baseline_forward_exit5.1} parent=1 // pred_region
      %71 = dma.done [#allocation5], 9216
    $region69: #{baseline_forward_exit5.1} parent=1 // pred_fallthru
      _
    // Predicated region
    $region70: #{baseline_forward_exit5.1} parent=1 // pred_check
      _
    $region71: #{baseline_forward_exit5.1} parent=1 // pred_check_branch
      %74 = sbr.rel target = $region73
    $region72: #{baseline_forward_exit5.1} parent=1 // pred_region
      %75 = sst [smem:[#allocation12]] [#allocation11]
      %76 = sst [smem:[#allocation13]] [#allocation10]
    $region73: #{baseline_forward_exit5.1} parent=1 // pred_fallthru
      _
    %78 = shalt.err (0)
    %s80 = sshll.u32 [#allocation2], 4
    %s81 = int_to_ptr.vmem [resolvable:$true] %s80
    %83 = dma.hbm_to_vmem [thread:$0]  %s5, 16384, %s81, [#allocation3]
    %v84 = vld [vmem:[%s0] sm:$0xf]
    %v85 = vld [vmem:[%s0 + $0x8] sm:$0xf]
    %v86 = vld [vmem:[%s0 + $0x10] sm:$0xf]
    %v87 = vld [vmem:[%s0 + $0x18] sm:$0xf]
    %v88 = vld [vmem:[%s0 + $0x20] sm:$0xf]
    %v89 = vld [vmem:[%s0 + $0x28] sm:$0xf]
    %v90 = vld [vmem:[%s0 + $0x30] sm:$0xf]
    %v91 = vld [vmem:[%s0 + $0x38] sm:$0xf]
    %v92 = vld [vmem:[%s0 + $0x50] sm:$0xf]
    %v93 = vld [vmem:[%s0 + $0x58] sm:$0xf]
    %v94 = vld [vmem:[%s0 + $0x60] sm:$0xf]
    %v95 = vld [vmem:[%s0 + $0x68] sm:$0xf]
    %v96 = vld [vmem:[%s0 + $0x70] sm:$0xf]
    %v97 = vld [vmem:[%s0 + $0x78] sm:$0xf]
    %v98 = vld [vmem:[%s0 + $0x80] sm:$0xf]
    %v99 = vld [vmem:[%s0 + $0x88] sm:$0xf]
    %v100 = vld [vmem:[%s0 + $0x4] sm:$0x1]
    %v101 = vld [vmem:[%s0 + $0xc] sm:$0x1]
    %v102 = vld [vmem:[%s0 + $0x14] sm:$0x1]
    %v103 = vld [vmem:[%s0 + $0x1c] sm:$0x1]
    %v104 = vld [vmem:[%s0 + $0x24] sm:$0x1]
    %v105 = vld [vmem:[%s0 + $0x2c] sm:$0x1]
    %v106 = vld [vmem:[%s0 + $0x34] sm:$0x1]
    %v107 = vld [vmem:[%s0 + $0x3c] sm:$0x1]
    %v108 = vld [vmem:[%s0 + $0x54] sm:$0x1]
    %v109 = vld [vmem:[%s0 + $0x5c] sm:$0x1]
    %v110 = vld [vmem:[%s0 + $0x64] sm:$0x1]
    %v111 = vld [vmem:[%s0 + $0x6c] sm:$0x1]
    %v112 = vld [vmem:[%s0 + $0x74] sm:$0x1]
    %v113 = vld [vmem:[%s0 + $0x7c] sm:$0x1]
    %v114 = vld [vmem:[%s0 + $0x84] sm:$0x1]
    %v115 = vld [vmem:[%s0 + $0x8c] sm:$0x1]
    %vm116 = vsmask.f32 3328
    %vm117 = vsmask.f32 7440
    %vm118 = vmor %vm116, %vm117
    %v120 = vshrl.u32 %v84, 16
    %v122 = vrot.slane %v120, 4
    %v123 = vshll.u32 %v84, 16
    %v125 = vrot.slane %v123, 5
    %v126 = vor.u32 %v122, %v125
    %v127 = vrot.slane %v126, 4
    %v129 = vshll.u32 %v100, 16
    %v131 = vrot.slane %v129, 5
    %v132 = vsel %vm118, %v127, %v131
    %v134 = vshrl.u32 %v85, 16
    %v136 = vrot.slane %v134, 4
    %v137 = vshll.u32 %v85, 16
    %v139 = vrot.slane %v137, 5
    %v140 = vor.u32 %v136, %v139
    %v141 = vrot.slane %v140, 4
    %v143 = vshll.u32 %v101, 16
    %v145 = vrot.slane %v143, 5
    %v146 = vsel %vm118, %v141, %v145
    %v148 = vshrl.u32 %v86, 16
    %v150 = vrot.slane %v148, 4
    %v151 = vshll.u32 %v86, 16
    %v153 = vrot.slane %v151, 5
    %v154 = vor.u32 %v150, %v153
    %v155 = vrot.slane %v154, 4
    %v157 = vshll.u32 %v102, 16
    %v159 = vrot.slane %v157, 5
    %v160 = vsel %vm118, %v155, %v159
    %v162 = vshrl.u32 %v87, 16
    %v164 = vrot.slane %v162, 4
    %v165 = vshll.u32 %v87, 16
    %v167 = vrot.slane %v165, 5
    %v168 = vor.u32 %v164, %v167
    %v169 = vrot.slane %v168, 4
    %v171 = vshll.u32 %v103, 16
    %v173 = vrot.slane %v171, 5
    %v174 = vsel %vm118, %v169, %v173
    %v176 = vshrl.u32 %v88, 16
    %v178 = vrot.slane %v176, 4
    %v179 = vshll.u32 %v88, 16
    %v181 = vrot.slane %v179, 5
    %v182 = vor.u32 %v178, %v181
    %v183 = vrot.slane %v182, 4
    %v185 = vshll.u32 %v104, 16
    %v187 = vrot.slane %v185, 5
    %v188 = vsel %vm118, %v183, %v187
    %v190 = vshrl.u32 %v89, 16
    %v192 = vrot.slane %v190, 4
    %v193 = vshll.u32 %v89, 16
    %v195 = vrot.slane %v193, 5
    %v196 = vor.u32 %v192, %v195
    %v197 = vrot.slane %v196, 4
    %v199 = vshll.u32 %v105, 16
    %v201 = vrot.slane %v199, 5
    %v202 = vsel %vm118, %v197, %v201
    %v204 = vshrl.u32 %v90, 16
    %v206 = vrot.slane %v204, 4
    %v207 = vshll.u32 %v90, 16
    %v209 = vrot.slane %v207, 5
    %v210 = vor.u32 %v206, %v209
    %v211 = vrot.slane %v210, 4
    %v213 = vshll.u32 %v106, 16
    %v215 = vrot.slane %v213, 5
    %v216 = vsel %vm118, %v211, %v215
    %v218 = vshrl.u32 %v91, 16
    %v220 = vrot.slane %v218, 4
    %v221 = vshll.u32 %v91, 16
    %v223 = vrot.slane %v221, 5
    %v224 = vor.u32 %v220, %v223
    %v225 = vrot.slane %v224, 4
    %v227 = vshll.u32 %v107, 16
    %v229 = vrot.slane %v227, 5
    %v230 = vsel %vm118, %v225, %v229
    %v232 = vshrl.u32 %v92, 16
    %v234 = vrot.slane %v232, 4
    %v235 = vshll.u32 %v92, 16
    %v237 = vrot.slane %v235, 5
    %v238 = vor.u32 %v234, %v237
    %v239 = vrot.slane %v238, 4
    %v241 = vshll.u32 %v108, 16
    %v243 = vrot.slane %v241, 5
    %v244 = vsel %vm118, %v239, %v243
    %v246 = vshrl.u32 %v93, 16
    %v248 = vrot.slane %v246, 4
    %v249 = vshll.u32 %v93, 16
    %v251 = vrot.slane %v249, 5
    %v252 = vor.u32 %v248, %v251
    %v253 = vrot.slane %v252, 4
    %v255 = vshll.u32 %v109, 16
    %v257 = vrot.slane %v255, 5
    %v258 = vsel %vm118, %v253, %v257
    %v260 = vshrl.u32 %v94, 16
    %v262 = vrot.slane %v260, 4
    %v263 = vshll.u32 %v94, 16
    %v265 = vrot.slane %v263, 5
    %v266 = vor.u32 %v262, %v265
    %v267 = vrot.slane %v266, 4
    %v269 = vshll.u32 %v110, 16
    %v271 = vrot.slane %v269, 5
    %v272 = vsel %vm118, %v267, %v271
    %v274 = vshrl.u32 %v95, 16
    %v276 = vrot.slane %v274, 4
    %v277 = vshll.u32 %v95, 16
    %v279 = vrot.slane %v277, 5
    %v280 = vor.u32 %v276, %v279
    %v281 = vrot.slane %v280, 4
    %v283 = vshll.u32 %v111, 16
    %v285 = vrot.slane %v283, 5
    %v286 = vsel %vm118, %v281, %v285
    %v288 = vshrl.u32 %v96, 16
    %v290 = vrot.slane %v288, 4
    %v291 = vshll.u32 %v96, 16
    %v293 = vrot.slane %v291, 5
    %v294 = vor.u32 %v290, %v293
    %v295 = vrot.slane %v294, 4
    %v297 = vshll.u32 %v112, 16
    %v299 = vrot.slane %v297, 5
    %v300 = vsel %vm118, %v295, %v299
    %v302 = vshrl.u32 %v97, 16
    %v304 = vrot.slane %v302, 4
    %v305 = vshll.u32 %v97, 16
    %v307 = vrot.slane %v305, 5
    %v308 = vor.u32 %v304, %v307
    %v309 = vrot.slane %v308, 4
    %v311 = vshll.u32 %v113, 16
    %v313 = vrot.slane %v311, 5
    %v314 = vsel %vm118, %v309, %v313
    %v316 = vshrl.u32 %v98, 16
    %v318 = vrot.slane %v316, 4
    %v319 = vshll.u32 %v98, 16
    %v321 = vrot.slane %v319, 5
    %v322 = vor.u32 %v318, %v321
    %v323 = vrot.slane %v322, 4
    %v325 = vshll.u32 %v114, 16
    %v327 = vrot.slane %v325, 5
    %v328 = vsel %vm118, %v323, %v327
    %v330 = vshrl.u32 %v99, 16
    %v332 = vrot.slane %v330, 4
    %v333 = vshll.u32 %v99, 16
    %v335 = vrot.slane %v333, 5
    %v336 = vor.u32 %v332, %v335
    %v337 = vrot.slane %v336, 4
    %v339 = vshll.u32 %v115, 16
    %v341 = vrot.slane %v339, 5
    %v342 = vsel %vm118, %v337, %v341
    %v343 = vld [vmem:[%s0] sm:$0xe]
    %v344 = vld [vmem:[%s0 + $0x8] sm:$0xe]
    %v345 = vld [vmem:[%s0 + $0x10] sm:$0xe]
    %v346 = vld [vmem:[%s0 + $0x18] sm:$0xe]
    %v347 = vld [vmem:[%s0 + $0x20] sm:$0xe]
    %v348 = vld [vmem:[%s0 + $0x28] sm:$0xe]
    %v349 = vld [vmem:[%s0 + $0x30] sm:$0xe]
    %v350 = vld [vmem:[%s0 + $0x38] sm:$0xe]
    %v351 = vld [vmem:[%s0 + $0x50] sm:$0xe]
    %v352 = vld [vmem:[%s0 + $0x58] sm:$0xe]
    %v353 = vld [vmem:[%s0 + $0x60] sm:$0xe]
    %v354 = vld [vmem:[%s0 + $0x68] sm:$0xe]
    %v355 = vld [vmem:[%s0 + $0x70] sm:$0xe]
    %v356 = vld [vmem:[%s0 + $0x78] sm:$0xe]
    %v357 = vld [vmem:[%s0 + $0x80] sm:$0xe]
    %v358 = vld [vmem:[%s0 + $0x88] sm:$0xe]
    %vm391 = vcmask 1042432
    %vm392 = vcmask 1046532
    %vm393 = vmor %vm391, %vm392
    %v394 = vrot.slane %v343, 5
    %v395 = vrot.slane %v394, 4
    %v396 = vrot.slane %v100, 5
    %v397 = vsel %vm393, %v395, %v396
    %v398 = vrot.slane %v344, 5
    %v399 = vrot.slane %v398, 4
    %v400 = vrot.slane %v101, 5
    %v401 = vsel %vm393, %v399, %v400
    %v402 = vrot.slane %v345, 5
    %v403 = vrot.slane %v402, 4
    %v404 = vrot.slane %v102, 5
    %v405 = vsel %vm393, %v403, %v404
    %v406 = vrot.slane %v346, 5
    %v407 = vrot.slane %v406, 4
    %v408 = vrot.slane %v103, 5
    %v409 = vsel %vm393, %v407, %v408
    %v410 = vrot.slane %v347, 5
    %v411 = vrot.slane %v410, 4
    %v412 = vrot.slane %v104, 5
    %v413 = vsel %vm393, %v411, %v412
    %v414 = vrot.slane %v348, 5
    %v415 = vrot.slane %v414, 4
    %v416 = vrot.slane %v105, 5
    %v417 = vsel %vm393, %v415, %v416
    %v418 = vrot.slane %v349, 5
    %v419 = vrot.slane %v418, 4
    %v420 = vrot.slane %v106, 5
    %v421 = vsel %vm393, %v419, %v420
    %v422 = vrot.slane %v350, 5
    %v423 = vrot.slane %v422, 4
    %v424 = vrot.slane %v107, 5
    %v425 = vsel %vm393, %v423, %v424
    %v426 = vrot.slane %v351, 5
    %v427 = vrot.slane %v426, 4
    %v428 = vrot.slane %v108, 5
    %v429 = vsel %vm393, %v427, %v428
    %v430 = vrot.slane %v352, 5
    %v431 = vrot.slane %v430, 4
    %v432 = vrot.slane %v109, 5
    %v433 = vsel %vm393, %v431, %v432
    %v434 = vrot.slane %v353, 5
    %v435 = vrot.slane %v434, 4
    %v436 = vrot.slane %v110, 5
    %v437 = vsel %vm393, %v435, %v436
    %v438 = vrot.slane %v354, 5
    %v439 = vrot.slane %v438, 4
    %v440 = vrot.slane %v111, 5
    %v441 = vsel %vm393, %v439, %v440
    %v442 = vrot.slane %v355, 5
    %v443 = vrot.slane %v442, 4
    %v444 = vrot.slane %v112, 5
    %v445 = vsel %vm393, %v443, %v444
    %v446 = vrot.slane %v356, 5
    %v447 = vrot.slane %v446, 4
    %v448 = vrot.slane %v113, 5
    %v449 = vsel %vm393, %v447, %v448
    %v450 = vrot.slane %v357, 5
    %v451 = vrot.slane %v450, 4
    %v452 = vrot.slane %v114, 5
    %v453 = vsel %vm393, %v451, %v452
    %v454 = vrot.slane %v358, 5
    %v455 = vrot.slane %v454, 4
    %v456 = vrot.slane %v115, 5
    %v457 = vsel %vm393, %v455, %v456
    %s458 = scalar_lea.vmem %s0, 8
    %v459 = vld [vmem:[%s458] sm:$0xf]
    %v460 = vld [vmem:[%s458 + $0x8] sm:$0xf]
    %v461 = vld [vmem:[%s458 + $0x10] sm:$0xf]
    %v462 = vld [vmem:[%s458 + $0x18] sm:$0xf]
    %v463 = vld [vmem:[%s458 + $0x20] sm:$0xf]
    %v464 = vld [vmem:[%s458 + $0x28] sm:$0xf]
    %v465 = vld [vmem:[%s458 + $0x30] sm:$0xf]
    %v466 = vld [vmem:[%s458 + $0x38] sm:$0xf]
    %v467 = vld [vmem:[%s458 + $0x50] sm:$0xf]
    %v468 = vld [vmem:[%s458 + $0x58] sm:$0xf]
    %v469 = vld [vmem:[%s458 + $0x60] sm:$0xf]
    %v470 = vld [vmem:[%s458 + $0x68] sm:$0xf]
    %v471 = vld [vmem:[%s458 + $0x70] sm:$0xf]
    %v472 = vld [vmem:[%s458 + $0x78] sm:$0xf]
    %v473 = vld [vmem:[%s458 + $0x80] sm:$0xf]
    %v474 = vld [vmem:[%s458 + $0x88] sm:$0xf]
    %v475 = vld [vmem:[%s458 + $0x4] sm:$0x1]
    %v476 = vld [vmem:[%s458 + $0xc] sm:$0x1]
    %v477 = vld [vmem:[%s458 + $0x14] sm:$0x1]
    %v478 = vld [vmem:[%s458 + $0x1c] sm:$0x1]
    %v479 = vld [vmem:[%s458 + $0x24] sm:$0x1]
    %v480 = vld [vmem:[%s458 + $0x2c] sm:$0x1]
    %v481 = vld [vmem:[%s458 + $0x34] sm:$0x1]
    %v482 = vld [vmem:[%s458 + $0x3c] sm:$0x1]
    %v483 = vld [vmem:[%s458 + $0x54] sm:$0x1]
    %v484 = vld [vmem:[%s458 + $0x5c] sm:$0x1]
    %v485 = vld [vmem:[%s458 + $0x64] sm:$0x1]
    %v486 = vld [vmem:[%s458 + $0x6c] sm:$0x1]
    %v487 = vld [vmem:[%s458 + $0x74] sm:$0x1]
    %v488 = vld [vmem:[%s458 + $0x7c] sm:$0x1]
    %v489 = vld [vmem:[%s458 + $0x84] sm:$0x1]
    %v490 = vld [vmem:[%s458 + $0x8c] sm:$0x1]
    %v492 = vshrl.u32 %v459, 16
    %v494 = vrot.slane %v492, 4
    %v495 = vshll.u32 %v459, 16
    %v497 = vrot.slane %v495, 5
    %v498 = vor.u32 %v494, %v497
    %v499 = vrot.slane %v498, 4
    %v501 = vshll.u32 %v475, 16
    %v503 = vrot.slane %v501, 5
    %v504 = vsel %vm118, %v499, %v503
    %v506 = vshrl.u32 %v460, 16
    %v508 = vrot.slane %v506, 4
    %v509 = vshll.u32 %v460, 16
    %v511 = vrot.slane %v509, 5
    %v512 = vor.u32 %v508, %v511
    %v513 = vrot.slane %v512, 4
    %v515 = vshll.u32 %v476, 16
    %v517 = vrot.slane %v515, 5
    %v518 = vsel %vm118, %v513, %v517
    %v520 = vshrl.u32 %v461, 16
    %v522 = vrot.slane %v520, 4
    %v523 = vshll.u32 %v461, 16
    %v525 = vrot.slane %v523, 5
    %v526 = vor.u32 %v522, %v525
    %v527 = vrot.slane %v526, 4
    %v529 = vshll.u32 %v477, 16
    %v531 = vrot.slane %v529, 5
    %v532 = vsel %vm118, %v527, %v531
    %v534 = vshrl.u32 %v462, 16
    %v536 = vrot.slane %v534, 4
    %v537 = vshll.u32 %v462, 16
    %v539 = vrot.slane %v537, 5
    %v540 = vor.u32 %v536, %v539
    %v541 = vrot.slane %v540, 4
    %v543 = vshll.u32 %v478, 16
    %v545 = vrot.slane %v543, 5
    %v546 = vsel %vm118, %v541, %v545
    %v548 = vshrl.u32 %v463, 16
    %v550 = vrot.slane %v548, 4
    %v551 = vshll.u32 %v463, 16
    %v553 = vrot.slane %v551, 5
    %v554 = vor.u32 %v550, %v553
    %v555 = vrot.slane %v554, 4
    %v557 = vshll.u32 %v479, 16
    %v559 = vrot.slane %v557, 5
    %v560 = vsel %vm118, %v555, %v559
    %v562 = vshrl.u32 %v464, 16
    %v564 = vrot.slane %v562, 4
    %v565 = vshll.u32 %v464, 16
    %v567 = vrot.slane %v565, 5
    %v568 = vor.u32 %v564, %v567
    %v569 = vrot.slane %v568, 4
    %v571 = vshll.u32 %v480, 16
    %v573 = vrot.slane %v571, 5
    %v574 = vsel %vm118, %v569, %v573
    %v576 = vshrl.u32 %v465, 16
    %v578 = vrot.slane %v576, 4
    %v579 = vshll.u32 %v465, 16
    %v581 = vrot.slane %v579, 5
    %v582 = vor.u32 %v578, %v581
    %v583 = vrot.slane %v582, 4
    %v585 = vshll.u32 %v481, 16
    %v587 = vrot.slane %v585, 5
    %v588 = vsel %vm118, %v583, %v587
    %v590 = vshrl.u32 %v466, 16
    %v592 = vrot.slane %v590, 4
    %v593 = vshll.u32 %v466, 16
    %v595 = vrot.slane %v593, 5
    %v596 = vor.u32 %v592, %v595
    %v597 = vrot.slane %v596, 4
    %v599 = vshll.u32 %v482, 16
    %v601 = vrot.slane %v599, 5
    %v602 = vsel %vm118, %v597, %v601
    %v604 = vshrl.u32 %v467, 16
    %v606 = vrot.slane %v604, 4
    %v607 = vshll.u32 %v467, 16
    %v609 = vrot.slane %v607, 5
    %v610 = vor.u32 %v606, %v609
    %v611 = vrot.slane %v610, 4
    %v613 = vshll.u32 %v483, 16
    %v615 = vrot.slane %v613, 5
    %v616 = vsel %vm118, %v611, %v615
    %v618 = vshrl.u32 %v468, 16
    %v620 = vrot.slane %v618, 4
    %v621 = vshll.u32 %v468, 16
    %v623 = vrot.slane %v621, 5
    %v624 = vor.u32 %v620, %v623
    %v625 = vrot.slane %v624, 4
    %v627 = vshll.u32 %v484, 16
    %v629 = vrot.slane %v627, 5
    %v630 = vsel %vm118, %v625, %v629
    %v632 = vshrl.u32 %v469, 16
    %v634 = vrot.slane %v632, 4
    %v635 = vshll.u32 %v469, 16
    %v637 = vrot.slane %v635, 5
    %v638 = vor.u32 %v634, %v637
    %v639 = vrot.slane %v638, 4
    %v641 = vshll.u32 %v485, 16
    %v643 = vrot.slane %v641, 5
    %v644 = vsel %vm118, %v639, %v643
    %v646 = vshrl.u32 %v470, 16
    %v648 = vrot.slane %v646, 4
    %v649 = vshll.u32 %v470, 16
    %v651 = vrot.slane %v649, 5
    %v652 = vor.u32 %v648, %v651
    %v653 = vrot.slane %v652, 4
    %v655 = vshll.u32 %v486, 16
    %v657 = vrot.slane %v655, 5
    %v658 = vsel %vm118, %v653, %v657
    %v660 = vshrl.u32 %v471, 16
    %v662 = vrot.slane %v660, 4
    %v663 = vshll.u32 %v471, 16
    %v665 = vrot.slane %v663, 5
    %v666 = vor.u32 %v662, %v665
    %v667 = vrot.slane %v666, 4
    %v669 = vshll.u32 %v487, 16
    %v671 = vrot.slane %v669, 5
    %v672 = vsel %vm118, %v667, %v671
    %v674 = vshrl.u32 %v472, 16
    %v676 = vrot.slane %v674, 4
    %v677 = vshll.u32 %v472, 16
    %v679 = vrot.slane %v677, 5
    %v680 = vor.u32 %v676, %v679
    %v681 = vrot.slane %v680, 4
    %v683 = vshll.u32 %v488, 16
    %v685 = vrot.slane %v683, 5
    %v686 = vsel %vm118, %v681, %v685
    %v688 = vshrl.u32 %v473, 16
    %v690 = vrot.slane %v688, 4
    %v691 = vshll.u32 %v473, 16
    %v693 = vrot.slane %v691, 5
    %v694 = vor.u32 %v690, %v693
    %v695 = vrot.slane %v694, 4
    %v697 = vshll.u32 %v489, 16
    %v699 = vrot.slane %v697, 5
    %v700 = vsel %vm118, %v695, %v699
    %v702 = vshrl.u32 %v474, 16
    %v704 = vrot.slane %v702, 4
    %v705 = vshll.u32 %v474, 16
    %v707 = vrot.slane %v705, 5
    %v708 = vor.u32 %v704, %v707
    %v709 = vrot.slane %v708, 4
    %v711 = vshll.u32 %v490, 16
    %v713 = vrot.slane %v711, 5
    %v714 = vsel %vm118, %v709, %v713
    %v715 = vld [vmem:[%s458] sm:$0xe]
    %v716 = vld [vmem:[%s458 + $0x8] sm:$0xe]
    %v717 = vld [vmem:[%s458 + $0x10] sm:$0xe]
    %v718 = vld [vmem:[%s458 + $0x18] sm:$0xe]
    %v719 = vld [vmem:[%s458 + $0x20] sm:$0xe]
    %v720 = vld [vmem:[%s458 + $0x28] sm:$0xe]
    %v721 = vld [vmem:[%s458 + $0x30] sm:$0xe]
    %v722 = vld [vmem:[%s458 + $0x38] sm:$0xe]
    %v723 = vld [vmem:[%s458 + $0x50] sm:$0xe]
    %v724 = vld [vmem:[%s458 + $0x58] sm:$0xe]
    %v725 = vld [vmem:[%s458 + $0x60] sm:$0xe]
    %v726 = vld [vmem:[%s458 + $0x68] sm:$0xe]
    %v727 = vld [vmem:[%s458 + $0x70] sm:$0xe]
    %v728 = vld [vmem:[%s458 + $0x78] sm:$0xe]
    %v729 = vld [vmem:[%s458 + $0x80] sm:$0xe]
    %v730 = vld [vmem:[%s458 + $0x88] sm:$0xe]
    %v763 = vrot.slane %v715, 5
    %v764 = vrot.slane %v763, 4
    %v765 = vrot.slane %v475, 5
    %v766 = vsel %vm393, %v764, %v765
    %v767 = vrot.slane %v716, 5
    %v768 = vrot.slane %v767, 4
    %v769 = vrot.slane %v476, 5
    %v770 = vsel %vm393, %v768, %v769
    %v771 = vrot.slane %v717, 5
    %v772 = vrot.slane %v771, 4
    %v773 = vrot.slane %v477, 5
    %v774 = vsel %vm393, %v772, %v773
    %v775 = vrot.slane %v718, 5
    %v776 = vrot.slane %v775, 4
    %v777 = vrot.slane %v478, 5
    %v778 = vsel %vm393, %v776, %v777
    %v779 = vrot.slane %v719, 5
    %v780 = vrot.slane %v779, 4
    %v781 = vrot.slane %v479, 5
    %v782 = vsel %vm393, %v780, %v781
    %v783 = vrot.slane %v720, 5
    %v784 = vrot.slane %v783, 4
    %v785 = vrot.slane %v480, 5
    %v786 = vsel %vm393, %v784, %v785
    %v787 = vrot.slane %v721, 5
    %v788 = vrot.slane %v787, 4
    %v789 = vrot.slane %v481, 5
    %v790 = vsel %vm393, %v788, %v789
    %v791 = vrot.slane %v722, 5
    %v792 = vrot.slane %v791, 4
    %v793 = vrot.slane %v482, 5
    %v794 = vsel %vm393, %v792, %v793
    %v795 = vrot.slane %v723, 5
    %v796 = vrot.slane %v795, 4
    %v797 = vrot.slane %v483, 5
    %v798 = vsel %vm393, %v796, %v797
    %v799 = vrot.slane %v724, 5
    %v800 = vrot.slane %v799, 4
    %v801 = vrot.slane %v484, 5
    %v802 = vsel %vm393, %v800, %v801
    %v803 = vrot.slane %v725, 5
    %v804 = vrot.slane %v803, 4
    %v805 = vrot.slane %v485, 5
    %v806 = vsel %vm393, %v804, %v805
    %v807 = vrot.slane %v726, 5
    %v808 = vrot.slane %v807, 4
    %v809 = vrot.slane %v486, 5
    %v810 = vsel %vm393, %v808, %v809
    %v811 = vrot.slane %v727, 5
    %v812 = vrot.slane %v811, 4
    %v813 = vrot.slane %v487, 5
    %v814 = vsel %vm393, %v812, %v813
    %v815 = vrot.slane %v728, 5
    %v816 = vrot.slane %v815, 4
    %v817 = vrot.slane %v488, 5
    %v818 = vsel %vm393, %v816, %v817
    %v819 = vrot.slane %v729, 5
    %v820 = vrot.slane %v819, 4
    %v821 = vrot.slane %v489, 5
    %v822 = vsel %vm393, %v820, %v821
    %v823 = vrot.slane %v730, 5
    %v824 = vrot.slane %v823, 4
    %v825 = vrot.slane %v490, 5
    %v826 = vsel %vm393, %v824, %v825
    %s827 = scalar_lea.vmem %s0, 16
    %v828 = vld [vmem:[%s827] sm:$0xf]
    %v829 = vld [vmem:[%s827 + $0x8] sm:$0xf]
    %v830 = vld [vmem:[%s827 + $0x10] sm:$0xf]
    %v831 = vld [vmem:[%s827 + $0x18] sm:$0xf]
    %v832 = vld [vmem:[%s827 + $0x20] sm:$0xf]
    %v833 = vld [vmem:[%s827 + $0x28] sm:$0xf]
    %v834 = vld [vmem:[%s827 + $0x30] sm:$0xf]
    %v835 = vld [vmem:[%s827 + $0x38] sm:$0xf]
    %v836 = vld [vmem:[%s827 + $0x50] sm:$0xf]
    %v837 = vld [vmem:[%s827 + $0x58] sm:$0xf]
    %v838 = vld [vmem:[%s827 + $0x60] sm:$0xf]
    %v839 = vld [vmem:[%s827 + $0x68] sm:$0xf]
    %v840 = vld [vmem:[%s827 + $0x70] sm:$0xf]
    %v841 = vld [vmem:[%s827 + $0x78] sm:$0xf]
    %v842 = vld [vmem:[%s827 + $0x80] sm:$0xf]
    %v843 = vld [vmem:[%s827 + $0x88] sm:$0xf]
    %v844 = vld [vmem:[%s827 + $0x4] sm:$0x1]
    %v845 = vld [vmem:[%s827 + $0xc] sm:$0x1]
    %v846 = vld [vmem:[%s827 + $0x14] sm:$0x1]
    %v847 = vld [vmem:[%s827 + $0x1c] sm:$0x1]
    %v848 = vld [vmem:[%s827 + $0x24] sm:$0x1]
    %v849 = vld [vmem:[%s827 + $0x2c] sm:$0x1]
    %v850 = vld [vmem:[%s827 + $0x34] sm:$0x1]
    %v851 = vld [vmem:[%s827 + $0x3c] sm:$0x1]
    %v852 = vld [vmem:[%s827 + $0x54] sm:$0x1]
    %v853 = vld [vmem:[%s827 + $0x5c] sm:$0x1]
    %v854 = vld [vmem:[%s827 + $0x64] sm:$0x1]
    %v855 = vld [vmem:[%s827 + $0x6c] sm:$0x1]
    %v856 = vld [vmem:[%s827 + $0x74] sm:$0x1]
    %v857 = vld [vmem:[%s827 + $0x7c] sm:$0x1]
    %v858 = vld [vmem:[%s827 + $0x84] sm:$0x1]
    %v859 = vld [vmem:[%s827 + $0x8c] sm:$0x1]
    %v861 = vshrl.u32 %v828, 16
    %v863 = vrot.slane %v861, 4
    %v864 = vshll.u32 %v828, 16
    %v866 = vrot.slane %v864, 5
    %v867 = vor.u32 %v863, %v866
    %v868 = vrot.slane %v867, 4
    %v870 = vshll.u32 %v844, 16
    %v872 = vrot.slane %v870, 5
    %v873 = vsel %vm118, %v868, %v872
    %v875 = vshrl.u32 %v829, 16
    %v877 = vrot.slane %v875, 4
    %v878 = vshll.u32 %v829, 16
    %v880 = vrot.slane %v878, 5
    %v881 = vor.u32 %v877, %v880
    %v882 = vrot.slane %v881, 4
    %v884 = vshll.u32 %v845, 16
    %v886 = vrot.slane %v884, 5
    %v887 = vsel %vm118, %v882, %v886
    %v889 = vshrl.u32 %v830, 16
    %v891 = vrot.slane %v889, 4
    %v892 = vshll.u32 %v830, 16
    %v894 = vrot.slane %v892, 5
    %v895 = vor.u32 %v891, %v894
    %v896 = vrot.slane %v895, 4
    %v898 = vshll.u32 %v846, 16
    %v900 = vrot.slane %v898, 5
    %v901 = vsel %vm118, %v896, %v900
    %v903 = vshrl.u32 %v831, 16
    %v905 = vrot.slane %v903, 4
    %v906 = vshll.u32 %v831, 16
    %v908 = vrot.slane %v906, 5
    %v909 = vor.u32 %v905, %v908
    %v910 = vrot.slane %v909, 4
    %v912 = vshll.u32 %v847, 16
    %v914 = vrot.slane %v912, 5
    %v915 = vsel %vm118, %v910, %v914
    %v917 = vshrl.u32 %v832, 16
    %v919 = vrot.slane %v917, 4
    %v920 = vshll.u32 %v832, 16
    %v922 = vrot.slane %v920, 5
    %v923 = vor.u32 %v919, %v922
    %v924 = vrot.slane %v923, 4
    %v926 = vshll.u32 %v848, 16
    %v928 = vrot.slane %v926, 5
    %v929 = vsel %vm118, %v924, %v928
    %v931 = vshrl.u32 %v833, 16
    %v933 = vrot.slane %v931, 4
    %v934 = vshll.u32 %v833, 16
    %v936 = vrot.slane %v934, 5
    %v937 = vor.u32 %v933, %v936
    %v938 = vrot.slane %v937, 4
    %v940 = vshll.u32 %v849, 16
    %v942 = vrot.slane %v940, 5
    %v943 = vsel %vm118, %v938, %v942
    %v945 = vshrl.u32 %v834, 16
    %v947 = vrot.slane %v945, 4
    %v948 = vshll.u32 %v834, 16
    %v950 = vrot.slane %v948, 5
    %v951 = vor.u32 %v947, %v950
    %v952 = vrot.slane %v951, 4
    %v954 = vshll.u32 %v850, 16
    %v956 = vrot.slane %v954, 5
    %v957 = vsel %vm118, %v952, %v956
    %v959 = vshrl.u32 %v835, 16
    %v961 = vrot.slane %v959, 4
    %v962 = vshll.u32 %v835, 16
    %v964 = vrot.slane %v962, 5
    %v965 = vor.u32 %v961, %v964
    %v966 = vrot.slane %v965, 4
    %v968 = vshll.u32 %v851, 16
    %v970 = vrot.slane %v968, 5
    %v971 = vsel %vm118, %v966, %v970
    %v973 = vshrl.u32 %v836, 16
    %v975 = vrot.slane %v973, 4
    %v976 = vshll.u32 %v836, 16
    %v978 = vrot.slane %v976, 5
    %v979 = vor.u32 %v975, %v978
    %v980 = vrot.slane %v979, 4
    %v982 = vshll.u32 %v852, 16
    %v984 = vrot.slane %v982, 5
    %v985 = vsel %vm118, %v980, %v984
    %v987 = vshrl.u32 %v837, 16
    %v989 = vrot.slane %v987, 4
    %v990 = vshll.u32 %v837, 16
    %v992 = vrot.slane %v990, 5
    %v993 = vor.u32 %v989, %v992
    %v994 = vrot.slane %v993, 4
    %v996 = vshll.u32 %v853, 16
    %v998 = vrot.slane %v996, 5
    %v999 = vsel %vm118, %v994, %v998
    %v1001 = vshrl.u32 %v838, 16
    %v1003 = vrot.slane %v1001, 4
    %v1004 = vshll.u32 %v838, 16
    %v1006 = vrot.slane %v1004, 5
    %v1007 = vor.u32 %v1003, %v1006
    %v1008 = vrot.slane %v1007, 4
    %v1010 = vshll.u32 %v854, 16
    %v1012 = vrot.slane %v1010, 5
    %v1013 = vsel %vm118, %v1008, %v1012
    %v1015 = vshrl.u32 %v839, 16
    %v1017 = vrot.slane %v1015, 4
    %v1018 = vshll.u32 %v839, 16
    %v1020 = vrot.slane %v1018, 5
    %v1021 = vor.u32 %v1017, %v1020
    %v1022 = vrot.slane %v1021, 4
    %v1024 = vshll.u32 %v855, 16
    %v1026 = vrot.slane %v1024, 5
    %v1027 = vsel %vm118, %v1022, %v1026
    %v1029 = vshrl.u32 %v840, 16
    %v1031 = vrot.slane %v1029, 4
    %v1032 = vshll.u32 %v840, 16
    %v1034 = vrot.slane %v1032, 5
    %v1035 = vor.u32 %v1031, %v1034
    %v1036 = vrot.slane %v1035, 4
    %v1038 = vshll.u32 %v856, 16
    %v1040 = vrot.slane %v1038, 5
    %v1041 = vsel %vm118, %v1036, %v1040
    %v1043 = vshrl.u32 %v841, 16
    %v1045 = vrot.slane %v1043, 4
    %v1046 = vshll.u32 %v841, 16
    %v1048 = vrot.slane %v1046, 5
    %v1049 = vor.u32 %v1045, %v1048
    %v1050 = vrot.slane %v1049, 4
    %v1052 = vshll.u32 %v857, 16
    %v1054 = vrot.slane %v1052, 5
    %v1055 = vsel %vm118, %v1050, %v1054
    %v1057 = vshrl.u32 %v842, 16
    %v1059 = vrot.slane %v1057, 4
    %v1060 = vshll.u32 %v842, 16
    %v1062 = vrot.slane %v1060, 5
    %v1063 = vor.u32 %v1059, %v1062
    %v1064 = vrot.slane %v1063, 4
    %v1066 = vshll.u32 %v858, 16
    %v1068 = vrot.slane %v1066, 5
    %v1069 = vsel %vm118, %v1064, %v1068
    %v1071 = vshrl.u32 %v843, 16
    %v1073 = vrot.slane %v1071, 4
    %v1074 = vshll.u32 %v843, 16
    %v1076 = vrot.slane %v1074, 5
    %v1077 = vor.u32 %v1073, %v1076
    %v1078 = vrot.slane %v1077, 4
    %v1080 = vshll.u32 %v859, 16
    %v1082 = vrot.slane %v1080, 5
    %v1083 = vsel %vm118, %v1078, %v1082
    %v1084 = vld [vmem:[%s827] sm:$0xe]
    %v1085 = vld [vmem:[%s827 + $0x8] sm:$0xe]
    %v1086 = vld [vmem:[%s827 + $0x10] sm:$0xe]
    %v1087 = vld [vmem:[%s827 + $0x18] sm:$0xe]
    %v1088 = vld [vmem:[%s827 + $0x20] sm:$0xe]
    %v1089 = vld [vmem:[%s827 + $0x28] sm:$0xe]
    %v1090 = vld [vmem:[%s827 + $0x30] sm:$0xe]
    %v1091 = vld [vmem:[%s827 + $0x38] sm:$0xe]
    %v1092 = vld [vmem:[%s827 + $0x50] sm:$0xe]
    %v1093 = vld [vmem:[%s827 + $0x58] sm:$0xe]
    %v1094 = vld [vmem:[%s827 + $0x60] sm:$0xe]
    %v1095 = vld [vmem:[%s827 + $0x68] sm:$0xe]
    %v1096 = vld [vmem:[%s827 + $0x70] sm:$0xe]
    %v1097 = vld [vmem:[%s827 + $0x78] sm:$0xe]
    %v1098 = vld [vmem:[%s827 + $0x80] sm:$0xe]
    %v1099 = vld [vmem:[%s827 + $0x88] sm:$0xe]
    %v1132 = vrot.slane %v1084, 5
    %v1133 = vrot.slane %v1132, 4
    %v1134 = vrot.slane %v844, 5
    %v1135 = vsel %vm393, %v1133, %v1134
    %v1136 = vrot.slane %v1085, 5
    %v1137 = vrot.slane %v1136, 4
    %v1138 = vrot.slane %v845, 5
    %v1139 = vsel %vm393, %v1137, %v1138
    %v1140 = vrot.slane %v1086, 5
    %v1141 = vrot.slane %v1140, 4
    %v1142 = vrot.slane %v846, 5
    %v1143 = vsel %vm393, %v1141, %v1142
    %v1144 = vrot.slane %v1087, 5
    %v1145 = vrot.slane %v1144, 4
    %v1146 = vrot.slane %v847, 5
    %v1147 = vsel %vm393, %v1145, %v1146
    %v1148 = vrot.slane %v1088, 5
    %v1149 = vrot.slane %v1148, 4
    %v1150 = vrot.slane %v848, 5
    %v1151 = vsel %vm393, %v1149, %v1150
    %v1152 = vrot.slane %v1089, 5
    %v1153 = vrot.slane %v1152, 4
    %v1154 = vrot.slane %v849, 5
    %v1155 = vsel %vm393, %v1153, %v1154
    %v1156 = vrot.slane %v1090, 5
    %v1157 = vrot.slane %v1156, 4
    %v1158 = vrot.slane %v850, 5
    %v1159 = vsel %vm393, %v1157, %v1158
    %v1160 = vrot.slane %v1091, 5
    %v1161 = vrot.slane %v1160, 4
    %v1162 = vrot.slane %v851, 5
    %v1163 = vsel %vm393, %v1161, %v1162
    %v1164 = vrot.slane %v1092, 5
    %v1165 = vrot.slane %v1164, 4
    %v1166 = vrot.slane %v852, 5
    %v1167 = vsel %vm393, %v1165, %v1166
    %v1168 = vrot.slane %v1093, 5
    %v1169 = vrot.slane %v1168, 4
    %v1170 = vrot.slane %v853, 5
    %v1171 = vsel %vm393, %v1169, %v1170
    %v1172 = vrot.slane %v1094, 5
    %v1173 = vrot.slane %v1172, 4
    %v1174 = vrot.slane %v854, 5
    %v1175 = vsel %vm393, %v1173, %v1174
    %v1176 = vrot.slane %v1095, 5
    %v1177 = vrot.slane %v1176, 4
    %v1178 = vrot.slane %v855, 5
    %v1179 = vsel %vm393, %v1177, %v1178
    %v1180 = vrot.slane %v1096, 5
    %v1181 = vrot.slane %v1180, 4
    %v1182 = vrot.slane %v856, 5
    %v1183 = vsel %vm393, %v1181, %v1182
    %v1184 = vrot.slane %v1097, 5
    %v1185 = vrot.slane %v1184, 4
    %v1186 = vrot.slane %v857, 5
    %v1187 = vsel %vm393, %v1185, %v1186
    %v1188 = vrot.slane %v1098, 5
    %v1189 = vrot.slane %v1188, 4
    %v1190 = vrot.slane %v858, 5
    %v1191 = vsel %vm393, %v1189, %v1190
    %v1192 = vrot.slane %v1099, 5
    %v1193 = vrot.slane %v1192, 4
    %v1194 = vrot.slane %v859, 5
    %v1195 = vsel %vm393, %v1193, %v1194
    %v1212 = vunpack.c.l.b16 %v84
    %v1213 = vunpack.c.l.b16 %v85
    %v1214 = vunpack.c.l.b16 %v86
    %v1215 = vunpack.c.l.b16 %v87
    %v1216 = vunpack.c.l.b16 %v88
    %v1217 = vunpack.c.l.b16 %v89
    %v1218 = vunpack.c.l.b16 %v90
    %v1219 = vunpack.c.l.b16 %v91
    %v1220 = vunpack.c.l.b16 %v92
    %v1221 = vunpack.c.l.b16 %v93
    %v1222 = vunpack.c.l.b16 %v94
    %v1223 = vunpack.c.l.b16 %v95
    %v1224 = vunpack.c.l.b16 %v96
    %v1225 = vunpack.c.l.b16 %v97
    %v1226 = vunpack.c.l.b16 %v98
    %v1227 = vunpack.c.l.b16 %v99
    %v1228 = vpack.c.b16 %v1213, %v1212
    %v1229 = vpack.c.b16 %v1215, %v1214
    %v1230 = vpack.c.b16 %v1217, %v1216
    %v1231 = vpack.c.b16 %v1219, %v1218
    %v1232 = vpack.c.b16 %v1221, %v1220
    %v1233 = vpack.c.b16 %v1223, %v1222
    %v1234 = vpack.c.b16 %v1225, %v1224
    %v1235 = vpack.c.b16 %v1227, %v1226
    %v1244 = vunpack.c.l.b16 %v132
    %v1245 = vunpack.c.l.b16 %v146
    %v1246 = vunpack.c.l.b16 %v160
    %v1247 = vunpack.c.l.b16 %v174
    %v1248 = vunpack.c.l.b16 %v188
    %v1249 = vunpack.c.l.b16 %v202
    %v1250 = vunpack.c.l.b16 %v216
    %v1251 = vunpack.c.l.b16 %v230
    %v1252 = vunpack.c.l.b16 %v244
    %v1253 = vunpack.c.l.b16 %v258
    %v1254 = vunpack.c.l.b16 %v272
    %v1255 = vunpack.c.l.b16 %v286
    %v1256 = vunpack.c.l.b16 %v300
    %v1257 = vunpack.c.l.b16 %v314
    %v1258 = vunpack.c.l.b16 %v328
    %v1259 = vunpack.c.l.b16 %v342
    %v1260 = vpack.c.b16 %v1245, %v1244
    %v1261 = vpack.c.b16 %v1247, %v1246
    %v1262 = vpack.c.b16 %v1249, %v1248
    %v1263 = vpack.c.b16 %v1251, %v1250
    %v1264 = vpack.c.b16 %v1253, %v1252
    %v1265 = vpack.c.b16 %v1255, %v1254
    %v1266 = vpack.c.b16 %v1257, %v1256
    %v1267 = vpack.c.b16 %v1259, %v1258
    %v1276 = vunpack.c.l.b16 %v397
    %v1277 = vunpack.c.l.b16 %v401
    %v1278 = vunpack.c.l.b16 %v405
    %v1279 = vunpack.c.l.b16 %v409
    %v1280 = vunpack.c.l.b16 %v413
    %v1281 = vunpack.c.l.b16 %v417
    %v1282 = vunpack.c.l.b16 %v421
    %v1283 = vunpack.c.l.b16 %v425
    %v1284 = vunpack.c.l.b16 %v429
    %v1285 = vunpack.c.l.b16 %v433
    %v1286 = vunpack.c.l.b16 %v437
    %v1287 = vunpack.c.l.b16 %v441
    %v1288 = vunpack.c.l.b16 %v445
    %v1289 = vunpack.c.l.b16 %v449
    %v1290 = vunpack.c.l.b16 %v453
    %v1291 = vunpack.c.l.b16 %v457
    %v1292 = vpack.c.b16 %v1277, %v1276
    %v1293 = vpack.c.b16 %v1279, %v1278
    %v1294 = vpack.c.b16 %v1281, %v1280
    %v1295 = vpack.c.b16 %v1283, %v1282
    %v1296 = vpack.c.b16 %v1285, %v1284
    %v1297 = vpack.c.b16 %v1287, %v1286
    %v1298 = vpack.c.b16 %v1289, %v1288
    %v1299 = vpack.c.b16 %v1291, %v1290
    %v1324 = vunpack.c.l.b16 %v459
    %v1325 = vunpack.c.l.b16 %v460
    %v1326 = vunpack.c.l.b16 %v461
    %v1327 = vunpack.c.l.b16 %v462
    %v1328 = vunpack.c.l.b16 %v463
    %v1329 = vunpack.c.l.b16 %v464
    %v1330 = vunpack.c.l.b16 %v465
    %v1331 = vunpack.c.l.b16 %v466
    %v1332 = vunpack.c.l.b16 %v467
    %v1333 = vunpack.c.l.b16 %v468
    %v1334 = vunpack.c.l.b16 %v469
    %v1335 = vunpack.c.l.b16 %v470
    %v1336 = vunpack.c.l.b16 %v471
    %v1337 = vunpack.c.l.b16 %v472
    %v1338 = vunpack.c.l.b16 %v473
    %v1339 = vunpack.c.l.b16 %v474
    %v1340 = vpack.c.b16 %v1325, %v1324
    %v1341 = vpack.c.b16 %v1327, %v1326
    %v1342 = vpack.c.b16 %v1329, %v1328
    %v1343 = vpack.c.b16 %v1331, %v1330
    %v1344 = vpack.c.b16 %v1333, %v1332
    %v1345 = vpack.c.b16 %v1335, %v1334
    %v1346 = vpack.c.b16 %v1337, %v1336
    %v1347 = vpack.c.b16 %v1339, %v1338
    %v1356 = vunpack.c.l.b16 %v504
    %v1357 = vunpack.c.l.b16 %v518
    %v1358 = vunpack.c.l.b16 %v532
    %v1359 = vunpack.c.l.b16 %v546
    %v1360 = vunpack.c.l.b16 %v560
    %v1361 = vunpack.c.l.b16 %v574
    %v1362 = vunpack.c.l.b16 %v588
    %v1363 = vunpack.c.l.b16 %v602
    %v1364 = vunpack.c.l.b16 %v616
    %v1365 = vunpack.c.l.b16 %v630
    %v1366 = vunpack.c.l.b16 %v644
    %v1367 = vunpack.c.l.b16 %v658
    %v1368 = vunpack.c.l.b16 %v672
    %v1369 = vunpack.c.l.b16 %v686
    %v1370 = vunpack.c.l.b16 %v700
    %v1371 = vunpack.c.l.b16 %v714
    %v1372 = vpack.c.b16 %v1357, %v1356
    %v1373 = vpack.c.b16 %v1359, %v1358
    %v1374 = vpack.c.b16 %v1361, %v1360
    %v1375 = vpack.c.b16 %v1363, %v1362
    %v1376 = vpack.c.b16 %v1365, %v1364
    %v1377 = vpack.c.b16 %v1367, %v1366
    %v1378 = vpack.c.b16 %v1369, %v1368
    %v1379 = vpack.c.b16 %v1371, %v1370
    %v1388 = vunpack.c.l.b16 %v766
    %v1389 = vunpack.c.l.b16 %v770
    %v1390 = vunpack.c.l.b16 %v774
    %v1391 = vunpack.c.l.b16 %v778
    %v1392 = vunpack.c.l.b16 %v782
    %v1393 = vunpack.c.l.b16 %v786
    %v1394 = vunpack.c.l.b16 %v790
    %v1395 = vunpack.c.l.b16 %v794
    %v1396 = vunpack.c.l.b16 %v798
    %v1397 = vunpack.c.l.b16 %v802
    %v1398 = vunpack.c.l.b16 %v806
    %v1399 = vunpack.c.l.b16 %v810
    %v1400 = vunpack.c.l.b16 %v814
    %v1401 = vunpack.c.l.b16 %v818
    %v1402 = vunpack.c.l.b16 %v822
    %v1403 = vunpack.c.l.b16 %v826
    %v1404 = vpack.c.b16 %v1389, %v1388
    %v1405 = vpack.c.b16 %v1391, %v1390
    %v1406 = vpack.c.b16 %v1393, %v1392
    %v1407 = vpack.c.b16 %v1395, %v1394
    %v1408 = vpack.c.b16 %v1397, %v1396
    %v1409 = vpack.c.b16 %v1399, %v1398
    %v1410 = vpack.c.b16 %v1401, %v1400
    %v1411 = vpack.c.b16 %v1403, %v1402
    %v1436 = vunpack.c.l.b16 %v828
    %v1437 = vunpack.c.l.b16 %v829
    %v1438 = vunpack.c.l.b16 %v830
    %v1439 = vunpack.c.l.b16 %v831
    %v1440 = vunpack.c.l.b16 %v832
    %v1441 = vunpack.c.l.b16 %v833
    %v1442 = vunpack.c.l.b16 %v834
    %v1443 = vunpack.c.l.b16 %v835
    %v1444 = vunpack.c.l.b16 %v836
    %v1445 = vunpack.c.l.b16 %v837
    %v1446 = vunpack.c.l.b16 %v838
    %v1447 = vunpack.c.l.b16 %v839
    %v1448 = vunpack.c.l.b16 %v840
    %v1449 = vunpack.c.l.b16 %v841
    %v1450 = vunpack.c.l.b16 %v842
    %v1451 = vunpack.c.l.b16 %v843
    %v1452 = vpack.c.b16 %v1437, %v1436
    %v1453 = vpack.c.b16 %v1439, %v1438
    %v1454 = vpack.c.b16 %v1441, %v1440
    %v1455 = vpack.c.b16 %v1443, %v1442
    %v1456 = vpack.c.b16 %v1445, %v1444
    %v1457 = vpack.c.b16 %v1447, %v1446
    %v1458 = vpack.c.b16 %v1449, %v1448
    %v1459 = vpack.c.b16 %v1451, %v1450
    %v1468 = vunpack.c.l.b16 %v873
    %v1469 = vunpack.c.l.b16 %v887
    %v1470 = vunpack.c.l.b16 %v901
    %v1471 = vunpack.c.l.b16 %v915
    %v1472 = vunpack.c.l.b16 %v929
    %v1473 = vunpack.c.l.b16 %v943
    %v1474 = vunpack.c.l.b16 %v957
    %v1475 = vunpack.c.l.b16 %v971
    %v1476 = vunpack.c.l.b16 %v985
    %v1477 = vunpack.c.l.b16 %v999
    %v1478 = vunpack.c.l.b16 %v1013
    %v1479 = vunpack.c.l.b16 %v1027
    %v1480 = vunpack.c.l.b16 %v1041
    %v1481 = vunpack.c.l.b16 %v1055
    %v1482 = vunpack.c.l.b16 %v1069
    %v1483 = vunpack.c.l.b16 %v1083
    %v1484 = vpack.c.b16 %v1469, %v1468
    %v1485 = vpack.c.b16 %v1471, %v1470
    %v1486 = vpack.c.b16 %v1473, %v1472
    %v1487 = vpack.c.b16 %v1475, %v1474
    %v1488 = vpack.c.b16 %v1477, %v1476
    %v1489 = vpack.c.b16 %v1479, %v1478
    %v1490 = vpack.c.b16 %v1481, %v1480
    %v1491 = vpack.c.b16 %v1483, %v1482
    %v1500 = vunpack.c.l.b16 %v1135
    %v1501 = vunpack.c.l.b16 %v1139
    %v1502 = vunpack.c.l.b16 %v1143
    %v1503 = vunpack.c.l.b16 %v1147
    %v1504 = vunpack.c.l.b16 %v1151
    %v1505 = vunpack.c.l.b16 %v1155
    %v1506 = vunpack.c.l.b16 %v1159
    %v1507 = vunpack.c.l.b16 %v1163
    %v1508 = vunpack.c.l.b16 %v1167
    %v1509 = vunpack.c.l.b16 %v1171
    %v1510 = vunpack.c.l.b16 %v1175
    %v1511 = vunpack.c.l.b16 %v1179
    %v1512 = vunpack.c.l.b16 %v1183
    %v1513 = vunpack.c.l.b16 %v1187
    %v1514 = vunpack.c.l.b16 %v1191
    %v1515 = vunpack.c.l.b16 %v1195
    %v1516 = vpack.c.b16 %v1501, %v1500
    %v1517 = vpack.c.b16 %v1503, %v1502
    %v1518 = vpack.c.b16 %v1505, %v1504
    %v1519 = vpack.c.b16 %v1507, %v1506
    %v1520 = vpack.c.b16 %v1509, %v1508
    %v1521 = vpack.c.b16 %v1511, %v1510
    %v1522 = vpack.c.b16 %v1513, %v1512
    %v1523 = vpack.c.b16 %v1515, %v1514
    %v1532 = vld [vmem:[#allocation4] sm:$0xf]
    %v1533 = vld [vmem:[#allocation4 + $0x4] sm:$0xf]
    %v1534 = vld [vmem:[#allocation4 + $0x8] sm:$0xf]
    %v1535 = vld [vmem:[#allocation4 + $0xc] sm:$0xf]
    %v1536 = vld [vmem:[#allocation4 + $0x10] sm:$0xf]
    %v1537 = vld [vmem:[#allocation4 + $0x14] sm:$0xf]
    %v1538 = vld [vmem:[#allocation4 + $0x18] sm:$0xf]
    %v1539 = vld [vmem:[#allocation4 + $0x1c] sm:$0xf]
    %v1540 = vld [vmem:[#allocation4 + $0x20] sm:$0xf]
    %v1541 = vld [vmem:[#allocation4 + $0x24] sm:$0xf]
    %v1542 = vld [vmem:[#allocation4 + $0x28] sm:$0xf]
    %v1543 = vld [vmem:[#allocation4 + $0x2c] sm:$0xf]
    %v1544 = vld [vmem:[#allocation4 + $0x30] sm:$0xf]
    %v1545 = vld [vmem:[#allocation4 + $0x34] sm:$0xf]
    %v1546 = vld [vmem:[#allocation4 + $0x38] sm:$0xf]
    %v1547 = vld [vmem:[#allocation4 + $0x3c] sm:$0xf]
    %v1548 = vld [vmem:[#allocation4 + $0x40] sm:$0xf]
    %v1549 = vld [vmem:[#allocation4 + $0x44] sm:$0xf]
    %v1550 = vld [vmem:[#allocation4 + $0x48] sm:$0xf]
    %v1551 = vld [vmem:[#allocation4 + $0x4c] sm:$0xf]
    %v1552 = vld [vmem:[#allocation4 + $0x50] sm:$0xf]
    %v1553 = vld [vmem:[#allocation4 + $0x54] sm:$0xf]
    %v1554 = vld [vmem:[#allocation4 + $0x58] sm:$0xf]
    %v1555 = vld [vmem:[#allocation4 + $0x5c] sm:$0xf]
    %v1556 = vld [vmem:[#allocation4 + $0x60] sm:$0xf]
    %v1557 = vld [vmem:[#allocation4 + $0x64] sm:$0xf]
    %v1558 = vld [vmem:[#allocation4 + $0x68] sm:$0xf]
    %v1559 = vld [vmem:[#allocation4 + $0x6c] sm:$0xf]
    %v1560 = vld [vmem:[#allocation4 + $0x70] sm:$0xf]
    %v1561 = vld [vmem:[#allocation4 + $0x74] sm:$0xf]
    %v1562 = vld [vmem:[#allocation4 + $0x78] sm:$0xf]
    %v1563 = vld [vmem:[#allocation4 + $0x7c] sm:$0xf]
    %v1564 = vld [vmem:[#allocation4 + $0x80] sm:$0xf]
    %v1565 = vld [vmem:[#allocation4 + $0x84] sm:$0xf]
    %v1566 = vld [vmem:[#allocation4 + $0x88] sm:$0xf]
    %v1567 = vld [vmem:[#allocation4 + $0x8c] sm:$0xf]
    %v1568 = vld [vmem:[#allocation4 + $0x90] sm:$0xf]
    %v1569 = vld [vmem:[#allocation4 + $0x94] sm:$0xf]
    %v1570 = vld [vmem:[#allocation4 + $0x98] sm:$0xf]
    %v1571 = vld [vmem:[#allocation4 + $0x9c] sm:$0xf]
    %v1572 = vld [vmem:[#allocation4 + $0xa0] sm:$0xf]
    %v1573 = vld [vmem:[#allocation4 + $0xa4] sm:$0xf]
    %v1574 = vld [vmem:[#allocation4 + $0xa8] sm:$0xf]
    %v1575 = vld [vmem:[#allocation4 + $0xac] sm:$0xf]
    %v1576 = vld [vmem:[#allocation4 + $0xb0] sm:$0xf]
    %v1577 = vld [vmem:[#allocation4 + $0xb4] sm:$0xf]
    %v1578 = vld [vmem:[#allocation4 + $0xb8] sm:$0xf]
    %v1579 = vld [vmem:[#allocation4 + $0xbc] sm:$0xf]
    %v1580 = vld [vmem:[#allocation4 + $0xc0] sm:$0xf]
    %v1581 = vld [vmem:[#allocation4 + $0xc4] sm:$0xf]
    %v1582 = vld [vmem:[#allocation4 + $0xc8] sm:$0xf]
    %v1583 = vld [vmem:[#allocation4 + $0xcc] sm:$0xf]
    %v1584 = vld [vmem:[#allocation4 + $0xd0] sm:$0xf]
    %v1585 = vld [vmem:[#allocation4 + $0xd4] sm:$0xf]
    %v1586 = vld [vmem:[#allocation4 + $0xd8] sm:$0xf]
    %v1587 = vld [vmem:[#allocation4 + $0xdc] sm:$0xf]
    %v1588 = vld [vmem:[#allocation4 + $0xe0] sm:$0xf]
    %v1589 = vld [vmem:[#allocation4 + $0xe4] sm:$0xf]
    %v1590 = vld [vmem:[#allocation4 + $0xe8] sm:$0xf]
    %v1591 = vld [vmem:[#allocation4 + $0xec] sm:$0xf]
    %v1592 = vld [vmem:[#allocation4 + $0xf0] sm:$0xf]
    %v1593 = vld [vmem:[#allocation4 + $0xf4] sm:$0xf]
    %v1594 = vld [vmem:[#allocation4 + $0xf8] sm:$0xf]
    %v1595 = vld [vmem:[#allocation4 + $0xfc] sm:$0xf]
    %v1596 = vld [vmem:[#allocation4 + $0x100] sm:$0xf]
    %v1597 = vld [vmem:[#allocation4 + $0x104] sm:$0xf]
    %v1598 = vld [vmem:[#allocation4 + $0x108] sm:$0xf]
    %v1599 = vld [vmem:[#allocation4 + $0x10c] sm:$0xf]
    %v1600 = vld [vmem:[#allocation4 + $0x110] sm:$0xf]
    %v1601 = vld [vmem:[#allocation4 + $0x114] sm:$0xf]
    %v1602 = vld [vmem:[#allocation4 + $0x118] sm:$0xf]
    %v1603 = vld [vmem:[#allocation4 + $0x11c] sm:$0xf]
    %v1604 = vld [vmem:[#allocation4 + $0x120] sm:$0xf]
    %v1605 = vld [vmem:[#allocation4 + $0x124] sm:$0xf]
    %v1606 = vld [vmem:[#allocation4 + $0x128] sm:$0xf]
    %v1607 = vld [vmem:[#allocation4 + $0x12c] sm:$0xf]
    %v1608 = vld [vmem:[#allocation4 + $0x130] sm:$0xf]
    %v1609 = vld [vmem:[#allocation4 + $0x134] sm:$0xf]
    %v1610 = vld [vmem:[#allocation4 + $0x138] sm:$0xf]
    %v1611 = vld [vmem:[#allocation4 + $0x13c] sm:$0xf]
    %v1612 = vld [vmem:[#allocation4 + $0x140] sm:$0xf]
    %v1613 = vld [vmem:[#allocation4 + $0x144] sm:$0xf]
    %v1614 = vld [vmem:[#allocation4 + $0x148] sm:$0xf]
    %v1615 = vld [vmem:[#allocation4 + $0x14c] sm:$0xf]
    %v1616 = vld [vmem:[#allocation4 + $0x150] sm:$0xf]
    %v1617 = vld [vmem:[#allocation4 + $0x154] sm:$0xf]
    %v1618 = vld [vmem:[#allocation4 + $0x158] sm:$0xf]
    %v1619 = vld [vmem:[#allocation4 + $0x15c] sm:$0xf]
    %v1620 = vld [vmem:[#allocation4 + $0x160] sm:$0xf]
    %v1621 = vld [vmem:[#allocation4 + $0x164] sm:$0xf]
    %v1622 = vld [vmem:[#allocation4 + $0x168] sm:$0xf]
    %v1623 = vld [vmem:[#allocation4 + $0x16c] sm:$0xf]
    %v1624 = vld [vmem:[#allocation4 + $0x170] sm:$0xf]
    %v1625 = vld [vmem:[#allocation4 + $0x174] sm:$0xf]
    %v1626 = vld [vmem:[#allocation4 + $0x178] sm:$0xf]
    %v1627 = vld [vmem:[#allocation4 + $0x17c] sm:$0xf]
    %v1628 = vld [vmem:[#allocation4 + $0x180] sm:$0xf]
    %v1629 = vld [vmem:[#allocation4 + $0x184] sm:$0xf]
    %v1630 = vld [vmem:[#allocation4 + $0x188] sm:$0xf]
    %v1631 = vld [vmem:[#allocation4 + $0x18c] sm:$0xf]
    %v1632 = vld [vmem:[#allocation4 + $0x190] sm:$0xf]
    %v1633 = vld [vmem:[#allocation4 + $0x194] sm:$0xf]
    %v1634 = vld [vmem:[#allocation4 + $0x198] sm:$0xf]
    %v1635 = vld [vmem:[#allocation4 + $0x19c] sm:$0xf]
    %v1636 = vld [vmem:[#allocation4 + $0x1a0] sm:$0xf]
    %v1637 = vld [vmem:[#allocation4 + $0x1a4] sm:$0xf]
    %v1638 = vld [vmem:[#allocation4 + $0x1a8] sm:$0xf]
    %v1639 = vld [vmem:[#allocation4 + $0x1ac] sm:$0xf]
    %v1640 = vld [vmem:[#allocation4 + $0x1b0] sm:$0xf]
    %v1641 = vld [vmem:[#allocation4 + $0x1b4] sm:$0xf]
    %v1642 = vld [vmem:[#allocation4 + $0x1b8] sm:$0xf]
    %v1643 = vld [vmem:[#allocation4 + $0x1bc] sm:$0xf]
    %v1644 = vld [vmem:[#allocation4 + $0x1c0] sm:$0xf]
    %v1645 = vld [vmem:[#allocation4 + $0x1c4] sm:$0xf]
    %v1646 = vld [vmem:[#allocation4 + $0x1c8] sm:$0xf]
    %v1647 = vld [vmem:[#allocation4 + $0x1cc] sm:$0xf]
    %v1648 = vld [vmem:[#allocation4 + $0x1d0] sm:$0xf]
    %v1649 = vld [vmem:[#allocation4 + $0x1d4] sm:$0xf]
    %v1650 = vld [vmem:[#allocation4 + $0x1d8] sm:$0xf]
    %v1651 = vld [vmem:[#allocation4 + $0x1dc] sm:$0xf]
    %v1652 = vld [vmem:[#allocation4 + $0x1e0] sm:$0xf]
    %v1653 = vld [vmem:[#allocation4 + $0x1e4] sm:$0xf]
    %v1654 = vld [vmem:[#allocation4 + $0x1e8] sm:$0xf]
    %v1655 = vld [vmem:[#allocation4 + $0x1ec] sm:$0xf]
    %v1656 = vld [vmem:[#allocation4 + $0x1f0] sm:$0xf]
    %v1657 = vld [vmem:[#allocation4 + $0x1f4] sm:$0xf]
    %v1658 = vld [vmem:[#allocation4 + $0x1f8] sm:$0xf]
    %v1659 = vld [vmem:[#allocation4 + $0x1fc] sm:$0xf]
    %v1660 = vld [vmem:[#allocation4 + $0x200] sm:$0xf]
    %v1661 = vld [vmem:[#allocation4 + $0x204] sm:$0xf]
    %v1662 = vld [vmem:[#allocation4 + $0x208] sm:$0xf]
    %v1663 = vld [vmem:[#allocation4 + $0x20c] sm:$0xf]
    %v1664 = vld [vmem:[#allocation4 + $0x210] sm:$0xf]
    %v1665 = vld [vmem:[#allocation4 + $0x214] sm:$0xf]
    %v1666 = vld [vmem:[#allocation4 + $0x218] sm:$0xf]
    %v1667 = vld [vmem:[#allocation4 + $0x21c] sm:$0xf]
    %v1668 = vld [vmem:[#allocation4 + $0x220] sm:$0xf]
    %v1669 = vld [vmem:[#allocation4 + $0x224] sm:$0xf]
    %v1670 = vld [vmem:[#allocation4 + $0x228] sm:$0xf]
    %v1671 = vld [vmem:[#allocation4 + $0x22c] sm:$0xf]
    %v1672 = vld [vmem:[#allocation4 + $0x230] sm:$0xf]
    %v1673 = vld [vmem:[#allocation4 + $0x234] sm:$0xf]
    %v1674 = vld [vmem:[#allocation4 + $0x238] sm:$0xf]
    %v1675 = vld [vmem:[#allocation4 + $0x23c] sm:$0xf]
    %v1676 = vld [vmem:[%s2] sm:$0x1]
    %v1678 = vlaneseq
    %v1679 = vshrl.u32 %v1678, 7
    %v1680 = vsub.s32 0, %v1679
    %v1681 = vrot.slane %v1676, %v1680
    %v1827 = vunpack.c.l.b16 %v1532
    %v1828 = vunpack.c.l.b16 %v1533
    %v1829 = vunpack.c.l.b16 %v1534
    %v1830 = vunpack.c.l.b16 %v1535
    %v1831 = vunpack.c.l.b16 %v1536
    %v1832 = vunpack.c.l.b16 %v1537
    %v1833 = vunpack.c.l.b16 %v1538
    %v1834 = vunpack.c.l.b16 %v1539
    %v1835 = vunpack.c.l.b16 %v1540
    %v1836 = vunpack.c.l.b16 %v1541
    %v1837 = vunpack.c.l.b16 %v1542
    %v1838 = vunpack.c.l.b16 %v1543
    %v1839 = vunpack.c.l.b16 %v1544
    %v1840 = vunpack.c.l.b16 %v1545
    %v1841 = vunpack.c.l.b16 %v1546
    %v1842 = vunpack.c.l.b16 %v1547
    %v1843 = vunpack.c.l.b16 %v1548
    %v1844 = vunpack.c.l.b16 %v1549
    %v1845 = vunpack.c.l.b16 %v1550
    %v1846 = vunpack.c.l.b16 %v1551
    %v1847 = vunpack.c.l.b16 %v1552
    %v1848 = vunpack.c.l.b16 %v1553
    %v1849 = vunpack.c.l.b16 %v1554
    %v1850 = vunpack.c.l.b16 %v1555
    %v1851 = vunpack.c.l.b16 %v1556
    %v1852 = vunpack.c.l.b16 %v1557
    %v1853 = vunpack.c.l.b16 %v1558
    %v1854 = vunpack.c.l.b16 %v1559
    %v1855 = vunpack.c.l.b16 %v1560
    %v1856 = vunpack.c.l.b16 %v1561
    %v1857 = vunpack.c.l.b16 %v1562
    %v1858 = vunpack.c.l.b16 %v1563
    %v1859 = vunpack.c.l.b16 %v1564
    %v1860 = vunpack.c.l.b16 %v1565
    %v1861 = vunpack.c.l.b16 %v1566
    %v1862 = vunpack.c.l.b16 %v1567
    %v1863 = vunpack.c.l.b16 %v1568
    %v1864 = vunpack.c.l.b16 %v1569
    %v1865 = vunpack.c.l.b16 %v1570
    %v1866 = vunpack.c.l.b16 %v1571
    %v1867 = vunpack.c.l.b16 %v1572
    %v1868 = vunpack.c.l.b16 %v1573
    %v1869 = vunpack.c.l.b16 %v1574
    %v1870 = vunpack.c.l.b16 %v1575
    %v1871 = vunpack.c.l.b16 %v1576
    %v1872 = vunpack.c.l.b16 %v1577
    %v1873 = vunpack.c.l.b16 %v1578
    %v1874 = vunpack.c.l.b16 %v1579
    %v1875 = vunpack.c.l.b16 %v1580
    %v1876 = vunpack.c.l.b16 %v1581
    %v1877 = vunpack.c.l.b16 %v1582
    %v1878 = vunpack.c.l.b16 %v1583
    %v1879 = vunpack.c.l.b16 %v1584
    %v1880 = vunpack.c.l.b16 %v1585
    %v1881 = vunpack.c.l.b16 %v1586
    %v1882 = vunpack.c.l.b16 %v1587
    %v1883 = vunpack.c.l.b16 %v1588
    %v1884 = vunpack.c.l.b16 %v1589
    %v1885 = vunpack.c.l.b16 %v1590
    %v1886 = vunpack.c.l.b16 %v1591
    %v1887 = vunpack.c.l.b16 %v1592
    %v1888 = vunpack.c.l.b16 %v1593
    %v1889 = vunpack.c.l.b16 %v1594
    %v1890 = vunpack.c.l.b16 %v1595
    %v1891 = vunpack.c.l.b16 %v1596
    %v1892 = vunpack.c.l.b16 %v1597
    %v1893 = vunpack.c.l.b16 %v1598
    %v1894 = vunpack.c.l.b16 %v1599
    %v1895 = vunpack.c.l.b16 %v1600
    %v1896 = vunpack.c.l.b16 %v1601
    %v1897 = vunpack.c.l.b16 %v1602
    %v1898 = vunpack.c.l.b16 %v1603
    %v1899 = vunpack.c.l.b16 %v1604
    %v1900 = vunpack.c.l.b16 %v1605
    %v1901 = vunpack.c.l.b16 %v1606
    %v1902 = vunpack.c.l.b16 %v1607
    %v1903 = vunpack.c.l.b16 %v1608
    %v1904 = vunpack.c.l.b16 %v1609
    %v1905 = vunpack.c.l.b16 %v1610
    %v1906 = vunpack.c.l.b16 %v1611
    %v1907 = vunpack.c.l.b16 %v1612
    %v1908 = vunpack.c.l.b16 %v1613
    %v1909 = vunpack.c.l.b16 %v1614
    %v1910 = vunpack.c.l.b16 %v1615
    %v1911 = vunpack.c.l.b16 %v1616
    %v1912 = vunpack.c.l.b16 %v1617
    %v1913 = vunpack.c.l.b16 %v1618
    %v1914 = vunpack.c.l.b16 %v1619
    %v1915 = vunpack.c.l.b16 %v1620
    %v1916 = vunpack.c.l.b16 %v1621
    %v1917 = vunpack.c.l.b16 %v1622
    %v1918 = vunpack.c.l.b16 %v1623
    %v1919 = vunpack.c.l.b16 %v1624
    %v1920 = vunpack.c.l.b16 %v1625
    %v1921 = vunpack.c.l.b16 %v1626
    %v1922 = vunpack.c.l.b16 %v1627
    %v1923 = vunpack.c.l.b16 %v1628
    %v1924 = vunpack.c.l.b16 %v1629
    %v1925 = vunpack.c.l.b16 %v1630
    %v1926 = vunpack.c.l.b16 %v1631
    %v1927 = vunpack.c.l.b16 %v1632
    %v1928 = vunpack.c.l.b16 %v1633
    %v1929 = vunpack.c.l.b16 %v1634
    %v1930 = vunpack.c.l.b16 %v1635
    %v1931 = vunpack.c.l.b16 %v1636
    %v1932 = vunpack.c.l.b16 %v1637
    %v1933 = vunpack.c.l.b16 %v1638
    %v1934 = vunpack.c.l.b16 %v1639
    %v1935 = vunpack.c.l.b16 %v1640
    %v1936 = vunpack.c.l.b16 %v1641
    %v1937 = vunpack.c.l.b16 %v1642
    %v1938 = vunpack.c.l.b16 %v1643
    %v1939 = vunpack.c.l.b16 %v1644
    %v1940 = vunpack.c.l.b16 %v1645
    %v1941 = vunpack.c.l.b16 %v1646
    %v1942 = vunpack.c.l.b16 %v1647
    %v1943 = vunpack.c.l.b16 %v1648
    %v1944 = vunpack.c.l.b16 %v1649
    %v1945 = vunpack.c.l.b16 %v1650
    %v1946 = vunpack.c.l.b16 %v1651
    %v1947 = vunpack.c.l.b16 %v1652
    %v1948 = vunpack.c.l.b16 %v1653
    %v1949 = vunpack.c.l.b16 %v1654
    %v1950 = vunpack.c.l.b16 %v1655
    %v1951 = vunpack.c.l.b16 %v1656
    %v1952 = vunpack.c.l.b16 %v1657
    %v1953 = vunpack.c.l.b16 %v1658
    %v1954 = vunpack.c.l.b16 %v1659
    %v1955 = vunpack.c.l.b16 %v1660
    %v1956 = vunpack.c.l.b16 %v1661
    %v1957 = vunpack.c.l.b16 %v1662
    %v1958 = vunpack.c.l.b16 %v1663
    %v1959 = vunpack.c.l.b16 %v1664
    %v1960 = vunpack.c.l.b16 %v1665
    %v1961 = vunpack.c.l.b16 %v1666
    %v1962 = vunpack.c.l.b16 %v1667
    %v1963 = vunpack.c.l.b16 %v1668
    %v1964 = vunpack.c.l.b16 %v1669
    %v1965 = vunpack.c.l.b16 %v1670
    %v1966 = vunpack.c.l.b16 %v1671
    %v1967 = vunpack.c.l.b16 %v1672
    %v1968 = vunpack.c.l.b16 %v1673
    %v1969 = vunpack.c.l.b16 %v1674
    %v1970 = vunpack.c.l.b16 %v1675
    %v1971 = vpack.c.b16 %v1828, %v1827
    %v1972 = vpack.c.b16 %v1830, %v1829
    %v1973 = vpack.c.b16 %v1832, %v1831
    %v1974 = vpack.c.b16 %v1834, %v1833
    %v1975 = vpack.c.b16 %v1836, %v1835
    %v1976 = vpack.c.b16 %v1838, %v1837
    %v1977 = vpack.c.b16 %v1840, %v1839
    %v1978 = vpack.c.b16 %v1842, %v1841
    %v1979 = vpack.c.b16 %v1844, %v1843
    %v1980 = vpack.c.b16 %v1846, %v1845
    %v1981 = vpack.c.b16 %v1848, %v1847
    %v1982 = vpack.c.b16 %v1850, %v1849
    %v1983 = vpack.c.b16 %v1852, %v1851
    %v1984 = vpack.c.b16 %v1854, %v1853
    %v1985 = vpack.c.b16 %v1856, %v1855
    %v1986 = vpack.c.b16 %v1858, %v1857
    %v1987 = vpack.c.b16 %v1860, %v1859
    %v1988 = vpack.c.b16 %v1862, %v1861
    %v1989 = vpack.c.b16 %v1864, %v1863
    %v1990 = vpack.c.b16 %v1866, %v1865
    %v1991 = vpack.c.b16 %v1868, %v1867
    %v1992 = vpack.c.b16 %v1870, %v1869
    %v1993 = vpack.c.b16 %v1872, %v1871
    %v1994 = vpack.c.b16 %v1874, %v1873
    %v1995 = vpack.c.b16 %v1876, %v1875
    %v1996 = vpack.c.b16 %v1878, %v1877
    %v1997 = vpack.c.b16 %v1880, %v1879
    %v1998 = vpack.c.b16 %v1882, %v1881
    %v1999 = vpack.c.b16 %v1884, %v1883
    %v2000 = vpack.c.b16 %v1886, %v1885
    %v2001 = vpack.c.b16 %v1888, %v1887
    %v2002 = vpack.c.b16 %v1890, %v1889
    %v2003 = vpack.c.b16 %v1892, %v1891
    %v2004 = vpack.c.b16 %v1894, %v1893
    %v2005 = vpack.c.b16 %v1896, %v1895
    %v2006 = vpack.c.b16 %v1898, %v1897
    %v2007 = vpack.c.b16 %v1900, %v1899
    %v2008 = vpack.c.b16 %v1902, %v1901
    %v2009 = vpack.c.b16 %v1904, %v1903
    %v2010 = vpack.c.b16 %v1906, %v1905
    %v2011 = vpack.c.b16 %v1908, %v1907
    %v2012 = vpack.c.b16 %v1910, %v1909
    %v2013 = vpack.c.b16 %v1912, %v1911
    %v2014 = vpack.c.b16 %v1914, %v1913
    %v2015 = vpack.c.b16 %v1916, %v1915
    %v2016 = vpack.c.b16 %v1918, %v1917
    %v2017 = vpack.c.b16 %v1920, %v1919
    %v2018 = vpack.c.b16 %v1922, %v1921
    %v2019 = vpack.c.b16 %v1924, %v1923
    %v2020 = vpack.c.b16 %v1926, %v1925
    %v2021 = vpack.c.b16 %v1928, %v1927
    %v2022 = vpack.c.b16 %v1930, %v1929
    %v2023 = vpack.c.b16 %v1932, %v1931
    %v2024 = vpack.c.b16 %v1934, %v1933
    %v2025 = vpack.c.b16 %v1936, %v1935
    %v2026 = vpack.c.b16 %v1938, %v1937
    %v2027 = vpack.c.b16 %v1940, %v1939
    %v2028 = vpack.c.b16 %v1942, %v1941
    %v2029 = vpack.c.b16 %v1944, %v1943
    %v2030 = vpack.c.b16 %v1946, %v1945
    %v2031 = vpack.c.b16 %v1948, %v1947
    %v2032 = vpack.c.b16 %v1950, %v1949
    %v2033 = vpack.c.b16 %v1952, %v1951
    %v2034 = vpack.c.b16 %v1954, %v1953
    %v2035 = vpack.c.b16 %v1956, %v1955
    %v2036 = vpack.c.b16 %v1958, %v1957
    %v2037 = vpack.c.b16 %v1960, %v1959
    %v2038 = vpack.c.b16 %v1962, %v1961
    %v2039 = vpack.c.b16 %v1964, %v1963
    %v2040 = vpack.c.b16 %v1966, %v1965
    %v2041 = vpack.c.b16 %v1968, %v1967
    %v2042 = vpack.c.b16 %v1970, %v1969
    %2115 = vmatprep.subr.bf16.mxu0 0
    %2116 = vmatpush1.bf16.msra.mxu0 %v1978
    %2117 = vmatprep.subr.bf16.mxu0 0
    %2118 = vmatpush1.bf16.msra.mxu0 %v1977
    %2119 = vmatprep.subr.bf16.mxu0 0
    %2120 = vmatpush1.bf16.msra.mxu0 %v1976
    %2121 = vmatprep.subr.bf16.mxu0 0
    %2122 = vmatpush1.bf16.msra.mxu0 %v1975
    %2123 = vmatprep.subr.bf16.mxu0 0
    %2124 = vmatpush1.bf16.msra.mxu0 %v1974
    %2125 = vmatprep.subr.bf16.mxu0 0
    %2126 = vmatpush1.bf16.msra.mxu0 %v1973
    %2127 = vmatprep.subr.bf16.mxu0 0
    %2128 = vmatpush1.bf16.msra.mxu0 %v1972
    %2129 = vmatprep.subr.bf16.mxu0 0
    %2130 = vmatpush1.bf16.msra.mxu0 %v1971
    %2131 = vmatprep.subr.bf16.mxu0 0
    %2132 = vmatpush2.bf16.msra.mxu0 %v1986
    %2133 = vmatprep.subr.bf16.mxu0 0
    %2134 = vmatpush2.bf16.msra.mxu0 %v1985
    %2135 = vmatprep.subr.bf16.mxu0 0
    %2136 = vmatpush2.bf16.msra.mxu0 %v1984
    %2137 = vmatprep.subr.bf16.mxu0 0
    %2138 = vmatpush2.bf16.msra.mxu0 %v1983
    %2139 = vmatprep.subr.bf16.mxu0 0
    %2140 = vmatpush2.bf16.msra.mxu0 %v1982
    %2141 = vmatprep.subr.bf16.mxu0 0
    %2142 = vmatpush2.bf16.msra.mxu0 %v1981
    %2143 = vmatprep.subr.bf16.mxu0 0
    %2144 = vmatpush2.bf16.msra.mxu0 %v1980
    %2145 = vmatprep.subr.bf16.mxu0 0
    %2146 = vmatpush2.bf16.msra.mxu0 %v1979
    %2147 = vmatprep.mubr.bf16.mxu0 %v1260
    %2148 = vmatmul.mubr.bf16.gmra.mxu0 %v1228
    %v2149 = vpop.f32.mrf.mxu0
    %v2150 = vadd.f32 %v1681, %v2149
    %v2151 = vpop.f32.mrf.mxu0
    %v2152 = vpop.f32.mrf.mxu0
    %v2153 = vadd.f32 %v1681, %v2152
    %v2154 = vpop.f32.mrf.mxu0
    %2155 = vmatprep.mubr.bf16.mxu0 %v1261
    %2156 = vmatmul.mubr.bf16.gmra.mxu0 %v1229
    %v2157 = vpop.f32.mrf.mxu0
    %v2158 = vadd.f32 %v1681, %v2157
    %v2159 = vpop.f32.mrf.mxu0
    %v2160 = vpop.f32.mrf.mxu0
    %v2161 = vadd.f32 %v1681, %v2160
    %v2162 = vpop.f32.mrf.mxu0
    %2163 = vmatprep.mubr.bf16.mxu0 %v1262
    %2164 = vmatmul.mubr.bf16.gmra.mxu0 %v1230
    %v2165 = vpop.f32.mrf.mxu0
    %v2166 = vadd.f32 %v1681, %v2165
    %v2167 = vpop.f32.mrf.mxu0
    %v2168 = vpop.f32.mrf.mxu0
    %v2169 = vadd.f32 %v1681, %v2168
    %v2170 = vpop.f32.mrf.mxu0
    %2171 = vmatprep.mubr.bf16.mxu0 %v1263
    %2172 = vmatmul.mubr.bf16.gmra.mxu0 %v1231
    %v2173 = vpop.f32.mrf.mxu0
    %v2174 = vadd.f32 %v1681, %v2173
    %v2175 = vpop.f32.mrf.mxu0
    %v2176 = vpop.f32.mrf.mxu0
    %v2177 = vadd.f32 %v1681, %v2176
    %v2178 = vpop.f32.mrf.mxu0
    %2179 = vmatprep.mubr.bf16.mxu0 %v1264
    %2180 = vmatmul.mubr.bf16.gmra.mxu0 %v1232
    %v2181 = vpop.f32.mrf.mxu0
    %v2182 = vadd.f32 %v1681, %v2181
    %v2183 = vpop.f32.mrf.mxu0
    %v2184 = vpop.f32.mrf.mxu0
    %v2185 = vadd.f32 %v1681, %v2184
    %v2186 = vpop.f32.mrf.mxu0
    %2187 = vmatprep.mubr.bf16.mxu0 %v1265
    %2188 = vmatmul.mubr.bf16.gmra.mxu0 %v1233
    %v2189 = vpop.f32.mrf.mxu0
    %v2190 = vadd.f32 %v1681, %v2189
    %v2191 = vpop.f32.mrf.mxu0
    %v2192 = vpop.f32.mrf.mxu0
    %v2193 = vadd.f32 %v1681, %v2192
    %v2194 = vpop.f32.mrf.mxu0
    %2195 = vmatprep.mubr.bf16.mxu0 %v1266
    %2196 = vmatmul.mubr.bf16.gmra.mxu0 %v1234
    %v2197 = vpop.f32.mrf.mxu0
    %v2198 = vadd.f32 %v1681, %v2197
    %v2199 = vpop.f32.mrf.mxu0
    %v2200 = vpop.f32.mrf.mxu0
    %v2201 = vadd.f32 %v1681, %v2200
    %v2202 = vpop.f32.mrf.mxu0
    %2203 = vmatprep.mubr.bf16.mxu0 %v1267
    %2204 = vmatmul.mubr.bf16.gmra.mxu0 %v1235
    %v2205 = vpop.f32.mrf.mxu0
    %v2206 = vadd.f32 %v1681, %v2205
    %v2207 = vpop.f32.mrf.mxu0
    %v2208 = vpop.f32.mrf.mxu0
    %v2209 = vadd.f32 %v1681, %v2208
    %v2210 = vpop.f32.mrf.mxu0
    %2211 = vdwg.mxu0
    %2212 = vmatprep.subr.bf16.mxu0 0
    %2213 = vmatpush1.bf16.msra.mxu0 %v1994
    %2214 = vmatprep.subr.bf16.mxu0 0
    %2215 = vmatpush1.bf16.msra.mxu0 %v1993
    %2216 = vmatprep.subr.bf16.mxu0 0
    %2217 = vmatpush1.bf16.msra.mxu0 %v1992
    %2218 = vmatprep.subr.bf16.mxu0 0
    %2219 = vmatpush1.bf16.msra.mxu0 %v1991
    %2220 = vmatprep.subr.bf16.mxu0 0
    %2221 = vmatpush1.bf16.msra.mxu0 %v1990
    %2222 = vmatprep.subr.bf16.mxu0 0
    %2223 = vmatpush1.bf16.msra.mxu0 %v1989
    %2224 = vmatprep.subr.bf16.mxu0 0
    %2225 = vmatpush1.bf16.msra.mxu0 %v1988
    %2226 = vmatprep.subr.bf16.mxu0 0
    %2227 = vmatpush1.bf16.msra.mxu0 %v1987
    %2228 = vmatprep.subr.bf16.mxu0 0
    %2229 = vmatpush2.bf16.msra.mxu0 %v2002
    %2230 = vmatprep.subr.bf16.mxu0 0
    %2231 = vmatpush2.bf16.msra.mxu0 %v2001
    %2232 = vmatprep.subr.bf16.mxu0 0
    %2233 = vmatpush2.bf16.msra.mxu0 %v2000
    %2234 = vmatprep.subr.bf16.mxu0 0
    %2235 = vmatpush2.bf16.msra.mxu0 %v1999
    %2236 = vmatprep.subr.bf16.mxu0 0
    %2237 = vmatpush2.bf16.msra.mxu0 %v1998
    %2238 = vmatprep.subr.bf16.mxu0 0
    %2239 = vmatpush2.bf16.msra.mxu0 %v1997
    %2240 = vmatprep.subr.bf16.mxu0 0
    %2241 = vmatpush2.bf16.msra.mxu0 %v1996
    %2242 = vmatprep.subr.bf16.mxu0 0
    %2243 = vmatpush2.bf16.msra.mxu0 %v1995
    %2244 = vmatprep.mubr.bf16.mxu0 %v1340
    %2245 = vmatmul.mubr.bf16.gmra.mxu0 %v1292
    %v2246 = vpop.f32.mrf.mxu0
    %v2247 = vadd.f32 %v2150, %v2246
    %v2248 = vpop.f32.mrf.mxu0
    %v2249 = vpop.f32.mrf.mxu0
    %v2250 = vadd.f32 %v2153, %v2249
    %v2251 = vpop.f32.mrf.mxu0
    %2252 = vmatprep.mubr.bf16.mxu0 %v1341
    %2253 = vmatmul.mubr.bf16.gmra.mxu0 %v1293
    %v2254 = vpop.f32.mrf.mxu0
    %v2255 = vadd.f32 %v2158, %v2254
    %v2256 = vpop.f32.mrf.mxu0
    %v2257 = vpop.f32.mrf.mxu0
    %v2258 = vadd.f32 %v2161, %v2257
    %v2259 = vpop.f32.mrf.mxu0
    %2260 = vmatprep.mubr.bf16.mxu0 %v1342
    %2261 = vmatmul.mubr.bf16.gmra.mxu0 %v1294
    %v2262 = vpop.f32.mrf.mxu0
    %v2263 = vadd.f32 %v2166, %v2262
    %v2264 = vpop.f32.mrf.mxu0
    %v2265 = vpop.f32.mrf.mxu0
    %v2266 = vadd.f32 %v2169, %v2265
    %v2267 = vpop.f32.mrf.mxu0
    %2268 = vmatprep.mubr.bf16.mxu0 %v1343
    %2269 = vmatmul.mubr.bf16.gmra.mxu0 %v1295
    %v2270 = vpop.f32.mrf.mxu0
    %v2271 = vadd.f32 %v2174, %v2270
    %v2272 = vpop.f32.mrf.mxu0
    %v2273 = vpop.f32.mrf.mxu0
    %v2274 = vadd.f32 %v2177, %v2273
    %v2275 = vpop.f32.mrf.mxu0
    %2276 = vmatprep.mubr.bf16.mxu0 %v1344
    %2277 = vmatmul.mubr.bf16.gmra.mxu0 %v1296
    %v2278 = vpop.f32.mrf.mxu0
    %v2279 = vadd.f32 %v2182, %v2278
    %v2280 = vpop.f32.mrf.mxu0
    %v2281 = vpop.f32.mrf.mxu0
    %v2282 = vadd.f32 %v2185, %v2281
    %v2283 = vpop.f32.mrf.mxu0
    %2284 = vmatprep.mubr.bf16.mxu0 %v1345
    %2285 = vmatmul.mubr.bf16.gmra.mxu0 %v1297
    %v2286 = vpop.f32.mrf.mxu0
    %v2287 = vadd.f32 %v2190, %v2286
    %v2288 = vpop.f32.mrf.mxu0
    %v2289 = vpop.f32.mrf.mxu0
    %v2290 = vadd.f32 %v2193, %v2289
    %v2291 = vpop.f32.mrf.mxu0
    %2292 = vmatprep.mubr.bf16.mxu0 %v1346
    %2293 = vmatmul.mubr.bf16.gmra.mxu0 %v1298
    %v2294 = vpop.f32.mrf.mxu0
    %v2295 = vadd.f32 %v2198, %v2294
    %v2296 = vpop.f32.mrf.mxu0
    %v2297 = vpop.f32.mrf.mxu0
    %v2298 = vadd.f32 %v2201, %v2297
    %v2299 = vpop.f32.mrf.mxu0
    %2300 = vmatprep.mubr.bf16.mxu0 %v1347
    %2301 = vmatmul.mubr.bf16.gmra.mxu0 %v1299
    %v2302 = vpop.f32.mrf.mxu0
    %v2303 = vadd.f32 %v2206, %v2302
    %v2304 = vpop.f32.mrf.mxu0
    %v2305 = vpop.f32.mrf.mxu0
    %v2306 = vadd.f32 %v2209, %v2305
    %v2307 = vpop.f32.mrf.mxu0
    %2308 = vdwg.mxu0
    %2309 = vmatprep.subr.bf16.mxu0 0
    %2310 = vmatpush1.bf16.msra.mxu0 %v2010
    %2311 = vmatprep.subr.bf16.mxu0 0
    %2312 = vmatpush1.bf16.msra.mxu0 %v2009
    %2313 = vmatprep.subr.bf16.mxu0 0
    %2314 = vmatpush1.bf16.msra.mxu0 %v2008
    %2315 = vmatprep.subr.bf16.mxu0 0
    %2316 = vmatpush1.bf16.msra.mxu0 %v2007
    %2317 = vmatprep.subr.bf16.mxu0 0
    %2318 = vmatpush1.bf16.msra.mxu0 %v2006
    %2319 = vmatprep.subr.bf16.mxu0 0
    %2320 = vmatpush1.bf16.msra.mxu0 %v2005
    %2321 = vmatprep.subr.bf16.mxu0 0
    %2322 = vmatpush1.bf16.msra.mxu0 %v2004
    %2323 = vmatprep.subr.bf16.mxu0 0
    %2324 = vmatpush1.bf16.msra.mxu0 %v2003
    %2325 = vmatprep.subr.bf16.mxu0 0
    %2326 = vmatpush2.bf16.msra.mxu0 %v2018
    %2327 = vmatprep.subr.bf16.mxu0 0
    %2328 = vmatpush2.bf16.msra.mxu0 %v2017
    %2329 = vmatprep.subr.bf16.mxu0 0
    %2330 = vmatpush2.bf16.msra.mxu0 %v2016
    %2331 = vmatprep.subr.bf16.mxu0 0
    %2332 = vmatpush2.bf16.msra.mxu0 %v2015
    %2333 = vmatprep.subr.bf16.mxu0 0
    %2334 = vmatpush2.bf16.msra.mxu0 %v2014
    %2335 = vmatprep.subr.bf16.mxu0 0
    %2336 = vmatpush2.bf16.msra.mxu0 %v2013
    %2337 = vmatprep.subr.bf16.mxu0 0
    %2338 = vmatpush2.bf16.msra.mxu0 %v2012
    %2339 = vmatprep.subr.bf16.mxu0 0
    %2340 = vmatpush2.bf16.msra.mxu0 %v2011
    %2341 = vmatprep.mubr.bf16.mxu0 %v1404
    %2342 = vmatmul.mubr.bf16.gmra.mxu0 %v1372
    %v2343 = vpop.f32.mrf.mxu0
    %v2344 = vadd.f32 %v2247, %v2343
    %v2345 = vpop.f32.mrf.mxu0
    %v2346 = vpop.f32.mrf.mxu0
    %v2347 = vadd.f32 %v2250, %v2346
    %v2348 = vpop.f32.mrf.mxu0
    %2349 = vmatprep.mubr.bf16.mxu0 %v1405
    %2350 = vmatmul.mubr.bf16.gmra.mxu0 %v1373
    %v2351 = vpop.f32.mrf.mxu0
    %v2352 = vadd.f32 %v2255, %v2351
    %v2353 = vpop.f32.mrf.mxu0
    %v2354 = vpop.f32.mrf.mxu0
    %v2355 = vadd.f32 %v2258, %v2354
    %v2356 = vpop.f32.mrf.mxu0
    %2357 = vmatprep.mubr.bf16.mxu0 %v1406
    %2358 = vmatmul.mubr.bf16.gmra.mxu0 %v1374
    %v2359 = vpop.f32.mrf.mxu0
    %v2360 = vadd.f32 %v2263, %v2359
    %v2361 = vpop.f32.mrf.mxu0
    %v2362 = vpop.f32.mrf.mxu0
    %v2363 = vadd.f32 %v2266, %v2362
    %v2364 = vpop.f32.mrf.mxu0
    %2365 = vmatprep.mubr.bf16.mxu0 %v1407
    %2366 = vmatmul.mubr.bf16.gmra.mxu0 %v1375
    %v2367 = vpop.f32.mrf.mxu0
    %v2368 = vadd.f32 %v2271, %v2367
    %v2369 = vpop.f32.mrf.mxu0
    %v2370 = vpop.f32.mrf.mxu0
    %v2371 = vadd.f32 %v2274, %v2370
    %v2372 = vpop.f32.mrf.mxu0
    %2373 = vmatprep.mubr.bf16.mxu0 %v1408
    %2374 = vmatmul.mubr.bf16.gmra.mxu0 %v1376
    %v2375 = vpop.f32.mrf.mxu0
    %v2376 = vadd.f32 %v2279, %v2375
    %v2377 = vpop.f32.mrf.mxu0
    %v2378 = vpop.f32.mrf.mxu0
    %v2379 = vadd.f32 %v2282, %v2378
    %v2380 = vpop.f32.mrf.mxu0
    %2381 = vmatprep.mubr.bf16.mxu0 %v1409
    %2382 = vmatmul.mubr.bf16.gmra.mxu0 %v1377
    %v2383 = vpop.f32.mrf.mxu0
    %v2384 = vadd.f32 %v2287, %v2383
    %v2385 = vpop.f32.mrf.mxu0
    %v2386 = vpop.f32.mrf.mxu0
    %v2387 = vadd.f32 %v2290, %v2386
    %v2388 = vpop.f32.mrf.mxu0
    %2389 = vmatprep.mubr.bf16.mxu0 %v1410
    %2390 = vmatmul.mubr.bf16.gmra.mxu0 %v1378
    %v2391 = vpop.f32.mrf.mxu0
    %v2392 = vadd.f32 %v2295, %v2391
    %v2393 = vpop.f32.mrf.mxu0
    %v2394 = vpop.f32.mrf.mxu0
    %v2395 = vadd.f32 %v2298, %v2394
    %v2396 = vpop.f32.mrf.mxu0
    %2397 = vmatprep.mubr.bf16.mxu0 %v1411
    %2398 = vmatmul.mubr.bf16.gmra.mxu0 %v1379
    %v2399 = vpop.f32.mrf.mxu0
    %v2400 = vadd.f32 %v2303, %v2399
    %v2401 = vpop.f32.mrf.mxu0
    %v2402 = vpop.f32.mrf.mxu0
    %v2403 = vadd.f32 %v2306, %v2402
    %v2404 = vpop.f32.mrf.mxu0
    %2405 = vdwg.mxu0
    %2406 = vmatprep.subr.bf16.mxu0 0
    %2407 = vmatpush1.bf16.msra.mxu0 %v2026
    %2408 = vmatprep.subr.bf16.mxu0 0
    %2409 = vmatpush1.bf16.msra.mxu0 %v2025
    %2410 = vmatprep.subr.bf16.mxu0 0
    %2411 = vmatpush1.bf16.msra.mxu0 %v2024
    %2412 = vmatprep.subr.bf16.mxu0 0
    %2413 = vmatpush1.bf16.msra.mxu0 %v2023
    %2414 = vmatprep.subr.bf16.mxu0 0
    %2415 = vmatpush1.bf16.msra.mxu0 %v2022
    %2416 = vmatprep.subr.bf16.mxu0 0
    %2417 = vmatpush1.bf16.msra.mxu0 %v2021
    %2418 = vmatprep.subr.bf16.mxu0 0
    %2419 = vmatpush1.bf16.msra.mxu0 %v2020
    %2420 = vmatprep.subr.bf16.mxu0 0
    %2421 = vmatpush1.bf16.msra.mxu0 %v2019
    %2422 = vmatprep.subr.bf16.mxu0 0
    %2423 = vmatpush2.bf16.msra.mxu0 %v2034
    %2424 = vmatprep.subr.bf16.mxu0 0
    %2425 = vmatpush2.bf16.msra.mxu0 %v2033
    %2426 = vmatprep.subr.bf16.mxu0 0
    %2427 = vmatpush2.bf16.msra.mxu0 %v2032
    %2428 = vmatprep.subr.bf16.mxu0 0
    %2429 = vmatpush2.bf16.msra.mxu0 %v2031
    %2430 = vmatprep.subr.bf16.mxu0 0
    %2431 = vmatpush2.bf16.msra.mxu0 %v2030
    %2432 = vmatprep.subr.bf16.mxu0 0
    %2433 = vmatpush2.bf16.msra.mxu0 %v2029
    %2434 = vmatprep.subr.bf16.mxu0 0
    %2435 = vmatpush2.bf16.msra.mxu0 %v2028
    %2436 = vmatprep.subr.bf16.mxu0 0
    %2437 = vmatpush2.bf16.msra.mxu0 %v2027
    %2438 = vmatprep.mubr.bf16.mxu0 %v1484
    %2439 = vmatmul.mubr.bf16.gmra.mxu0 %v1452
    %v2440 = vpop.f32.mrf.mxu0
    %v2441 = vadd.f32 %v2344, %v2440
    %v2442 = vpop.f32.mrf.mxu0
    %v2443 = vpop.f32.mrf.mxu0
    %v2444 = vadd.f32 %v2347, %v2443
    %v2445 = vpop.f32.mrf.mxu0
    %2446 = vmatprep.mubr.bf16.mxu0 %v1485
    %2447 = vmatmul.mubr.bf16.gmra.mxu0 %v1453
    %v2448 = vpop.f32.mrf.mxu0
    %v2449 = vadd.f32 %v2352, %v2448
    %v2450 = vpop.f32.mrf.mxu0
    %v2451 = vpop.f32.mrf.mxu0
    %v2452 = vadd.f32 %v2355, %v2451
    %v2453 = vpop.f32.mrf.mxu0
    %2454 = vmatprep.mubr.bf16.mxu0 %v1486
    %2455 = vmatmul.mubr.bf16.gmra.mxu0 %v1454
    %v2456 = vpop.f32.mrf.mxu0
    %v2457 = vadd.f32 %v2360, %v2456
    %v2458 = vpop.f32.mrf.mxu0
    %v2459 = vpop.f32.mrf.mxu0
    %v2460 = vadd.f32 %v2363, %v2459
    %v2461 = vpop.f32.mrf.mxu0
    %2462 = vmatprep.mubr.bf16.mxu0 %v1487
    %2463 = vmatmul.mubr.bf16.gmra.mxu0 %v1455
    %v2464 = vpop.f32.mrf.mxu0
    %v2465 = vadd.f32 %v2368, %v2464
    %v2466 = vpop.f32.mrf.mxu0
    %v2467 = vpop.f32.mrf.mxu0
    %v2468 = vadd.f32 %v2371, %v2467
    %v2469 = vpop.f32.mrf.mxu0
    %2470 = vmatprep.mubr.bf16.mxu0 %v1488
    %2471 = vmatmul.mubr.bf16.gmra.mxu0 %v1456
    %v2472 = vpop.f32.mrf.mxu0
    %v2473 = vadd.f32 %v2376, %v2472
    %v2474 = vpop.f32.mrf.mxu0
    %v2475 = vpop.f32.mrf.mxu0
    %v2476 = vadd.f32 %v2379, %v2475
    %v2477 = vpop.f32.mrf.mxu0
    %2478 = vmatprep.mubr.bf16.mxu0 %v1489
    %2479 = vmatmul.mubr.bf16.gmra.mxu0 %v1457
    %v2480 = vpop.f32.mrf.mxu0
    %v2481 = vadd.f32 %v2384, %v2480
    %v2482 = vpop.f32.mrf.mxu0
    %v2483 = vpop.f32.mrf.mxu0
    %v2484 = vadd.f32 %v2387, %v2483
    %v2485 = vpop.f32.mrf.mxu0
    %2486 = vmatprep.mubr.bf16.mxu0 %v1490
    %2487 = vmatmul.mubr.bf16.gmra.mxu0 %v1458
    %v2488 = vpop.f32.mrf.mxu0
    %v2489 = vadd.f32 %v2392, %v2488
    %v2490 = vpop.f32.mrf.mxu0
    %v2491 = vpop.f32.mrf.mxu0
    %v2492 = vadd.f32 %v2395, %v2491
    %v2493 = vpop.f32.mrf.mxu0
    %2494 = vmatprep.mubr.bf16.mxu0 %v1491
    %2495 = vmatmul.mubr.bf16.gmra.mxu0 %v1459
    %v2496 = vpop.f32.mrf.mxu0
    %v2497 = vadd.f32 %v2400, %v2496
    %v2498 = vpop.f32.mrf.mxu0
    %v2499 = vpop.f32.mrf.mxu0
    %v2500 = vadd.f32 %v2403, %v2499
    %v2501 = vpop.f32.mrf.mxu0
    %2502 = vdwg.mxu0
    %2503 = vmatprep.subr.bf16.mxu0 0
    %2504 = vmatpush1.bf16.msra.mxu0 %v2042
    %2505 = vmatprep.subr.bf16.mxu0 0
    %2506 = vmatpush1.bf16.msra.mxu0 %v2041
    %2507 = vmatprep.subr.bf16.mxu0 0
    %2508 = vmatpush1.bf16.msra.mxu0 %v2040
    %2509 = vmatprep.subr.bf16.mxu0 0
    %2510 = vmatpush1.bf16.msra.mxu0 %v2039
    %2511 = vmatprep.subr.bf16.mxu0 0
    %2512 = vmatpush1.bf16.msra.mxu0 %v2038
    %2513 = vmatprep.subr.bf16.mxu0 0
    %2514 = vmatpush1.bf16.msra.mxu0 %v2037
    %2515 = vmatprep.subr.bf16.mxu0 0
    %2516 = vmatpush1.bf16.msra.mxu0 %v2036
    %2517 = vmatprep.subr.bf16.mxu0 0
    %2518 = vmatpush1.bf16.msra.mxu0 %v2035
    %2519 = vmatprep.subr.bf16.mxu0 0
    %2520 = vmatpush2.bf16.msra.mxu0 0
    %2521 = vmatprep.subr.bf16.mxu0 0
    %2522 = vmatpush2.bf16.msra.mxu0 0
    %2523 = vmatprep.subr.bf16.mxu0 0
    %2524 = vmatpush2.bf16.msra.mxu0 0
    %2525 = vmatprep.subr.bf16.mxu0 0
    %2526 = vmatpush2.bf16.msra.mxu0 0
    %2527 = vmatprep.subr.bf16.mxu0 0
    %2528 = vmatpush2.bf16.msra.mxu0 0
    %2529 = vmatprep.subr.bf16.mxu0 0
    %2530 = vmatpush2.bf16.msra.mxu0 0
    %2531 = vmatprep.subr.bf16.mxu0 0
    %2532 = vmatpush2.bf16.msra.mxu0 0
    %2533 = vmatprep.subr.bf16.mxu0 0
    %2534 = vmatpush2.bf16.msra.mxu0 0
    %2535 = vmatprep.mubr.bf16.mxu0 0
    %2536 = vmatmul.mubr.bf16.gmra.mxu0 %v1516
    %v2537 = vpop.f32.mrf.mxu0
    %v2538 = vadd.f32 %v2441, %v2537
    %v2539 = vpop.f32.mrf.mxu0
    %v2540 = vpop.f32.mrf.mxu0
    %v2541 = vadd.f32 %v2444, %v2540
    %v2542 = vpop.f32.mrf.mxu0
    %2543 = vmatprep.mubr.bf16.mxu0 0
    %2544 = vmatmul.mubr.bf16.gmra.mxu0 %v1517
    %v2545 = vpop.f32.mrf.mxu0
    %v2546 = vadd.f32 %v2449, %v2545
    %v2547 = vpop.f32.mrf.mxu0
    %v2548 = vpop.f32.mrf.mxu0
    %v2549 = vadd.f32 %v2452, %v2548
    %v2550 = vpop.f32.mrf.mxu0
    %2551 = vmatprep.mubr.bf16.mxu0 0
    %2552 = vmatmul.mubr.bf16.gmra.mxu0 %v1518
    %v2553 = vpop.f32.mrf.mxu0
    %v2554 = vadd.f32 %v2457, %v2553
    %v2555 = vpop.f32.mrf.mxu0
    %v2556 = vpop.f32.mrf.mxu0
    %v2557 = vadd.f32 %v2460, %v2556
    %v2558 = vpop.f32.mrf.mxu0
    %2559 = vmatprep.mubr.bf16.mxu0 0
    %2560 = vmatmul.mubr.bf16.gmra.mxu0 %v1519
    %v2561 = vpop.f32.mrf.mxu0
    %v2562 = vadd.f32 %v2465, %v2561
    %v2563 = vpop.f32.mrf.mxu0
    %v2564 = vpop.f32.mrf.mxu0
    %v2565 = vadd.f32 %v2468, %v2564
    %v2566 = vpop.f32.mrf.mxu0
    %2567 = vmatprep.mubr.bf16.mxu0 0
    %2568 = vmatmul.mubr.bf16.gmra.mxu0 %v1520
    %v2569 = vpop.f32.mrf.mxu0
    %v2570 = vadd.f32 %v2473, %v2569
    %v2571 = vpop.f32.mrf.mxu0
    %v2572 = vpop.f32.mrf.mxu0
    %v2573 = vadd.f32 %v2476, %v2572
    %v2574 = vpop.f32.mrf.mxu0
    %2575 = vmatprep.mubr.bf16.mxu0 0
    %2576 = vmatmul.mubr.bf16.gmra.mxu0 %v1521
    %v2577 = vpop.f32.mrf.mxu0
    %v2578 = vadd.f32 %v2481, %v2577
    %v2579 = vpop.f32.mrf.mxu0
    %v2580 = vpop.f32.mrf.mxu0
    %v2581 = vadd.f32 %v2484, %v2580
    %v2582 = vpop.f32.mrf.mxu0
    %2583 = vmatprep.mubr.bf16.mxu0 0
    %2584 = vmatmul.mubr.bf16.gmra.mxu0 %v1522
    %v2585 = vpop.f32.mrf.mxu0
    %v2586 = vadd.f32 %v2489, %v2585
    %v2587 = vpop.f32.mrf.mxu0
    %v2588 = vpop.f32.mrf.mxu0
    %v2589 = vadd.f32 %v2492, %v2588
    %v2590 = vpop.f32.mrf.mxu0
    %2591 = vmatprep.mubr.bf16.mxu0 0
    %2592 = vmatmul.mubr.bf16.gmra.mxu0 %v1523
    %v2593 = vpop.f32.mrf.mxu0
    %v2594 = vadd.f32 %v2497, %v2593
    %v2595 = vpop.f32.mrf.mxu0
    %v2596 = vpop.f32.mrf.mxu0
    %v2597 = vadd.f32 %v2500, %v2596
    %v2598 = vpop.f32.mrf.mxu0
    %2599 = vdwg.mxu0
    %v2600 = vmax.f32 %v2538, 0.0
    %v2601 = vmax.f32 %v2541, 0.0
    %v2602 = vmax.f32 %v2546, 0.0
    %v2603 = vmax.f32 %v2549, 0.0
    %v2604 = vmax.f32 %v2554, 0.0
    %v2605 = vmax.f32 %v2557, 0.0
    %v2606 = vmax.f32 %v2562, 0.0
    %v2607 = vmax.f32 %v2565, 0.0
    %v2608 = vmax.f32 %v2570, 0.0
    %v2609 = vmax.f32 %v2573, 0.0
    %v2610 = vmax.f32 %v2578, 0.0
    %v2611 = vmax.f32 %v2581, 0.0
    %v2612 = vmax.f32 %v2586, 0.0
    %v2613 = vmax.f32 %v2589, 0.0
    %v2614 = vmax.f32 %v2594, 0.0
    %v2615 = vmax.f32 %v2597, 0.0
    %v2616 = vld [vmem:[%s3] sm:$0x1]
    %v2618 = vlaneseq
    %v2619 = vshrl.u32 %v2618, 7
    %v2620 = vsub.s32 0, %v2619
    %v2621 = vrot.slane %v2616, %v2620
    %v2623 = vmul.f32 %v2600, %v2621
    %v2624 = vmul.f32 %v2601, %v2621
    %v2625 = vmul.f32 %v2602, %v2621
    %v2626 = vmul.f32 %v2603, %v2621
    %v2627 = vmul.f32 %v2604, %v2621
    %v2628 = vmul.f32 %v2605, %v2621
    %v2629 = vmul.f32 %v2606, %v2621
    %v2630 = vmul.f32 %v2607, %v2621
    %v2631 = vmul.f32 %v2608, %v2621
    %v2632 = vmul.f32 %v2609, %v2621
    %v2633 = vmul.f32 %v2610, %v2621
    %v2634 = vmul.f32 %v2611, %v2621
    %v2635 = vmul.f32 %v2612, %v2621
    %v2636 = vmul.f32 %v2613, %v2621
    %v2637 = vmul.f32 %v2614, %v2621
    %v2638 = vmul.f32 %v2615, %v2621
    %v2639 = vld [vmem:[%s4] sm:$0x1]
    %v2641 = vlaneseq
    %v2642 = vshrl.u32 %v2641, 7
    %v2643 = vsub.s32 0, %v2642
    %v2644 = vrot.slane %v2639, %v2643
    %v2646 = vadd.f32 %v2623, %v2644
    %v2647 = vadd.f32 %v2624, %v2644
    %v2648 = vadd.f32 %v2625, %v2644
    %v2649 = vadd.f32 %v2626, %v2644
    %v2650 = vadd.f32 %v2627, %v2644
    %v2651 = vadd.f32 %v2628, %v2644
    %v2652 = vadd.f32 %v2629, %v2644
    %v2653 = vadd.f32 %v2630, %v2644
    %v2654 = vadd.f32 %v2631, %v2644
    %v2655 = vadd.f32 %v2632, %v2644
    %v2656 = vadd.f32 %v2633, %v2644
    %v2657 = vadd.f32 %v2634, %v2644
    %v2658 = vadd.f32 %v2635, %v2644
    %v2659 = vadd.f32 %v2636, %v2644
    %v2660 = vadd.f32 %v2637, %v2644
    %v2661 = vadd.f32 %v2638, %v2644
    %v2678 = vcombine.high %v2646, %v2646
    %v2680 = vunpack.c.l.s4 1983009808
    %v2681 = vunpack.c.0.s8 %v2680
    %v2682 = vlaneseq
    %v2683 = vshrl.u32 %v2682, 7
    %v2684 = vsub.s32 %v2681, %v2683
    %v2685 = vrot.slane %v2646, %v2684
    %v2687 = vunpack.c.l.s4 1983009808
    %v2688 = vunpack.c.0.s8 %v2687
    %v2689 = vlaneseq
    %v2690 = vshrl.u32 %v2689, 7
    %v2691 = vsub.s32 %v2688, %v2690
    %v2692 = vrot.slane %v2678, %v2691
    %v2693 = vcombine.high %v2685, %v2685
    %v2694 = vcombine.high %v2692, %v2692
    %v2695 = vcombine.high %v2647, %v2647
    %v2697 = vunpack.c.l.s4 1983009808
    %v2698 = vunpack.c.0.s8 %v2697
    %v2699 = vlaneseq
    %v2700 = vshrl.u32 %v2699, 7
    %v2701 = vsub.s32 %v2698, %v2700
    %v2702 = vrot.slane %v2647, %v2701
    %v2704 = vunpack.c.l.s4 1983009808
    %v2705 = vunpack.c.0.s8 %v2704
    %v2706 = vlaneseq
    %v2707 = vshrl.u32 %v2706, 7
    %v2708 = vsub.s32 %v2705, %v2707
    %v2709 = vrot.slane %v2695, %v2708
    %v2710 = vcombine.high %v2702, %v2702
    %v2711 = vcombine.high %v2709, %v2709
    %v2712 = vcombine.high %v2648, %v2648
    %v2714 = vunpack.c.l.s4 1983009808
    %v2715 = vunpack.c.0.s8 %v2714
    %v2716 = vlaneseq
    %v2717 = vshrl.u32 %v2716, 7
    %v2718 = vsub.s32 %v2715, %v2717
    %v2719 = vrot.slane %v2648, %v2718
    %v2721 = vunpack.c.l.s4 1983009808
    %v2722 = vunpack.c.0.s8 %v2721
    %v2723 = vlaneseq
    %v2724 = vshrl.u32 %v2723, 7
    %v2725 = vsub.s32 %v2722, %v2724
    %v2726 = vrot.slane %v2712, %v2725
    %v2727 = vcombine.high %v2719, %v2719
    %v2728 = vcombine.high %v2726, %v2726
    %v2729 = vcombine.high %v2649, %v2649
    %v2731 = vunpack.c.l.s4 1983009808
    %v2732 = vunpack.c.0.s8 %v2731
    %v2733 = vlaneseq
    %v2734 = vshrl.u32 %v2733, 7
    %v2735 = vsub.s32 %v2732, %v2734
    %v2736 = vrot.slane %v2649, %v2735
    %v2738 = vunpack.c.l.s4 1983009808
    %v2739 = vunpack.c.0.s8 %v2738
    %v2740 = vlaneseq
    %v2741 = vshrl.u32 %v2740, 7
    %v2742 = vsub.s32 %v2739, %v2741
    %v2743 = vrot.slane %v2729, %v2742
    %v2744 = vcombine.high %v2736, %v2736
    %v2745 = vcombine.high %v2743, %v2743
    %v2746 = vcombine.high %v2650, %v2650
    %v2748 = vunpack.c.l.s4 1983009808
    %v2749 = vunpack.c.0.s8 %v2748
    %v2750 = vlaneseq
    %v2751 = vshrl.u32 %v2750, 7
    %v2752 = vsub.s32 %v2749, %v2751
    %v2753 = vrot.slane %v2650, %v2752
    %v2755 = vunpack.c.l.s4 1983009808
    %v2756 = vunpack.c.0.s8 %v2755
    %v2757 = vlaneseq
    %v2758 = vshrl.u32 %v2757, 7
    %v2759 = vsub.s32 %v2756, %v2758
    %v2760 = vrot.slane %v2746, %v2759
    %v2761 = vcombine.high %v2753, %v2753
    %v2762 = vcombine.high %v2760, %v2760
    %v2763 = vcombine.high %v2651, %v2651
    %v2765 = vunpack.c.l.s4 1983009808
    %v2766 = vunpack.c.0.s8 %v2765
    %v2767 = vlaneseq
    %v2768 = vshrl.u32 %v2767, 7
    %v2769 = vsub.s32 %v2766, %v2768
    %v2770 = vrot.slane %v2651, %v2769
    %v2772 = vunpack.c.l.s4 1983009808
    %v2773 = vunpack.c.0.s8 %v2772
    %v2774 = vlaneseq
    %v2775 = vshrl.u32 %v2774, 7
    %v2776 = vsub.s32 %v2773, %v2775
    %v2777 = vrot.slane %v2763, %v2776
    %v2778 = vcombine.high %v2770, %v2770
    %v2779 = vcombine.high %v2777, %v2777
    %v2780 = vcombine.high %v2652, %v2652
    %v2782 = vunpack.c.l.s4 1983009808
    %v2783 = vunpack.c.0.s8 %v2782
    %v2784 = vlaneseq
    %v2785 = vshrl.u32 %v2784, 7
    %v2786 = vsub.s32 %v2783, %v2785
    %v2787 = vrot.slane %v2652, %v2786
    %v2789 = vunpack.c.l.s4 1983009808
    %v2790 = vunpack.c.0.s8 %v2789
    %v2791 = vlaneseq
    %v2792 = vshrl.u32 %v2791, 7
    %v2793 = vsub.s32 %v2790, %v2792
    %v2794 = vrot.slane %v2780, %v2793
    %v2795 = vcombine.high %v2787, %v2787
    %v2796 = vcombine.high %v2794, %v2794
    %v2797 = vcombine.high %v2653, %v2653
    %v2799 = vunpack.c.l.s4 1983009808
    %v2800 = vunpack.c.0.s8 %v2799
    %v2801 = vlaneseq
    %v2802 = vshrl.u32 %v2801, 7
    %v2803 = vsub.s32 %v2800, %v2802
    %v2804 = vrot.slane %v2653, %v2803
    %v2806 = vunpack.c.l.s4 1983009808
    %v2807 = vunpack.c.0.s8 %v2806
    %v2808 = vlaneseq
    %v2809 = vshrl.u32 %v2808, 7
    %v2810 = vsub.s32 %v2807, %v2809
    %v2811 = vrot.slane %v2797, %v2810
    %v2812 = vcombine.high %v2804, %v2804
    %v2813 = vcombine.high %v2811, %v2811
    %v2814 = vcombine.high %v2654, %v2654
    %v2816 = vunpack.c.l.s4 1983009808
    %v2817 = vunpack.c.0.s8 %v2816
    %v2818 = vlaneseq
    %v2819 = vshrl.u32 %v2818, 7
    %v2820 = vsub.s32 %v2817, %v2819
    %v2821 = vrot.slane %v2654, %v2820
    %v2823 = vunpack.c.l.s4 1983009808
    %v2824 = vunpack.c.0.s8 %v2823
    %v2825 = vlaneseq
    %v2826 = vshrl.u32 %v2825, 7
    %v2827 = vsub.s32 %v2824, %v2826
    %v2828 = vrot.slane %v2814, %v2827
    %v2829 = vcombine.high %v2821, %v2821
    %v2830 = vcombine.high %v2828, %v2828
    %v2831 = vcombine.high %v2655, %v2655
    %v2833 = vunpack.c.l.s4 1983009808
    %v2834 = vunpack.c.0.s8 %v2833
    %v2835 = vlaneseq
    %v2836 = vshrl.u32 %v2835, 7
    %v2837 = vsub.s32 %v2834, %v2836
    %v2838 = vrot.slane %v2655, %v2837
    %v2840 = vunpack.c.l.s4 1983009808
    %v2841 = vunpack.c.0.s8 %v2840
    %v2842 = vlaneseq
    %v2843 = vshrl.u32 %v2842, 7
    %v2844 = vsub.s32 %v2841, %v2843
    %v2845 = vrot.slane %v2831, %v2844
    %v2846 = vcombine.high %v2838, %v2838
    %v2847 = vcombine.high %v2845, %v2845
    %v2848 = vcombine.high %v2656, %v2656
    %v2850 = vunpack.c.l.s4 1983009808
    %v2851 = vunpack.c.0.s8 %v2850
    %v2852 = vlaneseq
    %v2853 = vshrl.u32 %v2852, 7
    %v2854 = vsub.s32 %v2851, %v2853
    %v2855 = vrot.slane %v2656, %v2854
    %v2857 = vunpack.c.l.s4 1983009808
    %v2858 = vunpack.c.0.s8 %v2857
    %v2859 = vlaneseq
    %v2860 = vshrl.u32 %v2859, 7
    %v2861 = vsub.s32 %v2858, %v2860
    %v2862 = vrot.slane %v2848, %v2861
    %v2863 = vcombine.high %v2855, %v2855
    %v2864 = vcombine.high %v2862, %v2862
    %v2865 = vcombine.high %v2657, %v2657
    %v2867 = vunpack.c.l.s4 1983009808
    %v2868 = vunpack.c.0.s8 %v2867
    %v2869 = vlaneseq
    %v2870 = vshrl.u32 %v2869, 7
    %v2871 = vsub.s32 %v2868, %v2870
    %v2872 = vrot.slane %v2657, %v2871
    %v2874 = vunpack.c.l.s4 1983009808
    %v2875 = vunpack.c.0.s8 %v2874
    %v2876 = vlaneseq
    %v2877 = vshrl.u32 %v2876, 7
    %v2878 = vsub.s32 %v2875, %v2877
    %v2879 = vrot.slane %v2865, %v2878
    %v2880 = vcombine.high %v2872, %v2872
    %v2881 = vcombine.high %v2879, %v2879
    %v2882 = vcombine.high %v2658, %v2658
    %v2884 = vunpack.c.l.s4 1983009808
    %v2885 = vunpack.c.0.s8 %v2884
    %v2886 = vlaneseq
    %v2887 = vshrl.u32 %v2886, 7
    %v2888 = vsub.s32 %v2885, %v2887
    %v2889 = vrot.slane %v2658, %v2888
    %v2891 = vunpack.c.l.s4 1983009808
    %v2892 = vunpack.c.0.s8 %v2891
    %v2893 = vlaneseq
    %v2894 = vshrl.u32 %v2893, 7
    %v2895 = vsub.s32 %v2892, %v2894
    %v2896 = vrot.slane %v2882, %v2895
    %v2897 = vcombine.high %v2889, %v2889
    %v2898 = vcombine.high %v2896, %v2896
    %v2899 = vcombine.high %v2659, %v2659
    %v2901 = vunpack.c.l.s4 1983009808
    %v2902 = vunpack.c.0.s8 %v2901
    %v2903 = vlaneseq
    %v2904 = vshrl.u32 %v2903, 7
    %v2905 = vsub.s32 %v2902, %v2904
    %v2906 = vrot.slane %v2659, %v2905
    %v2908 = vunpack.c.l.s4 1983009808
    %v2909 = vunpack.c.0.s8 %v2908
    %v2910 = vlaneseq
    %v2911 = vshrl.u32 %v2910, 7
    %v2912 = vsub.s32 %v2909, %v2911
    %v2913 = vrot.slane %v2899, %v2912
    %v2914 = vcombine.high %v2906, %v2906
    %v2915 = vcombine.high %v2913, %v2913
    %v2916 = vcombine.high %v2660, %v2660
    %v2918 = vunpack.c.l.s4 1983009808
    %v2919 = vunpack.c.0.s8 %v2918
    %v2920 = vlaneseq
    %v2921 = vshrl.u32 %v2920, 7
    %v2922 = vsub.s32 %v2919, %v2921
    %v2923 = vrot.slane %v2660, %v2922
    %v2925 = vunpack.c.l.s4 1983009808
    %v2926 = vunpack.c.0.s8 %v2925
    %v2927 = vlaneseq
    %v2928 = vshrl.u32 %v2927, 7
    %v2929 = vsub.s32 %v2926, %v2928
    %v2930 = vrot.slane %v2916, %v2929
    %v2931 = vcombine.high %v2923, %v2923
    %v2932 = vcombine.high %v2930, %v2930
    %v2933 = vcombine.high %v2661, %v2661
    %v2935 = vunpack.c.l.s4 1983009808
    %v2936 = vunpack.c.0.s8 %v2935
    %v2937 = vlaneseq
    %v2938 = vshrl.u32 %v2937, 7
    %v2939 = vsub.s32 %v2936, %v2938
    %v2940 = vrot.slane %v2661, %v2939
    %v2942 = vunpack.c.l.s4 1983009808
    %v2943 = vunpack.c.0.s8 %v2942
    %v2944 = vlaneseq
    %v2945 = vshrl.u32 %v2944, 7
    %v2946 = vsub.s32 %v2943, %v2945
    %v2947 = vrot.slane %v2933, %v2946
    %v2948 = vcombine.high %v2940, %v2940
    %v2949 = vcombine.high %v2947, %v2947
    %vm3014 = vcmask 1041408
    %v3015 = vsel %vm3014, %v2685, -inf
    %v3016 = vrot.slane %v3015, 4
    %v3017 = vmax.f32 %v3015, %v3016
    %v3018 = vrot.slane %v3017, 2
    %v3019 = vmax.f32 %v3017, %v3018
    %v3020 = vrot.slane %v3019, 1
    %v3021 = vmax.f32 %v3019, %v3020
    %v3022 = vsel %vm3014, %v2693, -inf
    %v3023 = vrot.slane %v3022, 4
    %v3024 = vmax.f32 %v3022, %v3023
    %v3025 = vrot.slane %v3024, 2
    %v3026 = vmax.f32 %v3024, %v3025
    %v3027 = vrot.slane %v3026, 1
    %v3028 = vmax.f32 %v3026, %v3027
    %v3029 = vsel %vm3014, %v2692, -inf
    %v3030 = vrot.slane %v3029, 4
    %v3031 = vmax.f32 %v3029, %v3030
    %v3032 = vrot.slane %v3031, 2
    %v3033 = vmax.f32 %v3031, %v3032
    %v3034 = vrot.slane %v3033, 1
    %v3035 = vmax.f32 %v3033, %v3034
    %v3036 = vsel %vm3014, %v2694, -inf
    %v3037 = vrot.slane %v3036, 4
    %v3038 = vmax.f32 %v3036, %v3037
    %v3039 = vrot.slane %v3038, 2
    %v3040 = vmax.f32 %v3038, %v3039
    %v3041 = vrot.slane %v3040, 1
    %v3042 = vmax.f32 %v3040, %v3041
    %v3043 = vsel %vm3014, %v2702, -inf
    %v3044 = vrot.slane %v3043, 4
    %v3045 = vmax.f32 %v3043, %v3044
    %v3046 = vrot.slane %v3045, 2
    %v3047 = vmax.f32 %v3045, %v3046
    %v3048 = vrot.slane %v3047, 1
    %v3049 = vmax.f32 %v3047, %v3048
    %v3050 = vsel %vm3014, %v2710, -inf
    %v3051 = vrot.slane %v3050, 4
    %v3052 = vmax.f32 %v3050, %v3051
    %v3053 = vrot.slane %v3052, 2
    %v3054 = vmax.f32 %v3052, %v3053
    %v3055 = vrot.slane %v3054, 1
    %v3056 = vmax.f32 %v3054, %v3055
    %v3057 = vsel %vm3014, %v2709, -inf
    %v3058 = vrot.slane %v3057, 4
    %v3059 = vmax.f32 %v3057, %v3058
    %v3060 = vrot.slane %v3059, 2
    %v3061 = vmax.f32 %v3059, %v3060
    %v3062 = vrot.slane %v3061, 1
    %v3063 = vmax.f32 %v3061, %v3062
    %v3064 = vsel %vm3014, %v2711, -inf
    %v3065 = vrot.slane %v3064, 4
    %v3066 = vmax.f32 %v3064, %v3065
    %v3067 = vrot.slane %v3066, 2
    %v3068 = vmax.f32 %v3066, %v3067
    %v3069 = vrot.slane %v3068, 1
    %v3070 = vmax.f32 %v3068, %v3069
    %v3071 = vsel %vm3014, %v2719, -inf
    %v3072 = vrot.slane %v3071, 4
    %v3073 = vmax.f32 %v3071, %v3072
    %v3074 = vrot.slane %v3073, 2
    %v3075 = vmax.f32 %v3073, %v3074
    %v3076 = vrot.slane %v3075, 1
    %v3077 = vmax.f32 %v3075, %v3076
    %v3078 = vsel %vm3014, %v2727, -inf
    %v3079 = vrot.slane %v3078, 4
    %v3080 = vmax.f32 %v3078, %v3079
    %v3081 = vrot.slane %v3080, 2
    %v3082 = vmax.f32 %v3080, %v3081
    %v3083 = vrot.slane %v3082, 1
    %v3084 = vmax.f32 %v3082, %v3083
    %v3085 = vsel %vm3014, %v2726, -inf
    %v3086 = vrot.slane %v3085, 4
    %v3087 = vmax.f32 %v3085, %v3086
    %v3088 = vrot.slane %v3087, 2
    %v3089 = vmax.f32 %v3087, %v3088
    %v3090 = vrot.slane %v3089, 1
    %v3091 = vmax.f32 %v3089, %v3090
    %v3092 = vsel %vm3014, %v2728, -inf
    %v3093 = vrot.slane %v3092, 4
    %v3094 = vmax.f32 %v3092, %v3093
    %v3095 = vrot.slane %v3094, 2
    %v3096 = vmax.f32 %v3094, %v3095
    %v3097 = vrot.slane %v3096, 1
    %v3098 = vmax.f32 %v3096, %v3097
    %v3099 = vsel %vm3014, %v2736, -inf
    %v3100 = vrot.slane %v3099, 4
    %v3101 = vmax.f32 %v3099, %v3100
    %v3102 = vrot.slane %v3101, 2
    %v3103 = vmax.f32 %v3101, %v3102
    %v3104 = vrot.slane %v3103, 1
    %v3105 = vmax.f32 %v3103, %v3104
    %v3106 = vsel %vm3014, %v2744, -inf
    %v3107 = vrot.slane %v3106, 4
    %v3108 = vmax.f32 %v3106, %v3107
    %v3109 = vrot.slane %v3108, 2
    %v3110 = vmax.f32 %v3108, %v3109
    %v3111 = vrot.slane %v3110, 1
    %v3112 = vmax.f32 %v3110, %v3111
    %v3113 = vsel %vm3014, %v2743, -inf
    %v3114 = vrot.slane %v3113, 4
    %v3115 = vmax.f32 %v3113, %v3114
    %v3116 = vrot.slane %v3115, 2
    %v3117 = vmax.f32 %v3115, %v3116
    %v3118 = vrot.slane %v3117, 1
    %v3119 = vmax.f32 %v3117, %v3118
    %v3120 = vsel %vm3014, %v2745, -inf
    %v3121 = vrot.slane %v3120, 4
    %v3122 = vmax.f32 %v3120, %v3121
    %v3123 = vrot.slane %v3122, 2
    %v3124 = vmax.f32 %v3122, %v3123
    %v3125 = vrot.slane %v3124, 1
    %v3126 = vmax.f32 %v3124, %v3125
    %v3127 = vsel %vm3014, %v2753, -inf
    %v3128 = vrot.slane %v3127, 4
    %v3129 = vmax.f32 %v3127, %v3128
    %v3130 = vrot.slane %v3129, 2
    %v3131 = vmax.f32 %v3129, %v3130
    %v3132 = vrot.slane %v3131, 1
    %v3133 = vmax.f32 %v3131, %v3132
    %v3134 = vsel %vm3014, %v2761, -inf
    %v3135 = vrot.slane %v3134, 4
    %v3136 = vmax.f32 %v3134, %v3135
    %v3137 = vrot.slane %v3136, 2
    %v3138 = vmax.f32 %v3136, %v3137
    %v3139 = vrot.slane %v3138, 1
    %v3140 = vmax.f32 %v3138, %v3139
    %v3141 = vsel %vm3014, %v2760, -inf
    %v3142 = vrot.slane %v3141, 4
    %v3143 = vmax.f32 %v3141, %v3142
    %v3144 = vrot.slane %v3143, 2
    %v3145 = vmax.f32 %v3143, %v3144
    %v3146 = vrot.slane %v3145, 1
    %v3147 = vmax.f32 %v3145, %v3146
    %v3148 = vsel %vm3014, %v2762, -inf
    %v3149 = vrot.slane %v3148, 4
    %v3150 = vmax.f32 %v3148, %v3149
    %v3151 = vrot.slane %v3150, 2
    %v3152 = vmax.f32 %v3150, %v3151
    %v3153 = vrot.slane %v3152, 1
    %v3154 = vmax.f32 %v3152, %v3153
    %v3155 = vsel %vm3014, %v2770, -inf
    %v3156 = vrot.slane %v3155, 4
    %v3157 = vmax.f32 %v3155, %v3156
    %v3158 = vrot.slane %v3157, 2
    %v3159 = vmax.f32 %v3157, %v3158
    %v3160 = vrot.slane %v3159, 1
    %v3161 = vmax.f32 %v3159, %v3160
    %v3162 = vsel %vm3014, %v2778, -inf
    %v3163 = vrot.slane %v3162, 4
    %v3164 = vmax.f32 %v3162, %v3163
    %v3165 = vrot.slane %v3164, 2
    %v3166 = vmax.f32 %v3164, %v3165
    %v3167 = vrot.slane %v3166, 1
    %v3168 = vmax.f32 %v3166, %v3167
    %v3169 = vsel %vm3014, %v2777, -inf
    %v3170 = vrot.slane %v3169, 4
    %v3171 = vmax.f32 %v3169, %v3170
    %v3172 = vrot.slane %v3171, 2
    %v3173 = vmax.f32 %v3171, %v3172
    %v3174 = vrot.slane %v3173, 1
    %v3175 = vmax.f32 %v3173, %v3174
    %v3176 = vsel %vm3014, %v2779, -inf
    %v3177 = vrot.slane %v3176, 4
    %v3178 = vmax.f32 %v3176, %v3177
    %v3179 = vrot.slane %v3178, 2
    %v3180 = vmax.f32 %v3178, %v3179
    %v3181 = vrot.slane %v3180, 1
    %v3182 = vmax.f32 %v3180, %v3181
    %v3183 = vsel %vm3014, %v2787, -inf
    %v3184 = vrot.slane %v3183, 4
    %v3185 = vmax.f32 %v3183, %v3184
    %v3186 = vrot.slane %v3185, 2
    %v3187 = vmax.f32 %v3185, %v3186
    %v3188 = vrot.slane %v3187, 1
    %v3189 = vmax.f32 %v3187, %v3188
    %v3190 = vsel %vm3014, %v2795, -inf
    %v3191 = vrot.slane %v3190, 4
    %v3192 = vmax.f32 %v3190, %v3191
    %v3193 = vrot.slane %v3192, 2
    %v3194 = vmax.f32 %v3192, %v3193
    %v3195 = vrot.slane %v3194, 1
    %v3196 = vmax.f32 %v3194, %v3195
    %v3197 = vsel %vm3014, %v2794, -inf
    %v3198 = vrot.slane %v3197, 4
    %v3199 = vmax.f32 %v3197, %v3198
    %v3200 = vrot.slane %v3199, 2
    %v3201 = vmax.f32 %v3199, %v3200
    %v3202 = vrot.slane %v3201, 1
    %v3203 = vmax.f32 %v3201, %v3202
    %v3204 = vsel %vm3014, %v2796, -inf
    %v3205 = vrot.slane %v3204, 4
    %v3206 = vmax.f32 %v3204, %v3205
    %v3207 = vrot.slane %v3206, 2
    %v3208 = vmax.f32 %v3206, %v3207
    %v3209 = vrot.slane %v3208, 1
    %v3210 = vmax.f32 %v3208, %v3209
    %v3211 = vsel %vm3014, %v2804, -inf
    %v3212 = vrot.slane %v3211, 4
    %v3213 = vmax.f32 %v3211, %v3212
    %v3214 = vrot.slane %v3213, 2
    %v3215 = vmax.f32 %v3213, %v3214
    %v3216 = vrot.slane %v3215, 1
    %v3217 = vmax.f32 %v3215, %v3216
    %v3218 = vsel %vm3014, %v2812, -inf
    %v3219 = vrot.slane %v3218, 4
    %v3220 = vmax.f32 %v3218, %v3219
    %v3221 = vrot.slane %v3220, 2
    %v3222 = vmax.f32 %v3220, %v3221
    %v3223 = vrot.slane %v3222, 1
    %v3224 = vmax.f32 %v3222, %v3223
    %v3225 = vsel %vm3014, %v2811, -inf
    %v3226 = vrot.slane %v3225, 4
    %v3227 = vmax.f32 %v3225, %v3226
    %v3228 = vrot.slane %v3227, 2
    %v3229 = vmax.f32 %v3227, %v3228
    %v3230 = vrot.slane %v3229, 1
    %v3231 = vmax.f32 %v3229, %v3230
    %v3232 = vsel %vm3014, %v2813, -inf
    %v3233 = vrot.slane %v3232, 4
    %v3234 = vmax.f32 %v3232, %v3233
    %v3235 = vrot.slane %v3234, 2
    %v3236 = vmax.f32 %v3234, %v3235
    %v3237 = vrot.slane %v3236, 1
    %v3238 = vmax.f32 %v3236, %v3237
    %v3239 = vsel %vm3014, %v2821, -inf
    %v3240 = vrot.slane %v3239, 4
    %v3241 = vmax.f32 %v3239, %v3240
    %v3242 = vrot.slane %v3241, 2
    %v3243 = vmax.f32 %v3241, %v3242
    %v3244 = vrot.slane %v3243, 1
    %v3245 = vmax.f32 %v3243, %v3244
    %v3246 = vsel %vm3014, %v2829, -inf
    %v3247 = vrot.slane %v3246, 4
    %v3248 = vmax.f32 %v3246, %v3247
    %v3249 = vrot.slane %v3248, 2
    %v3250 = vmax.f32 %v3248, %v3249
    %v3251 = vrot.slane %v3250, 1
    %v3252 = vmax.f32 %v3250, %v3251
    %v3253 = vsel %vm3014, %v2828, -inf
    %v3254 = vrot.slane %v3253, 4
    %v3255 = vmax.f32 %v3253, %v3254
    %v3256 = vrot.slane %v3255, 2
    %v3257 = vmax.f32 %v3255, %v3256
    %v3258 = vrot.slane %v3257, 1
    %v3259 = vmax.f32 %v3257, %v3258
    %v3260 = vsel %vm3014, %v2830, -inf
    %v3261 = vrot.slane %v3260, 4
    %v3262 = vmax.f32 %v3260, %v3261
    %v3263 = vrot.slane %v3262, 2
    %v3264 = vmax.f32 %v3262, %v3263
    %v3265 = vrot.slane %v3264, 1
    %v3266 = vmax.f32 %v3264, %v3265
    %v3267 = vsel %vm3014, %v2838, -inf
    %v3268 = vrot.slane %v3267, 4
    %v3269 = vmax.f32 %v3267, %v3268
    %v3270 = vrot.slane %v3269, 2
    %v3271 = vmax.f32 %v3269, %v3270
    %v3272 = vrot.slane %v3271, 1
    %v3273 = vmax.f32 %v3271, %v3272
    %v3274 = vsel %vm3014, %v2846, -inf
    %v3275 = vrot.slane %v3274, 4
    %v3276 = vmax.f32 %v3274, %v3275
    %v3277 = vrot.slane %v3276, 2
    %v3278 = vmax.f32 %v3276, %v3277
    %v3279 = vrot.slane %v3278, 1
    %v3280 = vmax.f32 %v3278, %v3279
    %v3281 = vsel %vm3014, %v2845, -inf
    %v3282 = vrot.slane %v3281, 4
    %v3283 = vmax.f32 %v3281, %v3282
    %v3284 = vrot.slane %v3283, 2
    %v3285 = vmax.f32 %v3283, %v3284
    %v3286 = vrot.slane %v3285, 1
    %v3287 = vmax.f32 %v3285, %v3286
    %v3288 = vsel %vm3014, %v2847, -inf
    %v3289 = vrot.slane %v3288, 4
    %v3290 = vmax.f32 %v3288, %v3289
    %v3291 = vrot.slane %v3290, 2
    %v3292 = vmax.f32 %v3290, %v3291
    %v3293 = vrot.slane %v3292, 1
    %v3294 = vmax.f32 %v3292, %v3293
    %v3295 = vsel %vm3014, %v2855, -inf
    %v3296 = vrot.slane %v3295, 4
    %v3297 = vmax.f32 %v3295, %v3296
    %v3298 = vrot.slane %v3297, 2
    %v3299 = vmax.f32 %v3297, %v3298
    %v3300 = vrot.slane %v3299, 1
    %v3301 = vmax.f32 %v3299, %v3300
    %v3302 = vsel %vm3014, %v2863, -inf
    %v3303 = vrot.slane %v3302, 4
    %v3304 = vmax.f32 %v3302, %v3303
    %v3305 = vrot.slane %v3304, 2
    %v3306 = vmax.f32 %v3304, %v3305
    %v3307 = vrot.slane %v3306, 1
    %v3308 = vmax.f32 %v3306, %v3307
    %v3309 = vsel %vm3014, %v2862, -inf
    %v3310 = vrot.slane %v3309, 4
    %v3311 = vmax.f32 %v3309, %v3310
    %v3312 = vrot.slane %v3311, 2
    %v3313 = vmax.f32 %v3311, %v3312
    %v3314 = vrot.slane %v3313, 1
    %v3315 = vmax.f32 %v3313, %v3314
    %v3316 = vsel %vm3014, %v2864, -inf
    %v3317 = vrot.slane %v3316, 4
    %v3318 = vmax.f32 %v3316, %v3317
    %v3319 = vrot.slane %v3318, 2
    %v3320 = vmax.f32 %v3318, %v3319
    %v3321 = vrot.slane %v3320, 1
    %v3322 = vmax.f32 %v3320, %v3321
    %v3323 = vsel %vm3014, %v2872, -inf
    %v3324 = vrot.slane %v3323, 4
    %v3325 = vmax.f32 %v3323, %v3324
    %v3326 = vrot.slane %v3325, 2
    %v3327 = vmax.f32 %v3325, %v3326
    %v3328 = vrot.slane %v3327, 1
    %v3329 = vmax.f32 %v3327, %v3328
    %v3330 = vsel %vm3014, %v2880, -inf
    %v3331 = vrot.slane %v3330, 4
    %v3332 = vmax.f32 %v3330, %v3331
    %v3333 = vrot.slane %v3332, 2
    %v3334 = vmax.f32 %v3332, %v3333
    %v3335 = vrot.slane %v3334, 1
    %v3336 = vmax.f32 %v3334, %v3335
    %v3337 = vsel %vm3014, %v2879, -inf
    %v3338 = vrot.slane %v3337, 4
    %v3339 = vmax.f32 %v3337, %v3338
    %v3340 = vrot.slane %v3339, 2
    %v3341 = vmax.f32 %v3339, %v3340
    %v3342 = vrot.slane %v3341, 1
    %v3343 = vmax.f32 %v3341, %v3342
    %v3344 = vsel %vm3014, %v2881, -inf
    %v3345 = vrot.slane %v3344, 4
    %v3346 = vmax.f32 %v3344, %v3345
    %v3347 = vrot.slane %v3346, 2
    %v3348 = vmax.f32 %v3346, %v3347
    %v3349 = vrot.slane %v3348, 1
    %v3350 = vmax.f32 %v3348, %v3349
    %v3351 = vsel %vm3014, %v2889, -inf
    %v3352 = vrot.slane %v3351, 4
    %v3353 = vmax.f32 %v3351, %v3352
    %v3354 = vrot.slane %v3353, 2
    %v3355 = vmax.f32 %v3353, %v3354
    %v3356 = vrot.slane %v3355, 1
    %v3357 = vmax.f32 %v3355, %v3356
    %v3358 = vsel %vm3014, %v2897, -inf
    %v3359 = vrot.slane %v3358, 4
    %v3360 = vmax.f32 %v3358, %v3359
    %v3361 = vrot.slane %v3360, 2
    %v3362 = vmax.f32 %v3360, %v3361
    %v3363 = vrot.slane %v3362, 1
    %v3364 = vmax.f32 %v3362, %v3363
    %v3365 = vsel %vm3014, %v2896, -inf
    %v3366 = vrot.slane %v3365, 4
    %v3367 = vmax.f32 %v3365, %v3366
    %v3368 = vrot.slane %v3367, 2
    %v3369 = vmax.f32 %v3367, %v3368
    %v3370 = vrot.slane %v3369, 1
    %v3371 = vmax.f32 %v3369, %v3370
    %v3372 = vsel %vm3014, %v2898, -inf
    %v3373 = vrot.slane %v3372, 4
    %v3374 = vmax.f32 %v3372, %v3373
    %v3375 = vrot.slane %v3374, 2
    %v3376 = vmax.f32 %v3374, %v3375
    %v3377 = vrot.slane %v3376, 1
    %v3378 = vmax.f32 %v3376, %v3377
    %v3379 = vsel %vm3014, %v2906, -inf
    %v3380 = vrot.slane %v3379, 4
    %v3381 = vmax.f32 %v3379, %v3380
    %v3382 = vrot.slane %v3381, 2
    %v3383 = vmax.f32 %v3381, %v3382
    %v3384 = vrot.slane %v3383, 1
    %v3385 = vmax.f32 %v3383, %v3384
    %v3386 = vsel %vm3014, %v2914, -inf
    %v3387 = vrot.slane %v3386, 4
    %v3388 = vmax.f32 %v3386, %v3387
    %v3389 = vrot.slane %v3388, 2
    %v3390 = vmax.f32 %v3388, %v3389
    %v3391 = vrot.slane %v3390, 1
    %v3392 = vmax.f32 %v3390, %v3391
    %v3393 = vsel %vm3014, %v2913, -inf
    %v3394 = vrot.slane %v3393, 4
    %v3395 = vmax.f32 %v3393, %v3394
    %v3396 = vrot.slane %v3395, 2
    %v3397 = vmax.f32 %v3395, %v3396
    %v3398 = vrot.slane %v3397, 1
    %v3399 = vmax.f32 %v3397, %v3398
    %v3400 = vsel %vm3014, %v2915, -inf
    %v3401 = vrot.slane %v3400, 4
    %v3402 = vmax.f32 %v3400, %v3401
    %v3403 = vrot.slane %v3402, 2
    %v3404 = vmax.f32 %v3402, %v3403
    %v3405 = vrot.slane %v3404, 1
    %v3406 = vmax.f32 %v3404, %v3405
    %v3407 = vsel %vm3014, %v2923, -inf
    %v3408 = vrot.slane %v3407, 4
    %v3409 = vmax.f32 %v3407, %v3408
    %v3410 = vrot.slane %v3409, 2
    %v3411 = vmax.f32 %v3409, %v3410
    %v3412 = vrot.slane %v3411, 1
    %v3413 = vmax.f32 %v3411, %v3412
    %v3414 = vsel %vm3014, %v2931, -inf
    %v3415 = vrot.slane %v3414, 4
    %v3416 = vmax.f32 %v3414, %v3415
    %v3417 = vrot.slane %v3416, 2
    %v3418 = vmax.f32 %v3416, %v3417
    %v3419 = vrot.slane %v3418, 1
    %v3420 = vmax.f32 %v3418, %v3419
    %v3421 = vsel %vm3014, %v2930, -inf
    %v3422 = vrot.slane %v3421, 4
    %v3423 = vmax.f32 %v3421, %v3422
    %v3424 = vrot.slane %v3423, 2
    %v3425 = vmax.f32 %v3423, %v3424
    %v3426 = vrot.slane %v3425, 1
    %v3427 = vmax.f32 %v3425, %v3426
    %v3428 = vsel %vm3014, %v2932, -inf
    %v3429 = vrot.slane %v3428, 4
    %v3430 = vmax.f32 %v3428, %v3429
    %v3431 = vrot.slane %v3430, 2
    %v3432 = vmax.f32 %v3430, %v3431
    %v3433 = vrot.slane %v3432, 1
    %v3434 = vmax.f32 %v3432, %v3433
    %v3435 = vsel %vm3014, %v2940, -inf
    %v3436 = vrot.slane %v3435, 4
    %v3437 = vmax.f32 %v3435, %v3436
    %v3438 = vrot.slane %v3437, 2
    %v3439 = vmax.f32 %v3437, %v3438
    %v3440 = vrot.slane %v3439, 1
    %v3441 = vmax.f32 %v3439, %v3440
    %v3442 = vsel %vm3014, %v2948, -inf
    %v3443 = vrot.slane %v3442, 4
    %v3444 = vmax.f32 %v3442, %v3443
    %v3445 = vrot.slane %v3444, 2
    %v3446 = vmax.f32 %v3444, %v3445
    %v3447 = vrot.slane %v3446, 1
    %v3448 = vmax.f32 %v3446, %v3447
    %v3449 = vsel %vm3014, %v2947, -inf
    %v3450 = vrot.slane %v3449, 4
    %v3451 = vmax.f32 %v3449, %v3450
    %v3452 = vrot.slane %v3451, 2
    %v3453 = vmax.f32 %v3451, %v3452
    %v3454 = vrot.slane %v3453, 1
    %v3455 = vmax.f32 %v3453, %v3454
    %v3456 = vsel %vm3014, %v2949, -inf
    %v3457 = vrot.slane %v3456, 4
    %v3458 = vmax.f32 %v3456, %v3457
    %v3459 = vrot.slane %v3458, 2
    %v3460 = vmax.f32 %v3458, %v3459
    %v3461 = vrot.slane %v3460, 1
    %v3462 = vmax.f32 %v3460, %v3461
    %v3463 = vmax.f32 %v3021, %v3049
    %v3464 = vmax.f32 %v3028, %v3056
    %v3465 = vmax.f32 %v3035, %v3063
    %v3466 = vmax.f32 %v3042, %v3070
    %v3467 = vmax.f32 %v3077, %v3105
    %v3468 = vmax.f32 %v3084, %v3112
    %v3469 = vmax.f32 %v3091, %v3119
    %v3470 = vmax.f32 %v3098, %v3126
    %v3471 = vmax.f32 %v3133, %v3161
    %v3472 = vmax.f32 %v3140, %v3168
    %v3473 = vmax.f32 %v3147, %v3175
    %v3474 = vmax.f32 %v3154, %v3182
    %v3475 = vmax.f32 %v3189, %v3217
    %v3476 = vmax.f32 %v3196, %v3224
    %v3477 = vmax.f32 %v3203, %v3231
    %v3478 = vmax.f32 %v3210, %v3238
    %v3479 = vmax.f32 %v3245, %v3273
    %v3480 = vmax.f32 %v3252, %v3280
    %v3481 = vmax.f32 %v3259, %v3287
    %v3482 = vmax.f32 %v3266, %v3294
    %v3483 = vmax.f32 %v3301, %v3329
    %v3484 = vmax.f32 %v3308, %v3336
    %v3485 = vmax.f32 %v3315, %v3343
    %v3486 = vmax.f32 %v3322, %v3350
    %v3487 = vmax.f32 %v3357, %v3385
    %v3488 = vmax.f32 %v3364, %v3392
    %v3489 = vmax.f32 %v3371, %v3399
    %v3490 = vmax.f32 %v3378, %v3406
    %v3491 = vmax.f32 %v3413, %v3441
    %v3492 = vmax.f32 %v3420, %v3448
    %v3493 = vmax.f32 %v3427, %v3455
    %v3494 = vmax.f32 %v3434, %v3462
    %vm3527 = vcmask 1041409
    %v3528 = vsel %vm3527, %v3464, %v3463
    %vm3529 = vcmask 1042434
    %v3530 = vsel %vm3529, %v3465, %v3528
    %vm3531 = vcmask 1043459
    %v3532 = vsel %vm3531, %v3466, %v3530
    %v3533 = vsel %vm3527, %v3468, %v3467
    %v3534 = vsel %vm3529, %v3469, %v3533
    %v3535 = vsel %vm3531, %v3470, %v3534
    %v3536 = vsel %vm3527, %v3472, %v3471
    %v3537 = vsel %vm3529, %v3473, %v3536
    %v3538 = vsel %vm3531, %v3474, %v3537
    %v3539 = vsel %vm3527, %v3476, %v3475
    %v3540 = vsel %vm3529, %v3477, %v3539
    %v3541 = vsel %vm3531, %v3478, %v3540
    %v3542 = vsel %vm3527, %v3480, %v3479
    %v3543 = vsel %vm3529, %v3481, %v3542
    %v3544 = vsel %vm3531, %v3482, %v3543
    %v3545 = vsel %vm3527, %v3484, %v3483
    %v3546 = vsel %vm3529, %v3485, %v3545
    %v3547 = vsel %vm3531, %v3486, %v3546
    %v3548 = vsel %vm3527, %v3488, %v3487
    %v3549 = vsel %vm3529, %v3489, %v3548
    %v3550 = vsel %vm3531, %v3490, %v3549
    %v3551 = vsel %vm3527, %v3492, %v3491
    %v3552 = vsel %vm3529, %v3493, %v3551
    %v3553 = vsel %vm3531, %v3494, %v3552
    %vm3562 = vcmask 1040384
    %v3563 = vsel %vm3562, %v3532, 0.0
    %v3564 = vrot.slane %v3544, 7
    %v3565 = vsel %vm3527, %v3564, %v3563
    %v3566 = vrot.slane %v3532, 1
    %v3567 = vsel %vm3562, %v3566, 0.0
    %v3568 = vsel %vm3527, %v3544, %v3567
    %v3569 = vrot.slane %v3532, 2
    %v3570 = vsel %vm3562, %v3569, 0.0
    %v3571 = vrot.slane %v3544, 1
    %v3572 = vsel %vm3527, %v3571, %v3570
    %v3573 = vrot.slane %v3532, 3
    %v3574 = vsel %vm3562, %v3573, 0.0
    %v3575 = vrot.slane %v3544, 2
    %v3576 = vsel %vm3527, %v3575, %v3574
    %v3577 = vsel %vm3562, %v3535, 0.0
    %v3578 = vrot.slane %v3547, 7
    %v3579 = vsel %vm3527, %v3578, %v3577
    %v3580 = vrot.slane %v3535, 1
    %v3581 = vsel %vm3562, %v3580, 0.0
    %v3582 = vsel %vm3527, %v3547, %v3581
    %v3583 = vrot.slane %v3535, 2
    %v3584 = vsel %vm3562, %v3583, 0.0
    %v3585 = vrot.slane %v3547, 1
    %v3586 = vsel %vm3527, %v3585, %v3584
    %v3587 = vrot.slane %v3535, 3
    %v3588 = vsel %vm3562, %v3587, 0.0
    %v3589 = vrot.slane %v3547, 2
    %v3590 = vsel %vm3527, %v3589, %v3588
    %v3591 = vsel %vm3562, %v3538, 0.0
    %v3592 = vrot.slane %v3550, 7
    %v3593 = vsel %vm3527, %v3592, %v3591
    %v3594 = vrot.slane %v3538, 1
    %v3595 = vsel %vm3562, %v3594, 0.0
    %v3596 = vsel %vm3527, %v3550, %v3595
    %v3597 = vrot.slane %v3538, 2
    %v3598 = vsel %vm3562, %v3597, 0.0
    %v3599 = vrot.slane %v3550, 1
    %v3600 = vsel %vm3527, %v3599, %v3598
    %v3601 = vrot.slane %v3538, 3
    %v3602 = vsel %vm3562, %v3601, 0.0
    %v3603 = vrot.slane %v3550, 2
    %v3604 = vsel %vm3527, %v3603, %v3602
    %v3605 = vsel %vm3562, %v3541, 0.0
    %v3606 = vrot.slane %v3553, 7
    %v3607 = vsel %vm3527, %v3606, %v3605
    %v3608 = vrot.slane %v3541, 1
    %v3609 = vsel %vm3562, %v3608, 0.0
    %v3610 = vsel %vm3527, %v3553, %v3609
    %v3611 = vrot.slane %v3541, 2
    %v3612 = vsel %vm3562, %v3611, 0.0
    %v3613 = vrot.slane %v3553, 1
    %v3614 = vsel %vm3527, %v3613, %v3612
    %v3615 = vrot.slane %v3541, 3
    %v3616 = vsel %vm3562, %v3615, 0.0
    %v3617 = vrot.slane %v3553, 2
    %v3618 = vsel %vm3527, %v3617, %v3616
    %v3619 = vpack.c.bf16 %v3565, %v3565
    %v3620 = vpack.c.bf16 %v3568, %v3568
    %v3621 = vpack.c.bf16 %v3572, %v3572
    %v3622 = vpack.c.bf16 %v3576, %v3576
    %v3623 = vpack.c.bf16 %v3579, %v3579
    %v3624 = vpack.c.bf16 %v3582, %v3582
    %v3625 = vpack.c.bf16 %v3586, %v3586
    %v3626 = vpack.c.bf16 %v3590, %v3590
    %v3627 = vpack.c.bf16 %v3593, %v3593
    %v3628 = vpack.c.bf16 %v3596, %v3596
    %v3629 = vpack.c.bf16 %v3600, %v3600
    %v3630 = vpack.c.bf16 %v3604, %v3604
    %v3631 = vpack.c.bf16 %v3607, %v3607
    %v3632 = vpack.c.bf16 %v3610, %v3610
    %v3633 = vpack.c.bf16 %v3614, %v3614
    %v3634 = vpack.c.bf16 %v3618, %v3618
    %s3635 = smul.u32 4, 256
    %s3636 = smul.u32 %s3635, 1
    %s3637 = sshll.u32 %s3636, 4
    %3638 = dma.done [#allocation3], %s3637
    %v3639 = vld [vmem:[#allocation2] sm:$0xf]
    %v3640 = vld [vmem:[#allocation2 + $0x4] sm:$0xf]
    %v3641 = vld [vmem:[#allocation2 + $0x8] sm:$0xf]
    %v3642 = vld [vmem:[#allocation2 + $0xc] sm:$0xf]
    %v3643 = vld [vmem:[#allocation2 + $0x10] sm:$0xf]
    %v3644 = vld [vmem:[#allocation2 + $0x14] sm:$0xf]
    %v3645 = vld [vmem:[#allocation2 + $0x18] sm:$0xf]
    %v3646 = vld [vmem:[#allocation2 + $0x1c] sm:$0xf]
    %v3647 = vld [vmem:[#allocation2 + $0x20] sm:$0xf]
    %v3648 = vld [vmem:[#allocation2 + $0x24] sm:$0xf]
    %v3649 = vld [vmem:[#allocation2 + $0x28] sm:$0xf]
    %v3650 = vld [vmem:[#allocation2 + $0x2c] sm:$0xf]
    %v3651 = vld [vmem:[#allocation2 + $0x30] sm:$0xf]
    %v3652 = vld [vmem:[#allocation2 + $0x34] sm:$0xf]
    %v3653 = vld [vmem:[#allocation2 + $0x38] sm:$0xf]
    %v3654 = vld [vmem:[#allocation2 + $0x3c] sm:$0xf]
    %v3655 = vld [vmem:[#allocation2 + $0x40] sm:$0xf]
    %v3656 = vld [vmem:[#allocation2 + $0x44] sm:$0xf]
    %v3657 = vld [vmem:[#allocation2 + $0x48] sm:$0xf]
    %v3658 = vld [vmem:[#allocation2 + $0x4c] sm:$0xf]
    %v3659 = vld [vmem:[#allocation2 + $0x50] sm:$0xf]
    %v3660 = vld [vmem:[#allocation2 + $0x54] sm:$0xf]
    %v3661 = vld [vmem:[#allocation2 + $0x58] sm:$0xf]
    %v3662 = vld [vmem:[#allocation2 + $0x5c] sm:$0xf]
    %v3663 = vld [vmem:[#allocation2 + $0x60] sm:$0xf]
    %v3664 = vld [vmem:[#allocation2 + $0x64] sm:$0xf]
    %v3665 = vld [vmem:[#allocation2 + $0x68] sm:$0xf]
    %v3666 = vld [vmem:[#allocation2 + $0x6c] sm:$0xf]
    %v3667 = vld [vmem:[#allocation2 + $0x70] sm:$0xf]
    %v3668 = vld [vmem:[#allocation2 + $0x74] sm:$0xf]
    %v3669 = vld [vmem:[#allocation2 + $0x78] sm:$0xf]
    %v3670 = vld [vmem:[#allocation2 + $0x7c] sm:$0xf]
    %v3671 = vld [vmem:[#allocation2 + $0x80] sm:$0xf]
    %v3672 = vld [vmem:[#allocation2 + $0x84] sm:$0xf]
    %v3673 = vld [vmem:[#allocation2 + $0x88] sm:$0xf]
    %v3674 = vld [vmem:[#allocation2 + $0x8c] sm:$0xf]
    %v3675 = vld [vmem:[#allocation2 + $0x90] sm:$0xf]
    %v3676 = vld [vmem:[#allocation2 + $0x94] sm:$0xf]
    %v3677 = vld [vmem:[#allocation2 + $0x98] sm:$0xf]
    %v3678 = vld [vmem:[#allocation2 + $0x9c] sm:$0xf]
    %v3679 = vld [vmem:[#allocation2 + $0xa0] sm:$0xf]
    %v3680 = vld [vmem:[#allocation2 + $0xa4] sm:$0xf]
    %v3681 = vld [vmem:[#allocation2 + $0xa8] sm:$0xf]
    %v3682 = vld [vmem:[#allocation2 + $0xac] sm:$0xf]
    %v3683 = vld [vmem:[#allocation2 + $0xb0] sm:$0xf]
    %v3684 = vld [vmem:[#allocation2 + $0xb4] sm:$0xf]
    %v3685 = vld [vmem:[#allocation2 + $0xb8] sm:$0xf]
    %v3686 = vld [vmem:[#allocation2 + $0xbc] sm:$0xf]
    %v3687 = vld [vmem:[#allocation2 + $0xc0] sm:$0xf]
    %v3688 = vld [vmem:[#allocation2 + $0xc4] sm:$0xf]
    %v3689 = vld [vmem:[#allocation2 + $0xc8] sm:$0xf]
    %v3690 = vld [vmem:[#allocation2 + $0xcc] sm:$0xf]
    %v3691 = vld [vmem:[#allocation2 + $0xd0] sm:$0xf]
    %v3692 = vld [vmem:[#allocation2 + $0xd4] sm:$0xf]
    %v3693 = vld [vmem:[#allocation2 + $0xd8] sm:$0xf]
    %v3694 = vld [vmem:[#allocation2 + $0xdc] sm:$0xf]
    %v3695 = vld [vmem:[#allocation2 + $0xe0] sm:$0xf]
    %v3696 = vld [vmem:[#allocation2 + $0xe4] sm:$0xf]
    %v3697 = vld [vmem:[#allocation2 + $0xe8] sm:$0xf]
    %v3698 = vld [vmem:[#allocation2 + $0xec] sm:$0xf]
    %v3699 = vld [vmem:[#allocation2 + $0xf0] sm:$0xf]
    %v3700 = vld [vmem:[#allocation2 + $0xf4] sm:$0xf]
    %v3701 = vld [vmem:[#allocation2 + $0xf8] sm:$0xf]
    %v3702 = vld [vmem:[#allocation2 + $0xfc] sm:$0xf]
    %v3703 = vld [vmem:[#allocation2 + $0x100] sm:$0xf]
    %v3704 = vld [vmem:[#allocation2 + $0x104] sm:$0xf]
    %v3705 = vld [vmem:[#allocation2 + $0x108] sm:$0xf]
    %v3706 = vld [vmem:[#allocation2 + $0x10c] sm:$0xf]
    %v3707 = vld [vmem:[#allocation2 + $0x110] sm:$0xf]
    %v3708 = vld [vmem:[#allocation2 + $0x114] sm:$0xf]
    %v3709 = vld [vmem:[#allocation2 + $0x118] sm:$0xf]
    %v3710 = vld [vmem:[#allocation2 + $0x11c] sm:$0xf]
    %v3711 = vld [vmem:[#allocation2 + $0x120] sm:$0xf]
    %v3712 = vld [vmem:[#allocation2 + $0x124] sm:$0xf]
    %v3713 = vld [vmem:[#allocation2 + $0x128] sm:$0xf]
    %v3714 = vld [vmem:[#allocation2 + $0x12c] sm:$0xf]
    %v3715 = vld [vmem:[#allocation2 + $0x130] sm:$0xf]
    %v3716 = vld [vmem:[#allocation2 + $0x134] sm:$0xf]
    %v3717 = vld [vmem:[#allocation2 + $0x138] sm:$0xf]
    %v3718 = vld [vmem:[#allocation2 + $0x13c] sm:$0xf]
    %v3719 = vld [vmem:[#allocation2 + $0x140] sm:$0xf]
    %v3720 = vld [vmem:[#allocation2 + $0x144] sm:$0xf]
    %v3721 = vld [vmem:[#allocation2 + $0x148] sm:$0xf]
    %v3722 = vld [vmem:[#allocation2 + $0x14c] sm:$0xf]
    %v3723 = vld [vmem:[#allocation2 + $0x150] sm:$0xf]
    %v3724 = vld [vmem:[#allocation2 + $0x154] sm:$0xf]
    %v3725 = vld [vmem:[#allocation2 + $0x158] sm:$0xf]
    %v3726 = vld [vmem:[#allocation2 + $0x15c] sm:$0xf]
    %v3727 = vld [vmem:[#allocation2 + $0x160] sm:$0xf]
    %v3728 = vld [vmem:[#allocation2 + $0x164] sm:$0xf]
    %v3729 = vld [vmem:[#allocation2 + $0x168] sm:$0xf]
    %v3730 = vld [vmem:[#allocation2 + $0x16c] sm:$0xf]
    %v3731 = vld [vmem:[#allocation2 + $0x170] sm:$0xf]
    %v3732 = vld [vmem:[#allocation2 + $0x174] sm:$0xf]
    %v3733 = vld [vmem:[#allocation2 + $0x178] sm:$0xf]
    %v3734 = vld [vmem:[#allocation2 + $0x17c] sm:$0xf]
    %v3735 = vld [vmem:[#allocation2 + $0x180] sm:$0xf]
    %v3736 = vld [vmem:[#allocation2 + $0x184] sm:$0xf]
    %v3737 = vld [vmem:[#allocation2 + $0x188] sm:$0xf]
    %v3738 = vld [vmem:[#allocation2 + $0x18c] sm:$0xf]
    %v3739 = vld [vmem:[#allocation2 + $0x190] sm:$0xf]
    %v3740 = vld [vmem:[#allocation2 + $0x194] sm:$0xf]
    %v3741 = vld [vmem:[#allocation2 + $0x198] sm:$0xf]
    %v3742 = vld [vmem:[#allocation2 + $0x19c] sm:$0xf]
    %v3743 = vld [vmem:[#allocation2 + $0x1a0] sm:$0xf]
    %v3744 = vld [vmem:[#allocation2 + $0x1a4] sm:$0xf]
    %v3745 = vld [vmem:[#allocation2 + $0x1a8] sm:$0xf]
    %v3746 = vld [vmem:[#allocation2 + $0x1ac] sm:$0xf]
    %v3747 = vld [vmem:[#allocation2 + $0x1b0] sm:$0xf]
    %v3748 = vld [vmem:[#allocation2 + $0x1b4] sm:$0xf]
    %v3749 = vld [vmem:[#allocation2 + $0x1b8] sm:$0xf]
    %v3750 = vld [vmem:[#allocation2 + $0x1bc] sm:$0xf]
    %v3751 = vld [vmem:[#allocation2 + $0x1c0] sm:$0xf]
    %v3752 = vld [vmem:[#allocation2 + $0x1c4] sm:$0xf]
    %v3753 = vld [vmem:[#allocation2 + $0x1c8] sm:$0xf]
    %v3754 = vld [vmem:[#allocation2 + $0x1cc] sm:$0xf]
    %v3755 = vld [vmem:[#allocation2 + $0x1d0] sm:$0xf]
    %v3756 = vld [vmem:[#allocation2 + $0x1d4] sm:$0xf]
    %v3757 = vld [vmem:[#allocation2 + $0x1d8] sm:$0xf]
    %v3758 = vld [vmem:[#allocation2 + $0x1dc] sm:$0xf]
    %v3759 = vld [vmem:[#allocation2 + $0x1e0] sm:$0xf]
    %v3760 = vld [vmem:[#allocation2 + $0x1e4] sm:$0xf]
    %v3761 = vld [vmem:[#allocation2 + $0x1e8] sm:$0xf]
    %v3762 = vld [vmem:[#allocation2 + $0x1ec] sm:$0xf]
    %v3763 = vld [vmem:[#allocation2 + $0x1f0] sm:$0xf]
    %v3764 = vld [vmem:[#allocation2 + $0x1f4] sm:$0xf]
    %v3765 = vld [vmem:[#allocation2 + $0x1f8] sm:$0xf]
    %v3766 = vld [vmem:[#allocation2 + $0x1fc] sm:$0xf]
    %v3767 = vld [vmem:[#allocation2 + $0x200] sm:$0xf]
    %v3768 = vld [vmem:[#allocation2 + $0x204] sm:$0xf]
    %v3769 = vld [vmem:[#allocation2 + $0x208] sm:$0xf]
    %v3770 = vld [vmem:[#allocation2 + $0x20c] sm:$0xf]
    %v3771 = vld [vmem:[#allocation2 + $0x210] sm:$0xf]
    %v3772 = vld [vmem:[#allocation2 + $0x214] sm:$0xf]
    %v3773 = vld [vmem:[#allocation2 + $0x218] sm:$0xf]
    %v3774 = vld [vmem:[#allocation2 + $0x21c] sm:$0xf]
    %v3775 = vld [vmem:[#allocation2 + $0x220] sm:$0xf]
    %v3776 = vld [vmem:[#allocation2 + $0x224] sm:$0xf]
    %v3777 = vld [vmem:[#allocation2 + $0x228] sm:$0xf]
    %v3778 = vld [vmem:[#allocation2 + $0x22c] sm:$0xf]
    %v3779 = vld [vmem:[#allocation2 + $0x230] sm:$0xf]
    %v3780 = vld [vmem:[#allocation2 + $0x234] sm:$0xf]
    %v3781 = vld [vmem:[#allocation2 + $0x238] sm:$0xf]
    %v3782 = vld [vmem:[#allocation2 + $0x23c] sm:$0xf]
    %v3783 = vld [vmem:[#allocation2 + $0x240] sm:$0xf]
    %v3784 = vld [vmem:[#allocation2 + $0x244] sm:$0xf]
    %v3785 = vld [vmem:[#allocation2 + $0x248] sm:$0xf]
    %v3786 = vld [vmem:[#allocation2 + $0x24c] sm:$0xf]
    %v3787 = vld [vmem:[#allocation2 + $0x250] sm:$0xf]
    %v3788 = vld [vmem:[#allocation2 + $0x254] sm:$0xf]
    %v3789 = vld [vmem:[#allocation2 + $0x258] sm:$0xf]
    %v3790 = vld [vmem:[#allocation2 + $0x25c] sm:$0xf]
    %v3791 = vld [vmem:[#allocation2 + $0x260] sm:$0xf]
    %v3792 = vld [vmem:[#allocation2 + $0x264] sm:$0xf]
    %v3793 = vld [vmem:[#allocation2 + $0x268] sm:$0xf]
    %v3794 = vld [vmem:[#allocation2 + $0x26c] sm:$0xf]
    %v3795 = vld [vmem:[#allocation2 + $0x270] sm:$0xf]
    %v3796 = vld [vmem:[#allocation2 + $0x274] sm:$0xf]
    %v3797 = vld [vmem:[#allocation2 + $0x278] sm:$0xf]
    %v3798 = vld [vmem:[#allocation2 + $0x27c] sm:$0xf]
    %v3799 = vld [vmem:[#allocation2 + $0x280] sm:$0xf]
    %v3800 = vld [vmem:[#allocation2 + $0x284] sm:$0xf]
    %v3801 = vld [vmem:[#allocation2 + $0x288] sm:$0xf]
    %v3802 = vld [vmem:[#allocation2 + $0x28c] sm:$0xf]
    %v3803 = vld [vmem:[#allocation2 + $0x290] sm:$0xf]
    %v3804 = vld [vmem:[#allocation2 + $0x294] sm:$0xf]
    %v3805 = vld [vmem:[#allocation2 + $0x298] sm:$0xf]
    %v3806 = vld [vmem:[#allocation2 + $0x29c] sm:$0xf]
    %v3807 = vld [vmem:[#allocation2 + $0x2a0] sm:$0xf]
    %v3808 = vld [vmem:[#allocation2 + $0x2a4] sm:$0xf]
    %v3809 = vld [vmem:[#allocation2 + $0x2a8] sm:$0xf]
    %v3810 = vld [vmem:[#allocation2 + $0x2ac] sm:$0xf]
    %v3811 = vld [vmem:[#allocation2 + $0x2b0] sm:$0xf]
    %v3812 = vld [vmem:[#allocation2 + $0x2b4] sm:$0xf]
    %v3813 = vld [vmem:[#allocation2 + $0x2b8] sm:$0xf]
    %v3814 = vld [vmem:[#allocation2 + $0x2bc] sm:$0xf]
    %v3815 = vld [vmem:[#allocation2 + $0x2c0] sm:$0xf]
    %v3816 = vld [vmem:[#allocation2 + $0x2c4] sm:$0xf]
    %v3817 = vld [vmem:[#allocation2 + $0x2c8] sm:$0xf]
    %v3818 = vld [vmem:[#allocation2 + $0x2cc] sm:$0xf]
    %v3819 = vld [vmem:[#allocation2 + $0x2d0] sm:$0xf]
    %v3820 = vld [vmem:[#allocation2 + $0x2d4] sm:$0xf]
    %v3821 = vld [vmem:[#allocation2 + $0x2d8] sm:$0xf]
    %v3822 = vld [vmem:[#allocation2 + $0x2dc] sm:$0xf]
    %v3823 = vld [vmem:[#allocation2 + $0x2e0] sm:$0xf]
    %v3824 = vld [vmem:[#allocation2 + $0x2e4] sm:$0xf]
    %v3825 = vld [vmem:[#allocation2 + $0x2e8] sm:$0xf]
    %v3826 = vld [vmem:[#allocation2 + $0x2ec] sm:$0xf]
    %v3827 = vld [vmem:[#allocation2 + $0x2f0] sm:$0xf]
    %v3828 = vld [vmem:[#allocation2 + $0x2f4] sm:$0xf]
    %v3829 = vld [vmem:[#allocation2 + $0x2f8] sm:$0xf]
    %v3830 = vld [vmem:[#allocation2 + $0x2fc] sm:$0xf]
    %v3831 = vld [vmem:[#allocation2 + $0x300] sm:$0xf]
    %v3832 = vld [vmem:[#allocation2 + $0x304] sm:$0xf]
    %v3833 = vld [vmem:[#allocation2 + $0x308] sm:$0xf]
    %v3834 = vld [vmem:[#allocation2 + $0x30c] sm:$0xf]
    %v3835 = vld [vmem:[#allocation2 + $0x310] sm:$0xf]
    %v3836 = vld [vmem:[#allocation2 + $0x314] sm:$0xf]
    %v3837 = vld [vmem:[#allocation2 + $0x318] sm:$0xf]
    %v3838 = vld [vmem:[#allocation2 + $0x31c] sm:$0xf]
    %v3839 = vld [vmem:[#allocation2 + $0x320] sm:$0xf]
    %v3840 = vld [vmem:[#allocation2 + $0x324] sm:$0xf]
    %v3841 = vld [vmem:[#allocation2 + $0x328] sm:$0xf]
    %v3842 = vld [vmem:[#allocation2 + $0x32c] sm:$0xf]
    %v3843 = vld [vmem:[#allocation2 + $0x330] sm:$0xf]
    %v3844 = vld [vmem:[#allocation2 + $0x334] sm:$0xf]
    %v3845 = vld [vmem:[#allocation2 + $0x338] sm:$0xf]
    %v3846 = vld [vmem:[#allocation2 + $0x33c] sm:$0xf]
    %v3847 = vld [vmem:[#allocation2 + $0x340] sm:$0xf]
    %v3848 = vld [vmem:[#allocation2 + $0x344] sm:$0xf]
    %v3849 = vld [vmem:[#allocation2 + $0x348] sm:$0xf]
    %v3850 = vld [vmem:[#allocation2 + $0x34c] sm:$0xf]
    %v3851 = vld [vmem:[#allocation2 + $0x350] sm:$0xf]
    %v3852 = vld [vmem:[#allocation2 + $0x354] sm:$0xf]
    %v3853 = vld [vmem:[#allocation2 + $0x358] sm:$0xf]
    %v3854 = vld [vmem:[#allocation2 + $0x35c] sm:$0xf]
    %v3855 = vld [vmem:[#allocation2 + $0x360] sm:$0xf]
    %v3856 = vld [vmem:[#allocation2 + $0x364] sm:$0xf]
    %v3857 = vld [vmem:[#allocation2 + $0x368] sm:$0xf]
    %v3858 = vld [vmem:[#allocation2 + $0x36c] sm:$0xf]
    %v3859 = vld [vmem:[#allocation2 + $0x370] sm:$0xf]
    %v3860 = vld [vmem:[#allocation2 + $0x374] sm:$0xf]
    %v3861 = vld [vmem:[#allocation2 + $0x378] sm:$0xf]
    %v3862 = vld [vmem:[#allocation2 + $0x37c] sm:$0xf]
    %v3863 = vld [vmem:[#allocation2 + $0x380] sm:$0xf]
    %v3864 = vld [vmem:[#allocation2 + $0x384] sm:$0xf]
    %v3865 = vld [vmem:[#allocation2 + $0x388] sm:$0xf]
    %v3866 = vld [vmem:[#allocation2 + $0x38c] sm:$0xf]
    %v3867 = vld [vmem:[#allocation2 + $0x390] sm:$0xf]
    %v3868 = vld [vmem:[#allocation2 + $0x394] sm:$0xf]
    %v3869 = vld [vmem:[#allocation2 + $0x398] sm:$0xf]
    %v3870 = vld [vmem:[#allocation2 + $0x39c] sm:$0xf]
    %v3871 = vld [vmem:[#allocation2 + $0x3a0] sm:$0xf]
    %v3872 = vld [vmem:[#allocation2 + $0x3a4] sm:$0xf]
    %v3873 = vld [vmem:[#allocation2 + $0x3a8] sm:$0xf]
    %v3874 = vld [vmem:[#allocation2 + $0x3ac] sm:$0xf]
    %v3875 = vld [vmem:[#allocation2 + $0x3b0] sm:$0xf]
    %v3876 = vld [vmem:[#allocation2 + $0x3b4] sm:$0xf]
    %v3877 = vld [vmem:[#allocation2 + $0x3b8] sm:$0xf]
    %v3878 = vld [vmem:[#allocation2 + $0x3bc] sm:$0xf]
    %v3879 = vld [vmem:[#allocation2 + $0x3c0] sm:$0xf]
    %v3880 = vld [vmem:[#allocation2 + $0x3c4] sm:$0xf]
    %v3881 = vld [vmem:[#allocation2 + $0x3c8] sm:$0xf]
    %v3882 = vld [vmem:[#allocation2 + $0x3cc] sm:$0xf]
    %v3883 = vld [vmem:[#allocation2 + $0x3d0] sm:$0xf]
    %v3884 = vld [vmem:[#allocation2 + $0x3d4] sm:$0xf]
    %v3885 = vld [vmem:[#allocation2 + $0x3d8] sm:$0xf]
    %v3886 = vld [vmem:[#allocation2 + $0x3dc] sm:$0xf]
    %v3887 = vld [vmem:[#allocation2 + $0x3e0] sm:$0xf]
    %v3888 = vld [vmem:[#allocation2 + $0x3e4] sm:$0xf]
    %v3889 = vld [vmem:[#allocation2 + $0x3e8] sm:$0xf]
    %v3890 = vld [vmem:[#allocation2 + $0x3ec] sm:$0xf]
    %v3891 = vld [vmem:[#allocation2 + $0x3f0] sm:$0xf]
    %v3892 = vld [vmem:[#allocation2 + $0x3f4] sm:$0xf]
    %v3893 = vld [vmem:[#allocation2 + $0x3f8] sm:$0xf]
    %v3894 = vld [vmem:[#allocation2 + $0x3fc] sm:$0xf]
    %v3895 = vld [vmem:[%s6] sm:$0x1]
    %v3897 = vlaneseq
    %v3898 = vshrl.u32 %v3897, 7
    %v3899 = vsub.s32 0, %v3898
    %v3900 = vrot.slane %v3895, %v3899
    %v4158 = vunpack.c.l.b16 %v3639
    %v4159 = vunpack.c.l.b16 %v3640
    %v4160 = vunpack.c.l.b16 %v3641
    %v4161 = vunpack.c.l.b16 %v3642
    %v4162 = vunpack.c.l.b16 %v3643
    %v4163 = vunpack.c.l.b16 %v3644
    %v4164 = vunpack.c.l.b16 %v3645
    %v4165 = vunpack.c.l.b16 %v3646
    %v4166 = vunpack.c.l.b16 %v3647
    %v4167 = vunpack.c.l.b16 %v3648
    %v4168 = vunpack.c.l.b16 %v3649
    %v4169 = vunpack.c.l.b16 %v3650
    %v4170 = vunpack.c.l.b16 %v3651
    %v4171 = vunpack.c.l.b16 %v3652
    %v4172 = vunpack.c.l.b16 %v3653
    %v4173 = vunpack.c.l.b16 %v3654
    %v4174 = vunpack.c.l.b16 %v3655
    %v4175 = vunpack.c.l.b16 %v3656
    %v4176 = vunpack.c.l.b16 %v3657
    %v4177 = vunpack.c.l.b16 %v3658
    %v4178 = vunpack.c.l.b16 %v3659
    %v4179 = vunpack.c.l.b16 %v3660
    %v4180 = vunpack.c.l.b16 %v3661
    %v4181 = vunpack.c.l.b16 %v3662
    %v4182 = vunpack.c.l.b16 %v3663
    %v4183 = vunpack.c.l.b16 %v3664
    %v4184 = vunpack.c.l.b16 %v3665
    %v4185 = vunpack.c.l.b16 %v3666
    %v4186 = vunpack.c.l.b16 %v3667
    %v4187 = vunpack.c.l.b16 %v3668
    %v4188 = vunpack.c.l.b16 %v3669
    %v4189 = vunpack.c.l.b16 %v3670
    %v4190 = vunpack.c.l.b16 %v3671
    %v4191 = vunpack.c.l.b16 %v3672
    %v4192 = vunpack.c.l.b16 %v3673
    %v4193 = vunpack.c.l.b16 %v3674
    %v4194 = vunpack.c.l.b16 %v3675
    %v4195 = vunpack.c.l.b16 %v3676
    %v4196 = vunpack.c.l.b16 %v3677
    %v4197 = vunpack.c.l.b16 %v3678
    %v4198 = vunpack.c.l.b16 %v3679
    %v4199 = vunpack.c.l.b16 %v3680
    %v4200 = vunpack.c.l.b16 %v3681
    %v4201 = vunpack.c.l.b16 %v3682
    %v4202 = vunpack.c.l.b16 %v3683
    %v4203 = vunpack.c.l.b16 %v3684
    %v4204 = vunpack.c.l.b16 %v3685
    %v4205 = vunpack.c.l.b16 %v3686
    %v4206 = vunpack.c.l.b16 %v3687
    %v4207 = vunpack.c.l.b16 %v3688
    %v4208 = vunpack.c.l.b16 %v3689
    %v4209 = vunpack.c.l.b16 %v3690
    %v4210 = vunpack.c.l.b16 %v3691
    %v4211 = vunpack.c.l.b16 %v3692
    %v4212 = vunpack.c.l.b16 %v3693
    %v4213 = vunpack.c.l.b16 %v3694
    %v4214 = vunpack.c.l.b16 %v3695
    %v4215 = vunpack.c.l.b16 %v3696
    %v4216 = vunpack.c.l.b16 %v3697
    %v4217 = vunpack.c.l.b16 %v3698
    %v4218 = vunpack.c.l.b16 %v3699
    %v4219 = vunpack.c.l.b16 %v3700
    %v4220 = vunpack.c.l.b16 %v3701
    %v4221 = vunpack.c.l.b16 %v3702
    %v4222 = vunpack.c.l.b16 %v3703
    %v4223 = vunpack.c.l.b16 %v3704
    %v4224 = vunpack.c.l.b16 %v3705
    %v4225 = vunpack.c.l.b16 %v3706
    %v4226 = vunpack.c.l.b16 %v3707
    %v4227 = vunpack.c.l.b16 %v3708
    %v4228 = vunpack.c.l.b16 %v3709
    %v4229 = vunpack.c.l.b16 %v3710
    %v4230 = vunpack.c.l.b16 %v3711
    %v4231 = vunpack.c.l.b16 %v3712
    %v4232 = vunpack.c.l.b16 %v3713
    %v4233 = vunpack.c.l.b16 %v3714
    %v4234 = vunpack.c.l.b16 %v3715
    %v4235 = vunpack.c.l.b16 %v3716
    %v4236 = vunpack.c.l.b16 %v3717
    %v4237 = vunpack.c.l.b16 %v3718
    %v4238 = vunpack.c.l.b16 %v3719
    %v4239 = vunpack.c.l.b16 %v3720
    %v4240 = vunpack.c.l.b16 %v3721
    %v4241 = vunpack.c.l.b16 %v3722
    %v4242 = vunpack.c.l.b16 %v3723
    %v4243 = vunpack.c.l.b16 %v3724
    %v4244 = vunpack.c.l.b16 %v3725
    %v4245 = vunpack.c.l.b16 %v3726
    %v4246 = vunpack.c.l.b16 %v3727
    %v4247 = vunpack.c.l.b16 %v3728
    %v4248 = vunpack.c.l.b16 %v3729
    %v4249 = vunpack.c.l.b16 %v3730
    %v4250 = vunpack.c.l.b16 %v3731
    %v4251 = vunpack.c.l.b16 %v3732
    %v4252 = vunpack.c.l.b16 %v3733
    %v4253 = vunpack.c.l.b16 %v3734
    %v4254 = vunpack.c.l.b16 %v3735
    %v4255 = vunpack.c.l.b16 %v3736
    %v4256 = vunpack.c.l.b16 %v3737
    %v4257 = vunpack.c.l.b16 %v3738
    %v4258 = vunpack.c.l.b16 %v3739
    %v4259 = vunpack.c.l.b16 %v3740
    %v4260 = vunpack.c.l.b16 %v3741
    %v4261 = vunpack.c.l.b16 %v3742
    %v4262 = vunpack.c.l.b16 %v3743
    %v4263 = vunpack.c.l.b16 %v3744
    %v4264 = vunpack.c.l.b16 %v3745
    %v4265 = vunpack.c.l.b16 %v3746
    %v4266 = vunpack.c.l.b16 %v3747
    %v4267 = vunpack.c.l.b16 %v3748
    %v4268 = vunpack.c.l.b16 %v3749
    %v4269 = vunpack.c.l.b16 %v3750
    %v4270 = vunpack.c.l.b16 %v3751
    %v4271 = vunpack.c.l.b16 %v3752
    %v4272 = vunpack.c.l.b16 %v3753
    %v4273 = vunpack.c.l.b16 %v3754
    %v4274 = vunpack.c.l.b16 %v3755
    %v4275 = vunpack.c.l.b16 %v3756
    %v4276 = vunpack.c.l.b16 %v3757
    %v4277 = vunpack.c.l.b16 %v3758
    %v4278 = vunpack.c.l.b16 %v3759
    %v4279 = vunpack.c.l.b16 %v3760
    %v4280 = vunpack.c.l.b16 %v3761
    %v4281 = vunpack.c.l.b16 %v3762
    %v4282 = vunpack.c.l.b16 %v3763
    %v4283 = vunpack.c.l.b16 %v3764
    %v4284 = vunpack.c.l.b16 %v3765
    %v4285 = vunpack.c.l.b16 %v3766
    %v4286 = vunpack.c.l.b16 %v3767
    %v4287 = vunpack.c.l.b16 %v3768
    %v4288 = vunpack.c.l.b16 %v3769
    %v4289 = vunpack.c.l.b16 %v3770
    %v4290 = vunpack.c.l.b16 %v3771
    %v4291 = vunpack.c.l.b16 %v3772
    %v4292 = vunpack.c.l.b16 %v3773
    %v4293 = vunpack.c.l.b16 %v3774
    %v4294 = vunpack.c.l.b16 %v3775
    %v4295 = vunpack.c.l.b16 %v3776
    %v4296 = vunpack.c.l.b16 %v3777
    %v4297 = vunpack.c.l.b16 %v3778
    %v4298 = vunpack.c.l.b16 %v3779
    %v4299 = vunpack.c.l.b16 %v3780
    %v4300 = vunpack.c.l.b16 %v3781
    %v4301 = vunpack.c.l.b16 %v3782
    %v4302 = vunpack.c.l.b16 %v3783
    %v4303 = vunpack.c.l.b16 %v3784
    %v4304 = vunpack.c.l.b16 %v3785
    %v4305 = vunpack.c.l.b16 %v3786
    %v4306 = vunpack.c.l.b16 %v3787
    %v4307 = vunpack.c.l.b16 %v3788
    %v4308 = vunpack.c.l.b16 %v3789
    %v4309 = vunpack.c.l.b16 %v3790
    %v4310 = vunpack.c.l.b16 %v3791
    %v4311 = vunpack.c.l.b16 %v3792
    %v4312 = vunpack.c.l.b16 %v3793
    %v4313 = vunpack.c.l.b16 %v3794
    %v4314 = vunpack.c.l.b16 %v3795
    %v4315 = vunpack.c.l.b16 %v3796
    %v4316 = vunpack.c.l.b16 %v3797
    %v4317 = vunpack.c.l.b16 %v3798
    %v4318 = vunpack.c.l.b16 %v3799
    %v4319 = vunpack.c.l.b16 %v3800
    %v4320 = vunpack.c.l.b16 %v3801
    %v4321 = vunpack.c.l.b16 %v3802
    %v4322 = vunpack.c.l.b16 %v3803
    %v4323 = vunpack.c.l.b16 %v3804
    %v4324 = vunpack.c.l.b16 %v3805
    %v4325 = vunpack.c.l.b16 %v3806
    %v4326 = vunpack.c.l.b16 %v3807
    %v4327 = vunpack.c.l.b16 %v3808
    %v4328 = vunpack.c.l.b16 %v3809
    %v4329 = vunpack.c.l.b16 %v3810
    %v4330 = vunpack.c.l.b16 %v3811
    %v4331 = vunpack.c.l.b16 %v3812
    %v4332 = vunpack.c.l.b16 %v3813
    %v4333 = vunpack.c.l.b16 %v3814
    %v4334 = vunpack.c.l.b16 %v3815
    %v4335 = vunpack.c.l.b16 %v3816
    %v4336 = vunpack.c.l.b16 %v3817
    %v4337 = vunpack.c.l.b16 %v3818
    %v4338 = vunpack.c.l.b16 %v3819
    %v4339 = vunpack.c.l.b16 %v3820
    %v4340 = vunpack.c.l.b16 %v3821
    %v4341 = vunpack.c.l.b16 %v3822
    %v4342 = vunpack.c.l.b16 %v3823
    %v4343 = vunpack.c.l.b16 %v3824
    %v4344 = vunpack.c.l.b16 %v3825
    %v4345 = vunpack.c.l.b16 %v3826
    %v4346 = vunpack.c.l.b16 %v3827
    %v4347 = vunpack.c.l.b16 %v3828
    %v4348 = vunpack.c.l.b16 %v3829
    %v4349 = vunpack.c.l.b16 %v3830
    %v4350 = vunpack.c.l.b16 %v3831
    %v4351 = vunpack.c.l.b16 %v3832
    %v4352 = vunpack.c.l.b16 %v3833
    %v4353 = vunpack.c.l.b16 %v3834
    %v4354 = vunpack.c.l.b16 %v3835
    %v4355 = vunpack.c.l.b16 %v3836
    %v4356 = vunpack.c.l.b16 %v3837
    %v4357 = vunpack.c.l.b16 %v3838
    %v4358 = vunpack.c.l.b16 %v3839
    %v4359 = vunpack.c.l.b16 %v3840
    %v4360 = vunpack.c.l.b16 %v3841
    %v4361 = vunpack.c.l.b16 %v3842
    %v4362 = vunpack.c.l.b16 %v3843
    %v4363 = vunpack.c.l.b16 %v3844
    %v4364 = vunpack.c.l.b16 %v3845
    %v4365 = vunpack.c.l.b16 %v3846
    %v4366 = vunpack.c.l.b16 %v3847
    %v4367 = vunpack.c.l.b16 %v3848
    %v4368 = vunpack.c.l.b16 %v3849
    %v4369 = vunpack.c.l.b16 %v3850
    %v4370 = vunpack.c.l.b16 %v3851
    %v4371 = vunpack.c.l.b16 %v3852
    %v4372 = vunpack.c.l.b16 %v3853
    %v4373 = vunpack.c.l.b16 %v3854
    %v4374 = vunpack.c.l.b16 %v3855
    %v4375 = vunpack.c.l.b16 %v3856
    %v4376 = vunpack.c.l.b16 %v3857
    %v4377 = vunpack.c.l.b16 %v3858
    %v4378 = vunpack.c.l.b16 %v3859
    %v4379 = vunpack.c.l.b16 %v3860
    %v4380 = vunpack.c.l.b16 %v3861
    %v4381 = vunpack.c.l.b16 %v3862
    %v4382 = vunpack.c.l.b16 %v3863
    %v4383 = vunpack.c.l.b16 %v3864
    %v4384 = vunpack.c.l.b16 %v3865
    %v4385 = vunpack.c.l.b16 %v3866
    %v4386 = vunpack.c.l.b16 %v3867
    %v4387 = vunpack.c.l.b16 %v3868
    %v4388 = vunpack.c.l.b16 %v3869
    %v4389 = vunpack.c.l.b16 %v3870
    %v4390 = vunpack.c.l.b16 %v3871
    %v4391 = vunpack.c.l.b16 %v3872
    %v4392 = vunpack.c.l.b16 %v3873
    %v4393 = vunpack.c.l.b16 %v3874
    %v4394 = vunpack.c.l.b16 %v3875
    %v4395 = vunpack.c.l.b16 %v3876
    %v4396 = vunpack.c.l.b16 %v3877
    %v4397 = vunpack.c.l.b16 %v3878
    %v4398 = vunpack.c.l.b16 %v3879
    %v4399 = vunpack.c.l.b16 %v3880
    %v4400 = vunpack.c.l.b16 %v3881
    %v4401 = vunpack.c.l.b16 %v3882
    %v4402 = vunpack.c.l.b16 %v3883
    %v4403 = vunpack.c.l.b16 %v3884
    %v4404 = vunpack.c.l.b16 %v3885
    %v4405 = vunpack.c.l.b16 %v3886
    %v4406 = vunpack.c.l.b16 %v3887
    %v4407 = vunpack.c.l.b16 %v3888
    %v4408 = vunpack.c.l.b16 %v3889
    %v4409 = vunpack.c.l.b16 %v3890
    %v4410 = vunpack.c.l.b16 %v3891
    %v4411 = vunpack.c.l.b16 %v3892
    %v4412 = vunpack.c.l.b16 %v3893
    %v4413 = vunpack.c.l.b16 %v3894
    %v4414 = vpack.c.b16 %v4159, %v4158
    %v4415 = vpack.c.b16 %v4161, %v4160
    %v4416 = vpack.c.b16 %v4163, %v4162
    %v4417 = vpack.c.b16 %v4165, %v4164
    %v4418 = vpack.c.b16 %v4167, %v4166
    %v4419 = vpack.c.b16 %v4169, %v4168
    %v4420 = vpack.c.b16 %v4171, %v4170
    %v4421 = vpack.c.b16 %v4173, %v4172
    %v4422 = vpack.c.b16 %v4175, %v4174
    %v4423 = vpack.c.b16 %v4177, %v4176
    %v4424 = vpack.c.b16 %v4179, %v4178
    %v4425 = vpack.c.b16 %v4181, %v4180
    %v4426 = vpack.c.b16 %v4183, %v4182
    %v4427 = vpack.c.b16 %v4185, %v4184
    %v4428 = vpack.c.b16 %v4187, %v4186
    %v4429 = vpack.c.b16 %v4189, %v4188
    %v4430 = vpack.c.b16 %v4191, %v4190
    %v4431 = vpack.c.b16 %v4193, %v4192
    %v4432 = vpack.c.b16 %v4195, %v4194
    %v4433 = vpack.c.b16 %v4197, %v4196
    %v4434 = vpack.c.b16 %v4199, %v4198
    %v4435 = vpack.c.b16 %v4201, %v4200
    %v4436 = vpack.c.b16 %v4203, %v4202
    %v4437 = vpack.c.b16 %v4205, %v4204
    %v4438 = vpack.c.b16 %v4207, %v4206
    %v4439 = vpack.c.b16 %v4209, %v4208
    %v4440 = vpack.c.b16 %v4211, %v4210
    %v4441 = vpack.c.b16 %v4213, %v4212
    %v4442 = vpack.c.b16 %v4215, %v4214
    %v4443 = vpack.c.b16 %v4217, %v4216
    %v4444 = vpack.c.b16 %v4219, %v4218
    %v4445 = vpack.c.b16 %v4221, %v4220
    %v4446 = vpack.c.b16 %v4223, %v4222
    %v4447 = vpack.c.b16 %v4225, %v4224
    %v4448 = vpack.c.b16 %v4227, %v4226
    %v4449 = vpack.c.b16 %v4229, %v4228
    %v4450 = vpack.c.b16 %v4231, %v4230
    %v4451 = vpack.c.b16 %v4233, %v4232
    %v4452 = vpack.c.b16 %v4235, %v4234
    %v4453 = vpack.c.b16 %v4237, %v4236
    %v4454 = vpack.c.b16 %v4239, %v4238
    %v4455 = vpack.c.b16 %v4241, %v4240
    %v4456 = vpack.c.b16 %v4243, %v4242
    %v4457 = vpack.c.b16 %v4245, %v4244
    %v4458 = vpack.c.b16 %v4247, %v4246
    %v4459 = vpack.c.b16 %v4249, %v4248
    %v4460 = vpack.c.b16 %v4251, %v4250
    %v4461 = vpack.c.b16 %v4253, %v4252
    %v4462 = vpack.c.b16 %v4255, %v4254
    %v4463 = vpack.c.b16 %v4257, %v4256
    %v4464 = vpack.c.b16 %v4259, %v4258
    %v4465 = vpack.c.b16 %v4261, %v4260
    %v4466 = vpack.c.b16 %v4263, %v4262
    %v4467 = vpack.c.b16 %v4265, %v4264
    %v4468 = vpack.c.b16 %v4267, %v4266
    %v4469 = vpack.c.b16 %v4269, %v4268
    %v4470 = vpack.c.b16 %v4271, %v4270
    %v4471 = vpack.c.b16 %v4273, %v4272
    %v4472 = vpack.c.b16 %v4275, %v4274
    %v4473 = vpack.c.b16 %v4277, %v4276
    %v4474 = vpack.c.b16 %v4279, %v4278
    %v4475 = vpack.c.b16 %v4281, %v4280
    %v4476 = vpack.c.b16 %v4283, %v4282
    %v4477 = vpack.c.b16 %v4285, %v4284
    %v4478 = vpack.c.b16 %v4287, %v4286
    %v4479 = vpack.c.b16 %v4289, %v4288
    %v4480 = vpack.c.b16 %v4291, %v4290
    %v4481 = vpack.c.b16 %v4293, %v4292
    %v4482 = vpack.c.b16 %v4295, %v4294
    %v4483 = vpack.c.b16 %v4297, %v4296
    %v4484 = vpack.c.b16 %v4299, %v4298
    %v4485 = vpack.c.b16 %v4301, %v4300
    %v4486 = vpack.c.b16 %v4303, %v4302
    %v4487 = vpack.c.b16 %v4305, %v4304
    %v4488 = vpack.c.b16 %v4307, %v4306
    %v4489 = vpack.c.b16 %v4309, %v4308
    %v4490 = vpack.c.b16 %v4311, %v4310
    %v4491 = vpack.c.b16 %v4313, %v4312
    %v4492 = vpack.c.b16 %v4315, %v4314
    %v4493 = vpack.c.b16 %v4317, %v4316
    %v4494 = vpack.c.b16 %v4319, %v4318
    %v4495 = vpack.c.b16 %v4321, %v4320
    %v4496 = vpack.c.b16 %v4323, %v4322
    %v4497 = vpack.c.b16 %v4325, %v4324
    %v4498 = vpack.c.b16 %v4327, %v4326
    %v4499 = vpack.c.b16 %v4329, %v4328
    %v4500 = vpack.c.b16 %v4331, %v4330
    %v4501 = vpack.c.b16 %v4333, %v4332
    %v4502 = vpack.c.b16 %v4335, %v4334
    %v4503 = vpack.c.b16 %v4337, %v4336
    %v4504 = vpack.c.b16 %v4339, %v4338
    %v4505 = vpack.c.b16 %v4341, %v4340
    %v4506 = vpack.c.b16 %v4343, %v4342
    %v4507 = vpack.c.b16 %v4345, %v4344
    %v4508 = vpack.c.b16 %v4347, %v4346
    %v4509 = vpack.c.b16 %v4349, %v4348
    %v4510 = vpack.c.b16 %v4351, %v4350
    %v4511 = vpack.c.b16 %v4353, %v4352
    %v4512 = vpack.c.b16 %v4355, %v4354
    %v4513 = vpack.c.b16 %v4357, %v4356
    %v4514 = vpack.c.b16 %v4359, %v4358
    %v4515 = vpack.c.b16 %v4361, %v4360
    %v4516 = vpack.c.b16 %v4363, %v4362
    %v4517 = vpack.c.b16 %v4365, %v4364
    %v4518 = vpack.c.b16 %v4367, %v4366
    %v4519 = vpack.c.b16 %v4369, %v4368
    %v4520 = vpack.c.b16 %v4371, %v4370
    %v4521 = vpack.c.b16 %v4373, %v4372
    %v4522 = vpack.c.b16 %v4375, %v4374
    %v4523 = vpack.c.b16 %v4377, %v4376
    %v4524 = vpack.c.b16 %v4379, %v4378
    %v4525 = vpack.c.b16 %v4381, %v4380
    %v4526 = vpack.c.b16 %v4383, %v4382
    %v4527 = vpack.c.b16 %v4385, %v4384
    %v4528 = vpack.c.b16 %v4387, %v4386
    %v4529 = vpack.c.b16 %v4389, %v4388
    %v4530 = vpack.c.b16 %v4391, %v4390
    %v4531 = vpack.c.b16 %v4393, %v4392
    %v4532 = vpack.c.b16 %v4395, %v4394
    %v4533 = vpack.c.b16 %v4397, %v4396
    %v4534 = vpack.c.b16 %v4399, %v4398
    %v4535 = vpack.c.b16 %v4401, %v4400
    %v4536 = vpack.c.b16 %v4403, %v4402
    %v4537 = vpack.c.b16 %v4405, %v4404
    %v4538 = vpack.c.b16 %v4407, %v4406
    %v4539 = vpack.c.b16 %v4409, %v4408
    %v4540 = vpack.c.b16 %v4411, %v4410
    %v4541 = vpack.c.b16 %v4413, %v4412
    %4670 = vmatprep.subr.bf16.mxu0 0
    %4671 = vmatpush1.bf16.msra.mxu0 %v4421
    %4672 = vmatprep.subr.bf16.mxu0 0
    %4673 = vmatpush1.bf16.msra.mxu0 %v4420
    %4674 = vmatprep.subr.bf16.mxu0 0
    %4675 = vmatpush1.bf16.msra.mxu0 %v4419
    %4676 = vmatprep.subr.bf16.mxu0 0
    %4677 = vmatpush1.bf16.msra.mxu0 %v4418
    %4678 = vmatprep.subr.bf16.mxu0 0
    %4679 = vmatpush1.bf16.msra.mxu0 %v4417
    %4680 = vmatprep.subr.bf16.mxu0 0
    %4681 = vmatpush1.bf16.msra.mxu0 %v4416
    %4682 = vmatprep.subr.bf16.mxu0 0
    %4683 = vmatpush1.bf16.msra.mxu0 %v4415
    %4684 = vmatprep.subr.bf16.mxu0 0
    %4685 = vmatpush1.bf16.msra.mxu0 %v4414
    %4686 = vmatprep.subr.bf16.mxu0 0
    %4687 = vmatpush2.bf16.msra.mxu0 %v4429
    %4688 = vmatprep.subr.bf16.mxu0 0
    %4689 = vmatpush2.bf16.msra.mxu0 %v4428
    %4690 = vmatprep.subr.bf16.mxu0 0
    %4691 = vmatpush2.bf16.msra.mxu0 %v4427
    %4692 = vmatprep.subr.bf16.mxu0 0
    %4693 = vmatpush2.bf16.msra.mxu0 %v4426
    %4694 = vmatprep.subr.bf16.mxu0 0
    %4695 = vmatpush2.bf16.msra.mxu0 %v4425
    %4696 = vmatprep.subr.bf16.mxu0 0
    %4697 = vmatpush2.bf16.msra.mxu0 %v4424
    %4698 = vmatprep.subr.bf16.mxu0 0
    %4699 = vmatpush2.bf16.msra.mxu0 %v4423
    %4700 = vmatprep.subr.bf16.mxu0 0
    %4701 = vmatpush2.bf16.msra.mxu0 %v4422
    %4702 = vmatprep.mubr.bf16.mxu0 %v3620
    %4703 = vmatmul.mubr.bf16.gmra.mxu0 %v3619
    %v4704 = vpop.f32.mrf.mxu0
    %v4705 = vadd.f32 %v3900, %v4704
    %v4706 = vpop.f32.mrf.mxu0
    %v4707 = vpop.f32.mrf.mxu0
    %v4708 = vpop.f32.mrf.mxu0
    %4709 = vdwg.mxu0
    %4710 = vmatprep.subr.bf16.mxu0 0
    %4711 = vmatpush1.bf16.msra.mxu0 %v4437
    %4712 = vmatprep.subr.bf16.mxu0 0
    %4713 = vmatpush1.bf16.msra.mxu0 %v4436
    %4714 = vmatprep.subr.bf16.mxu0 0
    %4715 = vmatpush1.bf16.msra.mxu0 %v4435
    %4716 = vmatprep.subr.bf16.mxu0 0
    %4717 = vmatpush1.bf16.msra.mxu0 %v4434
    %4718 = vmatprep.subr.bf16.mxu0 0
    %4719 = vmatpush1.bf16.msra.mxu0 %v4433
    %4720 = vmatprep.subr.bf16.mxu0 0
    %4721 = vmatpush1.bf16.msra.mxu0 %v4432
    %4722 = vmatprep.subr.bf16.mxu0 0
    %4723 = vmatpush1.bf16.msra.mxu0 %v4431
    %4724 = vmatprep.subr.bf16.mxu0 0
    %4725 = vmatpush1.bf16.msra.mxu0 %v4430
    %4726 = vmatprep.subr.bf16.mxu0 0
    %4727 = vmatpush2.bf16.msra.mxu0 %v4445
    %4728 = vmatprep.subr.bf16.mxu0 0
    %4729 = vmatpush2.bf16.msra.mxu0 %v4444
    %4730 = vmatprep.subr.bf16.mxu0 0
    %4731 = vmatpush2.bf16.msra.mxu0 %v4443
    %4732 = vmatprep.subr.bf16.mxu0 0
    %4733 = vmatpush2.bf16.msra.mxu0 %v4442
    %4734 = vmatprep.subr.bf16.mxu0 0
    %4735 = vmatpush2.bf16.msra.mxu0 %v4441
    %4736 = vmatprep.subr.bf16.mxu0 0
    %4737 = vmatpush2.bf16.msra.mxu0 %v4440
    %4738 = vmatprep.subr.bf16.mxu0 0
    %4739 = vmatpush2.bf16.msra.mxu0 %v4439
    %4740 = vmatprep.subr.bf16.mxu0 0
    %4741 = vmatpush2.bf16.msra.mxu0 %v4438
    %4742 = vmatprep.mubr.bf16.mxu0 %v3622
    %4743 = vmatmul.mubr.bf16.gmra.mxu0 %v3621
    %v4744 = vpop.f32.mrf.mxu0
    %v4745 = vadd.f32 %v4705, %v4744
    %v4746 = vpop.f32.mrf.mxu0
    %v4747 = vpop.f32.mrf.mxu0
    %v4748 = vpop.f32.mrf.mxu0
    %4749 = vdwg.mxu0
    %4750 = vmatprep.subr.bf16.mxu0 0
    %4751 = vmatpush1.bf16.msra.mxu0 %v4453
    %4752 = vmatprep.subr.bf16.mxu0 0
    %4753 = vmatpush1.bf16.msra.mxu0 %v4452
    %4754 = vmatprep.subr.bf16.mxu0 0
    %4755 = vmatpush1.bf16.msra.mxu0 %v4451
    %4756 = vmatprep.subr.bf16.mxu0 0
    %4757 = vmatpush1.bf16.msra.mxu0 %v4450
    %4758 = vmatprep.subr.bf16.mxu0 0
    %4759 = vmatpush1.bf16.msra.mxu0 %v4449
    %4760 = vmatprep.subr.bf16.mxu0 0
    %4761 = vmatpush1.bf16.msra.mxu0 %v4448
    %4762 = vmatprep.subr.bf16.mxu0 0
    %4763 = vmatpush1.bf16.msra.mxu0 %v4447
    %4764 = vmatprep.subr.bf16.mxu0 0
    %4765 = vmatpush1.bf16.msra.mxu0 %v4446
    %4766 = vmatprep.subr.bf16.mxu0 0
    %4767 = vmatpush2.bf16.msra.mxu0 %v4461
    %4768 = vmatprep.subr.bf16.mxu0 0
    %4769 = vmatpush2.bf16.msra.mxu0 %v4460
    %4770 = vmatprep.subr.bf16.mxu0 0
    %4771 = vmatpush2.bf16.msra.mxu0 %v4459
    %4772 = vmatprep.subr.bf16.mxu0 0
    %4773 = vmatpush2.bf16.msra.mxu0 %v4458
    %4774 = vmatprep.subr.bf16.mxu0 0
    %4775 = vmatpush2.bf16.msra.mxu0 %v4457
    %4776 = vmatprep.subr.bf16.mxu0 0
    %4777 = vmatpush2.bf16.msra.mxu0 %v4456
    %4778 = vmatprep.subr.bf16.mxu0 0
    %4779 = vmatpush2.bf16.msra.mxu0 %v4455
    %4780 = vmatprep.subr.bf16.mxu0 0
    %4781 = vmatpush2.bf16.msra.mxu0 %v4454
    %4782 = vmatprep.mubr.bf16.mxu0 %v3624
    %4783 = vmatmul.mubr.bf16.gmra.mxu0 %v3623
    %v4784 = vpop.f32.mrf.mxu0
    %v4785 = vadd.f32 %v4745, %v4784
    %v4786 = vpop.f32.mrf.mxu0
    %v4787 = vpop.f32.mrf.mxu0
    %v4788 = vpop.f32.mrf.mxu0
    %4789 = vdwg.mxu0
    %4790 = vmatprep.subr.bf16.mxu0 0
    %4791 = vmatpush1.bf16.msra.mxu0 %v4469
    %4792 = vmatprep.subr.bf16.mxu0 0
    %4793 = vmatpush1.bf16.msra.mxu0 %v4468
    %4794 = vmatprep.subr.bf16.mxu0 0
    %4795 = vmatpush1.bf16.msra.mxu0 %v4467
    %4796 = vmatprep.subr.bf16.mxu0 0
    %4797 = vmatpush1.bf16.msra.mxu0 %v4466
    %4798 = vmatprep.subr.bf16.mxu0 0
    %4799 = vmatpush1.bf16.msra.mxu0 %v4465
    %4800 = vmatprep.subr.bf16.mxu0 0
    %4801 = vmatpush1.bf16.msra.mxu0 %v4464
    %4802 = vmatprep.subr.bf16.mxu0 0
    %4803 = vmatpush1.bf16.msra.mxu0 %v4463
    %4804 = vmatprep.subr.bf16.mxu0 0
    %4805 = vmatpush1.bf16.msra.mxu0 %v4462
    %4806 = vmatprep.subr.bf16.mxu0 0
    %4807 = vmatpush2.bf16.msra.mxu0 %v4477
    %4808 = vmatprep.subr.bf16.mxu0 0
    %4809 = vmatpush2.bf16.msra.mxu0 %v4476
    %4810 = vmatprep.subr.bf16.mxu0 0
    %4811 = vmatpush2.bf16.msra.mxu0 %v4475
    %4812 = vmatprep.subr.bf16.mxu0 0
    %4813 = vmatpush2.bf16.msra.mxu0 %v4474
    %4814 = vmatprep.subr.bf16.mxu0 0
    %4815 = vmatpush2.bf16.msra.mxu0 %v4473
    %4816 = vmatprep.subr.bf16.mxu0 0
    %4817 = vmatpush2.bf16.msra.mxu0 %v4472
    %4818 = vmatprep.subr.bf16.mxu0 0
    %4819 = vmatpush2.bf16.msra.mxu0 %v4471
    %4820 = vmatprep.subr.bf16.mxu0 0
    %4821 = vmatpush2.bf16.msra.mxu0 %v4470
    %4822 = vmatprep.mubr.bf16.mxu0 %v3626
    %4823 = vmatmul.mubr.bf16.gmra.mxu0 %v3625
    %v4824 = vpop.f32.mrf.mxu0
    %v4825 = vadd.f32 %v4785, %v4824
    %v4826 = vpop.f32.mrf.mxu0
    %v4827 = vpop.f32.mrf.mxu0
    %v4828 = vpop.f32.mrf.mxu0
    %4829 = vdwg.mxu0
    %4830 = vmatprep.subr.bf16.mxu0 0
    %4831 = vmatpush1.bf16.msra.mxu0 %v4485
    %4832 = vmatprep.subr.bf16.mxu0 0
    %4833 = vmatpush1.bf16.msra.mxu0 %v4484
    %4834 = vmatprep.subr.bf16.mxu0 0
    %4835 = vmatpush1.bf16.msra.mxu0 %v4483
    %4836 = vmatprep.subr.bf16.mxu0 0
    %4837 = vmatpush1.bf16.msra.mxu0 %v4482
    %4838 = vmatprep.subr.bf16.mxu0 0
    %4839 = vmatpush1.bf16.msra.mxu0 %v4481
    %4840 = vmatprep.subr.bf16.mxu0 0
    %4841 = vmatpush1.bf16.msra.mxu0 %v4480
    %4842 = vmatprep.subr.bf16.mxu0 0
    %4843 = vmatpush1.bf16.msra.mxu0 %v4479
    %4844 = vmatprep.subr.bf16.mxu0 0
    %4845 = vmatpush1.bf16.msra.mxu0 %v4478
    %4846 = vmatprep.subr.bf16.mxu0 0
    %4847 = vmatpush2.bf16.msra.mxu0 %v4493
    %4848 = vmatprep.subr.bf16.mxu0 0
    %4849 = vmatpush2.bf16.msra.mxu0 %v4492
    %4850 = vmatprep.subr.bf16.mxu0 0
    %4851 = vmatpush2.bf16.msra.mxu0 %v4491
    %4852 = vmatprep.subr.bf16.mxu0 0
    %4853 = vmatpush2.bf16.msra.mxu0 %v4490
    %4854 = vmatprep.subr.bf16.mxu0 0
    %4855 = vmatpush2.bf16.msra.mxu0 %v4489
    %4856 = vmatprep.subr.bf16.mxu0 0
    %4857 = vmatpush2.bf16.msra.mxu0 %v4488
    %4858 = vmatprep.subr.bf16.mxu0 0
    %4859 = vmatpush2.bf16.msra.mxu0 %v4487
    %4860 = vmatprep.subr.bf16.mxu0 0
    %4861 = vmatpush2.bf16.msra.mxu0 %v4486
    %4862 = vmatprep.mubr.bf16.mxu0 %v3628
    %4863 = vmatmul.mubr.bf16.gmra.mxu0 %v3627
    %v4864 = vpop.f32.mrf.mxu0
    %v4865 = vadd.f32 %v4825, %v4864
    %v4866 = vpop.f32.mrf.mxu0
    %v4867 = vpop.f32.mrf.mxu0
    %v4868 = vpop.f32.mrf.mxu0
    %4869 = vdwg.mxu0
    %4870 = vmatprep.subr.bf16.mxu0 0
    %4871 = vmatpush1.bf16.msra.mxu0 %v4501
    %4872 = vmatprep.subr.bf16.mxu0 0
    %4873 = vmatpush1.bf16.msra.mxu0 %v4500
    %4874 = vmatprep.subr.bf16.mxu0 0
    %4875 = vmatpush1.bf16.msra.mxu0 %v4499
    %4876 = vmatprep.subr.bf16.mxu0 0
    %4877 = vmatpush1.bf16.msra.mxu0 %v4498
    %4878 = vmatprep.subr.bf16.mxu0 0
    %4879 = vmatpush1.bf16.msra.mxu0 %v4497
    %4880 = vmatprep.subr.bf16.mxu0 0
    %4881 = vmatpush1.bf16.msra.mxu0 %v4496
    %4882 = vmatprep.subr.bf16.mxu0 0
    %4883 = vmatpush1.bf16.msra.mxu0 %v4495
    %4884 = vmatprep.subr.bf16.mxu0 0
    %4885 = vmatpush1.bf16.msra.mxu0 %v4494
    %4886 = vmatprep.subr.bf16.mxu0 0
    %4887 = vmatpush2.bf16.msra.mxu0 %v4509
    %4888 = vmatprep.subr.bf16.mxu0 0
    %4889 = vmatpush2.bf16.msra.mxu0 %v4508
    %4890 = vmatprep.subr.bf16.mxu0 0
    %4891 = vmatpush2.bf16.msra.mxu0 %v4507
    %4892 = vmatprep.subr.bf16.mxu0 0
    %4893 = vmatpush2.bf16.msra.mxu0 %v4506
    %4894 = vmatprep.subr.bf16.mxu0 0
    %4895 = vmatpush2.bf16.msra.mxu0 %v4505
    %4896 = vmatprep.subr.bf16.mxu0 0
    %4897 = vmatpush2.bf16.msra.mxu0 %v4504
    %4898 = vmatprep.subr.bf16.mxu0 0
    %4899 = vmatpush2.bf16.msra.mxu0 %v4503
    %4900 = vmatprep.subr.bf16.mxu0 0
    %4901 = vmatpush2.bf16.msra.mxu0 %v4502
    %4902 = vmatprep.mubr.bf16.mxu0 %v3630
    %4903 = vmatmul.mubr.bf16.gmra.mxu0 %v3629
    %v4904 = vpop.f32.mrf.mxu0
    %v4905 = vadd.f32 %v4865, %v4904
    %v4906 = vpop.f32.mrf.mxu0
    %v4907 = vpop.f32.mrf.mxu0
    %v4908 = vpop.f32.mrf.mxu0
    %4909 = vdwg.mxu0
    %4910 = vmatprep.subr.bf16.mxu0 0
    %4911 = vmatpush1.bf16.msra.mxu0 %v4517
    %4912 = vmatprep.subr.bf16.mxu0 0
    %4913 = vmatpush1.bf16.msra.mxu0 %v4516
    %4914 = vmatprep.subr.bf16.mxu0 0
    %4915 = vmatpush1.bf16.msra.mxu0 %v4515
    %4916 = vmatprep.subr.bf16.mxu0 0
    %4917 = vmatpush1.bf16.msra.mxu0 %v4514
    %4918 = vmatprep.subr.bf16.mxu0 0
    %4919 = vmatpush1.bf16.msra.mxu0 %v4513
    %4920 = vmatprep.subr.bf16.mxu0 0
    %4921 = vmatpush1.bf16.msra.mxu0 %v4512
    %4922 = vmatprep.subr.bf16.mxu0 0
    %4923 = vmatpush1.bf16.msra.mxu0 %v4511
    %4924 = vmatprep.subr.bf16.mxu0 0
    %4925 = vmatpush1.bf16.msra.mxu0 %v4510
    %4926 = vmatprep.subr.bf16.mxu0 0
    %4927 = vmatpush2.bf16.msra.mxu0 %v4525
    %4928 = vmatprep.subr.bf16.mxu0 0
    %4929 = vmatpush2.bf16.msra.mxu0 %v4524
    %4930 = vmatprep.subr.bf16.mxu0 0
    %4931 = vmatpush2.bf16.msra.mxu0 %v4523
    %4932 = vmatprep.subr.bf16.mxu0 0
    %4933 = vmatpush2.bf16.msra.mxu0 %v4522
    %4934 = vmatprep.subr.bf16.mxu0 0
    %4935 = vmatpush2.bf16.msra.mxu0 %v4521
    %4936 = vmatprep.subr.bf16.mxu0 0
    %4937 = vmatpush2.bf16.msra.mxu0 %v4520
    %4938 = vmatprep.subr.bf16.mxu0 0
    %4939 = vmatpush2.bf16.msra.mxu0 %v4519
    %4940 = vmatprep.subr.bf16.mxu0 0
    %4941 = vmatpush2.bf16.msra.mxu0 %v4518
    %4942 = vmatprep.mubr.bf16.mxu0 %v3632
    %4943 = vmatmul.mubr.bf16.gmra.mxu0 %v3631
    %v4944 = vpop.f32.mrf.mxu0
    %v4945 = vadd.f32 %v4905, %v4944
    %v4946 = vpop.f32.mrf.mxu0
    %v4947 = vpop.f32.mrf.mxu0
    %v4948 = vpop.f32.mrf.mxu0
    %4949 = vdwg.mxu0
    %4950 = vmatprep.subr.bf16.mxu0 0
    %4951 = vmatpush1.bf16.msra.mxu0 %v4533
    %4952 = vmatprep.subr.bf16.mxu0 0
    %4953 = vmatpush1.bf16.msra.mxu0 %v4532
    %4954 = vmatprep.subr.bf16.mxu0 0
    %4955 = vmatpush1.bf16.msra.mxu0 %v4531
    %4956 = vmatprep.subr.bf16.mxu0 0
    %4957 = vmatpush1.bf16.msra.mxu0 %v4530
    %4958 = vmatprep.subr.bf16.mxu0 0
    %4959 = vmatpush1.bf16.msra.mxu0 %v4529
    %4960 = vmatprep.subr.bf16.mxu0 0
    %4961 = vmatpush1.bf16.msra.mxu0 %v4528
    %4962 = vmatprep.subr.bf16.mxu0 0
    %4963 = vmatpush1.bf16.msra.mxu0 %v4527
    %4964 = vmatprep.subr.bf16.mxu0 0
    %4965 = vmatpush1.bf16.msra.mxu0 %v4526
    %4966 = vmatprep.subr.bf16.mxu0 0
    %4967 = vmatpush2.bf16.msra.mxu0 %v4541
    %4968 = vmatprep.subr.bf16.mxu0 0
    %4969 = vmatpush2.bf16.msra.mxu0 %v4540
    %4970 = vmatprep.subr.bf16.mxu0 0
    %4971 = vmatpush2.bf16.msra.mxu0 %v4539
    %4972 = vmatprep.subr.bf16.mxu0 0
    %4973 = vmatpush2.bf16.msra.mxu0 %v4538
    %4974 = vmatprep.subr.bf16.mxu0 0
    %4975 = vmatpush2.bf16.msra.mxu0 %v4537
    %4976 = vmatprep.subr.bf16.mxu0 0
    %4977 = vmatpush2.bf16.msra.mxu0 %v4536
    %4978 = vmatprep.subr.bf16.mxu0 0
    %4979 = vmatpush2.bf16.msra.mxu0 %v4535
    %4980 = vmatprep.subr.bf16.mxu0 0
    %4981 = vmatpush2.bf16.msra.mxu0 %v4534
    %4982 = vmatprep.mubr.bf16.mxu0 %v3634
    %4983 = vmatmul.mubr.bf16.gmra.mxu0 %v3633
    %v4984 = vpop.f32.mrf.mxu0
    %v4985 = vadd.f32 %v4945, %v4984
    %v4986 = vpop.f32.mrf.mxu0
    %v4987 = vpop.f32.mrf.mxu0
    %v4988 = vpop.f32.mrf.mxu0
    %4989 = vdwg.mxu0
    %v4990 = vmax.f32 %v4985, 0.0
    %v4991 = vpack.c.bf16 %v4990, %v4990
    %v4992 = vld [vmem:[%s7] sm:$0xf]
    %v4993 = vld [vmem:[%s7 + $0x4] sm:$0xf]
    %v4994 = vld [vmem:[%s7 + $0x8] sm:$0xf]
    %v4995 = vld [vmem:[%s7 + $0xc] sm:$0xf]
    %v4996 = vld [vmem:[%s7 + $0x10] sm:$0xf]
    %v4997 = vld [vmem:[%s7 + $0x14] sm:$0xf]
    %v4998 = vld [vmem:[%s7 + $0x18] sm:$0xf]
    %v4999 = vld [vmem:[%s7 + $0x1c] sm:$0xf]
    %v5000 = vld [vmem:[%s7 + $0x20] sm:$0xf]
    %v5001 = vld [vmem:[%s7 + $0x24] sm:$0xf]
    %v5002 = vld [vmem:[%s7 + $0x28] sm:$0xf]
    %v5003 = vld [vmem:[%s7 + $0x2c] sm:$0xf]
    %v5004 = vld [vmem:[%s7 + $0x30] sm:$0xf]
    %v5005 = vld [vmem:[%s7 + $0x34] sm:$0xf]
    %v5006 = vld [vmem:[%s7 + $0x38] sm:$0xf]
    %v5007 = vld [vmem:[%s7 + $0x3c] sm:$0xf]
    %v5008 = vld [vmem:[%s8] sm:$0x1]
    %v5010 = vlaneseq
    %v5011 = vshrl.u32 %v5010, 7
    %v5012 = vsub.s32 0, %v5011
    %v5013 = vrot.slane %v5008, %v5012
    %v5031 = vunpack.c.l.b16 %v4992
    %v5032 = vunpack.c.l.b16 %v4993
    %v5033 = vunpack.c.l.b16 %v4994
    %v5034 = vunpack.c.l.b16 %v4995
    %v5035 = vunpack.c.l.b16 %v4996
    %v5036 = vunpack.c.l.b16 %v4997
    %v5037 = vunpack.c.l.b16 %v4998
    %v5038 = vunpack.c.l.b16 %v4999
    %v5039 = vunpack.c.l.b16 %v5000
    %v5040 = vunpack.c.l.b16 %v5001
    %v5041 = vunpack.c.l.b16 %v5002
    %v5042 = vunpack.c.l.b16 %v5003
    %v5043 = vunpack.c.l.b16 %v5004
    %v5044 = vunpack.c.l.b16 %v5005
    %v5045 = vunpack.c.l.b16 %v5006
    %v5046 = vunpack.c.l.b16 %v5007
    %v5047 = vpack.c.b16 %v5032, %v5031
    %v5048 = vpack.c.b16 %v5034, %v5033
    %v5049 = vpack.c.b16 %v5036, %v5035
    %v5050 = vpack.c.b16 %v5038, %v5037
    %v5051 = vpack.c.b16 %v5040, %v5039
    %v5052 = vpack.c.b16 %v5042, %v5041
    %v5053 = vpack.c.b16 %v5044, %v5043
    %v5054 = vpack.c.b16 %v5046, %v5045
    %5063 = vmatprep.subr.bf16.mxu0 0
    %5064 = vmatpush1.bf16.msra.mxu0 %v5054
    %5065 = vmatprep.subr.bf16.mxu0 0
    %5066 = vmatpush1.bf16.msra.mxu0 %v5053
    %5067 = vmatprep.subr.bf16.mxu0 0
    %5068 = vmatpush1.bf16.msra.mxu0 %v5052
    %5069 = vmatprep.subr.bf16.mxu0 0
    %5070 = vmatpush1.bf16.msra.mxu0 %v5051
    %5071 = vmatprep.subr.bf16.mxu0 0
    %5072 = vmatpush1.bf16.msra.mxu0 %v5050
    %5073 = vmatprep.subr.bf16.mxu0 0
    %5074 = vmatpush1.bf16.msra.mxu0 %v5049
    %5075 = vmatprep.subr.bf16.mxu0 0
    %5076 = vmatpush1.bf16.msra.mxu0 %v5048
    %5077 = vmatprep.subr.bf16.mxu0 0
    %5078 = vmatpush1.bf16.msra.mxu0 %v5047
    %5079 = vmatprep.subr.bf16.mxu0 0
    %5080 = vmatpush2.bf16.msra.mxu0 0
    %5081 = vmatprep.subr.bf16.mxu0 0
    %5082 = vmatpush2.bf16.msra.mxu0 0
    %5083 = vmatprep.subr.bf16.mxu0 0
    %5084 = vmatpush2.bf16.msra.mxu0 0
    %5085 = vmatprep.subr.bf16.mxu0 0
    %5086 = vmatpush2.bf16.msra.mxu0 0
    %5087 = vmatprep.subr.bf16.mxu0 0
    %5088 = vmatpush2.bf16.msra.mxu0 0
    %5089 = vmatprep.subr.bf16.mxu0 0
    %5090 = vmatpush2.bf16.msra.mxu0 0
    %5091 = vmatprep.subr.bf16.mxu0 0
    %5092 = vmatpush2.bf16.msra.mxu0 0
    %5093 = vmatprep.subr.bf16.mxu0 0
    %5094 = vmatpush2.bf16.msra.mxu0 0
    %5095 = vmatprep.mubr.bf16.mxu0 0
    %5096 = vmatmul.mubr.bf16.gmra.mxu0 %v4991
    %v5097 = vpop.f32.mrf.mxu0
    %v5098 = vadd.f32 %v5013, %v5097
    %v5099 = vpop.f32.mrf.mxu0
    %v5100 = vpop.f32.mrf.mxu0
    %v5101 = vpop.f32.mrf.mxu0
    %5102 = vdwg.mxu0
    %v5103 = vmax.f32 %v5098, 0.0
    %v5104 = vpack.c.bf16 %v5103, %v5103
    %v5105 = vld [vmem:[%s9] sm:$0xf]
    %v5106 = vld [vmem:[%s9 + $0x4] sm:$0xf]
    %v5107 = vld [vmem:[%s9 + $0x8] sm:$0xf]
    %v5108 = vld [vmem:[%s9 + $0xc] sm:$0xf]
    %v5109 = vld [vmem:[%s9 + $0x10] sm:$0xf]
    %v5110 = vld [vmem:[%s9 + $0x14] sm:$0xf]
    %v5111 = vld [vmem:[%s9 + $0x18] sm:$0xf]
    %v5112 = vld [vmem:[%s9 + $0x1c] sm:$0xf]
    %v5113 = vld [vmem:[%s9 + $0x20] sm:$0xf]
    %v5114 = vld [vmem:[%s9 + $0x24] sm:$0xf]
    %v5115 = vld [vmem:[%s9 + $0x28] sm:$0xf]
    %v5116 = vld [vmem:[%s9 + $0x2c] sm:$0xf]
    %v5117 = vld [vmem:[%s9 + $0x30] sm:$0xf]
    %v5118 = vld [vmem:[%s9 + $0x34] sm:$0xf]
    %v5119 = vld [vmem:[%s9 + $0x38] sm:$0xf]
    %v5120 = vld [vmem:[%s9 + $0x3c] sm:$0xf]
    %v5121 = vld [vmem:[%s10] sm:$0x1]
    %v5123 = vlaneseq
    %v5124 = vshrl.u32 %v5123, 7
    %v5125 = vsub.s32 0, %v5124
    %v5126 = vrot.slane %v5121, %v5125
    %v5144 = vunpack.c.l.b16 %v5105
    %v5145 = vunpack.c.l.b16 %v5106
    %v5146 = vunpack.c.l.b16 %v5107
    %v5147 = vunpack.c.l.b16 %v5108
    %v5148 = vunpack.c.l.b16 %v5109
    %v5149 = vunpack.c.l.b16 %v5110
    %v5150 = vunpack.c.l.b16 %v5111
    %v5151 = vunpack.c.l.b16 %v5112
    %v5152 = vunpack.c.l.b16 %v5113
    %v5153 = vunpack.c.l.b16 %v5114
    %v5154 = vunpack.c.l.b16 %v5115
    %v5155 = vunpack.c.l.b16 %v5116
    %v5156 = vunpack.c.l.b16 %v5117
    %v5157 = vunpack.c.l.b16 %v5118
    %v5158 = vunpack.c.l.b16 %v5119
    %v5159 = vunpack.c.l.b16 %v5120
    %v5160 = vpack.c.b16 %v5145, %v5144
    %v5161 = vpack.c.b16 %v5147, %v5146
    %v5162 = vpack.c.b16 %v5149, %v5148
    %v5163 = vpack.c.b16 %v5151, %v5150
    %v5164 = vpack.c.b16 %v5153, %v5152
    %v5165 = vpack.c.b16 %v5155, %v5154
    %v5166 = vpack.c.b16 %v5157, %v5156
    %v5167 = vpack.c.b16 %v5159, %v5158
    %5176 = vmatprep.subr.bf16.mxu0 0
    %5177 = vmatpush1.bf16.msra.mxu0 %v5167
    %5178 = vmatprep.subr.bf16.mxu0 0
    %5179 = vmatpush1.bf16.msra.mxu0 %v5166
    %5180 = vmatprep.subr.bf16.mxu0 0
    %5181 = vmatpush1.bf16.msra.mxu0 %v5165
    %5182 = vmatprep.subr.bf16.mxu0 0
    %5183 = vmatpush1.bf16.msra.mxu0 %v5164
    %5184 = vmatprep.subr.bf16.mxu0 0
    %5185 = vmatpush1.bf16.msra.mxu0 %v5163
    %5186 = vmatprep.subr.bf16.mxu0 0
    %5187 = vmatpush1.bf16.msra.mxu0 %v5162
    %5188 = vmatprep.subr.bf16.mxu0 0
    %5189 = vmatpush1.bf16.msra.mxu0 %v5161
    %5190 = vmatprep.subr.bf16.mxu0 0
    %5191 = vmatpush1.bf16.msra.mxu0 %v5160
    %5192 = vmatprep.subr.bf16.mxu0 0
    %5193 = vmatpush2.bf16.msra.mxu0 0
    %5194 = vmatprep.subr.bf16.mxu0 0
    %5195 = vmatpush2.bf16.msra.mxu0 0
    %5196 = vmatprep.subr.bf16.mxu0 0
    %5197 = vmatpush2.bf16.msra.mxu0 0
    %5198 = vmatprep.subr.bf16.mxu0 0
    %5199 = vmatpush2.bf16.msra.mxu0 0
    %5200 = vmatprep.subr.bf16.mxu0 0
    %5201 = vmatpush2.bf16.msra.mxu0 0
    %5202 = vmatprep.subr.bf16.mxu0 0
    %5203 = vmatpush2.bf16.msra.mxu0 0
    %5204 = vmatprep.subr.bf16.mxu0 0
    %5205 = vmatpush2.bf16.msra.mxu0 0
    %5206 = vmatprep.subr.bf16.mxu0 0
    %5207 = vmatpush2.bf16.msra.mxu0 0
    %5208 = vmatprep.mubr.bf16.mxu0 0
    %5209 = vmatmul.mubr.bf16.gmra.mxu0 %v5104
    %v5210 = vpop.f32.mrf.mxu0
    %v5211 = vadd.f32 %v5126, %v5210
    %v5212 = vpop.f32.mrf.mxu0
    %v5213 = vpop.f32.mrf.mxu0
    %v5214 = vpop.f32.mrf.mxu0
    %5215 = vdwg.mxu0
    %v5216 = vmax.f32 %v5211, 0.0
    %v5217 = vpack.c.bf16 %v5216, %v5216
    %v5218 = vld [vmem:[%s11] sm:$0xf]
    %v5219 = vld [vmem:[%s11 + $0x4] sm:$0xf]
    %v5220 = vld [vmem:[%s11 + $0x8] sm:$0xf]
    %v5221 = vld [vmem:[%s11 + $0xc] sm:$0xf]
    %v5222 = vld [vmem:[%s11 + $0x10] sm:$0xf]
    %v5223 = vld [vmem:[%s11 + $0x14] sm:$0xf]
    %v5224 = vld [vmem:[%s11 + $0x18] sm:$0xf]
    %v5225 = vld [vmem:[%s11 + $0x1c] sm:$0xf]
    %v5226 = vld [vmem:[%s11 + $0x20] sm:$0xf]
    %v5227 = vld [vmem:[%s11 + $0x24] sm:$0xf]
    %v5228 = vld [vmem:[%s11 + $0x28] sm:$0xf]
    %v5229 = vld [vmem:[%s11 + $0x2c] sm:$0xf]
    %v5230 = vld [vmem:[%s11 + $0x30] sm:$0xf]
    %v5231 = vld [vmem:[%s11 + $0x34] sm:$0xf]
    %v5232 = vld [vmem:[%s11 + $0x38] sm:$0xf]
    %v5233 = vld [vmem:[%s11 + $0x3c] sm:$0xf]
    %v5234 = vld [vmem:[%s12] sm:$0x1]
    %v5236 = vlaneseq
    %v5237 = vshrl.u32 %v5236, 7
    %v5238 = vsub.s32 0, %v5237
    %v5239 = vrot.slane %v5234, %v5238
    %v5257 = vunpack.c.l.b16 %v5218
    %v5258 = vunpack.c.l.b16 %v5219
    %v5259 = vunpack.c.l.b16 %v5220
    %v5260 = vunpack.c.l.b16 %v5221
    %v5261 = vunpack.c.l.b16 %v5222
    %v5262 = vunpack.c.l.b16 %v5223
    %v5263 = vunpack.c.l.b16 %v5224
    %v5264 = vunpack.c.l.b16 %v5225
    %v5265 = vunpack.c.l.b16 %v5226
    %v5266 = vunpack.c.l.b16 %v5227
    %v5267 = vunpack.c.l.b16 %v5228
    %v5268 = vunpack.c.l.b16 %v5229
    %v5269 = vunpack.c.l.b16 %v5230
    %v5270 = vunpack.c.l.b16 %v5231
    %v5271 = vunpack.c.l.b16 %v5232
    %v5272 = vunpack.c.l.b16 %v5233
    %v5273 = vpack.c.b16 %v5258, %v5257
    %v5274 = vpack.c.b16 %v5260, %v5259
    %v5275 = vpack.c.b16 %v5262, %v5261
    %v5276 = vpack.c.b16 %v5264, %v5263
    %v5277 = vpack.c.b16 %v5266, %v5265
    %v5278 = vpack.c.b16 %v5268, %v5267
    %v5279 = vpack.c.b16 %v5270, %v5269
    %v5280 = vpack.c.b16 %v5272, %v5271
    %5289 = vmatprep.subr.bf16.mxu0 0
    %5290 = vmatpush1.bf16.msra.mxu0 %v5280
    %5291 = vmatprep.subr.bf16.mxu0 0
    %5292 = vmatpush1.bf16.msra.mxu0 %v5279
    %5293 = vmatprep.subr.bf16.mxu0 0
    %5294 = vmatpush1.bf16.msra.mxu0 %v5278
    %5295 = vmatprep.subr.bf16.mxu0 0
    %5296 = vmatpush1.bf16.msra.mxu0 %v5277
    %5297 = vmatprep.subr.bf16.mxu0 0
    %5298 = vmatpush1.bf16.msra.mxu0 %v5276
    %5299 = vmatprep.subr.bf16.mxu0 0
    %5300 = vmatpush1.bf16.msra.mxu0 %v5275
    %5301 = vmatprep.subr.bf16.mxu0 0
    %5302 = vmatpush1.bf16.msra.mxu0 %v5274
    %5303 = vmatprep.subr.bf16.mxu0 0
    %5304 = vmatpush1.bf16.msra.mxu0 %v5273
    %5305 = vmatprep.subr.bf16.mxu0 0
    %5306 = vmatpush2.bf16.msra.mxu0 0
    %5307 = vmatprep.subr.bf16.mxu0 0
    %5308 = vmatpush2.bf16.msra.mxu0 0
    %5309 = vmatprep.subr.bf16.mxu0 0
    %5310 = vmatpush2.bf16.msra.mxu0 0
    %5311 = vmatprep.subr.bf16.mxu0 0
    %5312 = vmatpush2.bf16.msra.mxu0 0
    %5313 = vmatprep.subr.bf16.mxu0 0
    %5314 = vmatpush2.bf16.msra.mxu0 0
    %5315 = vmatprep.subr.bf16.mxu0 0
    %5316 = vmatpush2.bf16.msra.mxu0 0
    %5317 = vmatprep.subr.bf16.mxu0 0
    %5318 = vmatpush2.bf16.msra.mxu0 0
    %5319 = vmatprep.subr.bf16.mxu0 0
    %5320 = vmatpush2.bf16.msra.mxu0 0
    %5321 = vmatprep.mubr.bf16.mxu0 0
    %5322 = vmatmul.mubr.bf16.gmra.mxu0 %v5217
    %v5323 = vpop.f32.mrf.mxu0
    %v5324 = vadd.f32 %v5239, %v5323
    %v5325 = vpop.f32.mrf.mxu0
    %v5326 = vpop.f32.mrf.mxu0
    %v5327 = vpop.f32.mrf.mxu0
    %5328 = vdwg.mxu0
    %v5329 = vmax.f32 %v5324, 0.0
    %v5330 = vld [vmem:[%s13] sm:$0x1]
    %v5332 = vlaneseq
    %v5333 = vshrl.u32 %v5332, 7
    %v5334 = vsub.s32 0, %v5333
    %v5335 = vrot.slane %v5330, %v5334
    %v5337 = vmul.f32 %v5329, %v5335
    %v5338 = vld [vmem:[%s14] sm:$0x1]
    %v5340 = vlaneseq
    %v5341 = vshrl.u32 %v5340, 7
    %v5342 = vsub.s32 0, %v5341
    %v5343 = vrot.slane %v5338, %v5342
    %v5345 = vadd.f32 %v5337, %v5343
    %5346 = vst [vmem:[#allocation7] sm:$0x3] %v5345
    %v5347 = vld [vmem:[%s15] sm:$0xff]
    %v5348 = vld [vmem:[%s15 + $0x8] sm:$0xff]
    %v5349 = vld [vmem:[%s15 + $0x10] sm:$0xff]
    %v5350 = vld [vmem:[%s15 + $0x18] sm:$0xff]
    %v5351 = vld [vmem:[%s15 + $0x20] sm:$0xff]
    %v5352 = vld [vmem:[%s15 + $0x28] sm:$0xff]
    %v5353 = vld [vmem:[%s15 + $0x30] sm:$0xff]
    %v5354 = vld [vmem:[%s15 + $0x38] sm:$0xff]
    %v5355 = vld [vmem:[%s15 + $0x40] sm:$0xff]
    %v5356 = vld [vmem:[%s15 + $0x48] sm:$0xff]
    %v5357 = vld [vmem:[%s15 + $0x50] sm:$0xff]
    %v5358 = vld [vmem:[%s15 + $0x58] sm:$0xff]
    %v5359 = vld [vmem:[%s15 + $0x60] sm:$0xff]
    %v5360 = vld [vmem:[%s15 + $0x68] sm:$0xff]
    %v5361 = vld [vmem:[%s15 + $0x70] sm:$0xff]
    %v5362 = vld [vmem:[%s15 + $0x78] sm:$0xff]
    %v5363 = vld [vmem:[%s16] sm:$0x1]
    %v5365 = vlaneseq
    %v5366 = vshrl.u32 %v5365, 7
    %v5367 = vsub.s32 0, %v5366
    %v5368 = vrot.slane %v5363, %v5367
    %5370 = vmatprep.subr.mxu0 0.0
    %5371 = vmatpush1.msra.mxu0 %v5362
    %5372 = vmatprep.subr.mxu0 0.0
    %5373 = vmatpush1.msra.mxu0 %v5361
    %5374 = vmatprep.subr.mxu0 0.0
    %5375 = vmatpush1.msra.mxu0 %v5360
    %5376 = vmatprep.subr.mxu0 0.0
    %5377 = vmatpush1.msra.mxu0 %v5359
    %5378 = vmatprep.subr.mxu0 0.0
    %5379 = vmatpush1.msra.mxu0 %v5358
    %5380 = vmatprep.subr.mxu0 0.0
    %5381 = vmatpush1.msra.mxu0 %v5357
    %5382 = vmatprep.subr.mxu0 0.0
    %5383 = vmatpush1.msra.mxu0 %v5356
    %5384 = vmatprep.subr.mxu0 0.0
    %5385 = vmatpush1.msra.mxu0 %v5355
    %5386 = vmatprep.subr.mxu0 0.0
    %5387 = vmatpush1.msra.mxu0 %v5354
    %5388 = vmatprep.subr.mxu0 0.0
    %5389 = vmatpush1.msra.mxu0 %v5353
    %5390 = vmatprep.subr.mxu0 0.0
    %5391 = vmatpush1.msra.mxu0 %v5352
    %5392 = vmatprep.subr.mxu0 0.0
    %5393 = vmatpush1.msra.mxu0 %v5351
    %5394 = vmatprep.subr.mxu0 0.0
    %5395 = vmatpush1.msra.mxu0 %v5350
    %5396 = vmatprep.subr.mxu0 0.0
    %5397 = vmatpush1.msra.mxu0 %v5349
    %5398 = vmatprep.subr.mxu0 0.0
    %5399 = vmatpush1.msra.mxu0 %v5348
    %5400 = vmatprep.subr.mxu0 0.0
    %5401 = vmatpush1.msra.mxu0 %v5347
    %5402 = vmatprep.subr.mxu0 0.0
    %5403 = vmatpush2.msra.mxu0 0.0
    %5404 = vmatprep.subr.mxu0 0.0
    %5405 = vmatpush2.msra.mxu0 0.0
    %5406 = vmatprep.subr.mxu0 0.0
    %5407 = vmatpush2.msra.mxu0 0.0
    %5408 = vmatprep.subr.mxu0 0.0
    %5409 = vmatpush2.msra.mxu0 0.0
    %5410 = vmatprep.subr.mxu0 0.0
    %5411 = vmatpush2.msra.mxu0 0.0
    %5412 = vmatprep.subr.mxu0 0.0
    %5413 = vmatpush2.msra.mxu0 0.0
    %5414 = vmatprep.subr.mxu0 0.0
    %5415 = vmatpush2.msra.mxu0 0.0
    %5416 = vmatprep.subr.mxu0 0.0
    %5417 = vmatpush2.msra.mxu0 0.0
    %5418 = vmatprep.subr.mxu0 0.0
    %5419 = vmatpush2.msra.mxu0 0.0
    %5420 = vmatprep.subr.mxu0 0.0
    %5421 = vmatpush2.msra.mxu0 0.0
    %5422 = vmatprep.subr.mxu0 0.0
    %5423 = vmatpush2.msra.mxu0 0.0
    %5424 = vmatprep.subr.mxu0 0.0
    %5425 = vmatpush2.msra.mxu0 0.0
    %5426 = vmatprep.subr.mxu0 0.0
    %5427 = vmatpush2.msra.mxu0 0.0
    %5428 = vmatprep.subr.mxu0 0.0
    %5429 = vmatpush2.msra.mxu0 0.0
    %5430 = vmatprep.subr.mxu0 0.0
    %5431 = vmatpush2.msra.mxu0 0.0
    %5432 = vmatprep.subr.mxu0 0.0
    %5433 = vmatpush2.msra.mxu0 0.0
    %5434 = vmatprep.mubr.f32.mxu0 0.0
    %5435 = vmatmul.mubr.f32.gmra.mxu0 %v5329
    %v5436 = vpop.f32.mrf.mxu0
    %v5437 = vadd.f32 %v5368, %v5436
    %v5438 = vpop.f32.mrf.mxu0
    %5439 = vdwg.mxu0
    %5440 = vst [vmem:[#allocation8] sm:$0x3] %v5437
    // Predicated region
    $region74: #{baseline_forward_exit5.1} parent=1 // pred_check
      _
    $region75: #{baseline_forward_exit5.1} parent=1 // pred_check_branch
      %5442 = sbr.rel (0) target = $region77
    $region76: #{baseline_forward_exit5.1} parent=1 // pred_region
      %s5444 = ssub.s32 32, 32
      %5445 = vsyncadd [#allocation6], %s5444
      %s5447 = sshll.u32 [#allocation7], 4
      %s5448 = int_to_ptr.vmem [resolvable:$true] %s5447
      %5450 = dma.vmem_to_hbm [thread:$0]  %s5448, 32, %s17, [#allocation6]
    $region77: #{baseline_forward_exit5.1} parent=1 // pred_fallthru
      _
    // Predicated region
    $region78: #{baseline_forward_exit5.1} parent=1 // pred_check
      _
    $region79: #{baseline_forward_exit5.1} parent=1 // pred_check_branch
      %5452 = sbr.rel (0) target = $region81
    $region80: #{baseline_forward_exit5.1} parent=1 // pred_region
      %s5454 = ssub.s32 32, 32
      %5455 = vsyncadd [#allocation9], %s5454
      %s5457 = sshll.u32 [#allocation8], 4
      %s5458 = int_to_ptr.vmem [resolvable:$true] %s5457
      %5460 = dma.vmem_to_hbm [thread:$0]  %s5458, 32, %s18, [#allocation9]
    $region81: #{baseline_forward_exit5.1} parent=1 // pred_fallthru
      _
    // Predicated region
    $region82: #{baseline_forward_exit5.1} parent=1 // pred_check
      _
    $region83: #{baseline_forward_exit5.1} parent=1 // pred_check_branch
      %5462 = sbr.rel (0) target = $region85
    $region84: #{baseline_forward_exit5.1} parent=1 // pred_region
      %5463 = dma.done [#allocation6], 32
    $region85: #{baseline_forward_exit5.1} parent=1 // pred_fallthru
      _
    // Predicated region
    $region86: #{baseline_forward_exit5.1} parent=1 // pred_check
      _
    $region87: #{baseline_forward_exit5.1} parent=1 // pred_check_branch
      %5465 = sbr.rel (0) target = $region89
    $region88: #{baseline_forward_exit5.1} parent=1 // pred_region
      %5466 = dma.done [#allocation9], 32
    $region89: #{baseline_forward_exit5.1} parent=1 // pred_fallthru
      _
    %5467 = vsyncpa [#allocation5], 1
    %5468 = vsyncpa [#allocation6], 1
    %5469 = vsyncpa [#allocation9], 1
  %5470 = vsyncmov [#allocation3]
  %s5471 = vpop.sfrf %5470
  %p5472 = scmp.eq.s32.totalorder %s5471, 0
  %p5473 = pneg %p5472
  %5475 = shalt.err (%p5473)

</llo_original>
